<compile_context>
chip_gen: v7x
topology: tpu7x:2x2x1
jax: 0.10.0
libtpu: 0.0.40
codegen_flags: <defaults>
</compile_context>

<pallas_src>
import jax
import jax.numpy as jnp
from jax.experimental import pallas as pl
from jax.experimental.pallas import tpu as pltpu


# ---------------------------------------------------------------------------
# Helpers
# ---------------------------------------------------------------------------

_SMALL_FALLBACK_BYTES = 1 << 20      # < 1 MiB per operand -> plain jnp
_LANE_CANDIDATES = (512, 256, 128)   # lane-dense last dim (multiple of 128)


def _round_up(x, m):
    return ((x + m - 1) // m) * m


def _round_down(x, m):
    return (x // m) * m


def _sublane_multiple(dtype):
    # f32 -> 8, bf16/f16 -> 16, int8/fp8 -> 32 (sub-32-bit packs along sublanes)
    itemsize = jnp.dtype(dtype).itemsize
    return max(8, 32 // max(1, itemsize))


def _vmem_budget_bytes():
    """Scoped-VMEM budget per TensorCore, with robust fallbacks.

    Leaves ~25% headroom below physical VMEM (and never asks for more than
    100 MiB) so internal scratch / compiler slack never force smaller
    buffering or a compile failure (important on v7x: 64 MiB/TC physical).
    """
    phys = None
    try:
        phys = int(pltpu.get_tpu_info().vmem_capacity_bytes)
    except Exception:
        phys = None
    if phys is None:
        try:
            kind = jax.devices()[0].device_kind.lower()
            if "v5" in kind or "v6" in kind:
                phys = 128 << 20
            else:
                phys = 64 << 20          # v7x (and safe default)
        except Exception:
            phys = 64 << 20
    return min((phys * 3) // 4, 100 << 20)


# ---------------------------------------------------------------------------
# Pallas kernel
# ---------------------------------------------------------------------------

def _make_fusion_kernel(w1, w2):
    """out = a * w1 + b * w2 with static blend weights baked in."""
    def kernel(a_ref, b_ref, o_ref):
        o_ref[...] = a_ref[...] * w1 + b_ref[...] * w2
    return kernel


def pallas_early_fusion(feat_1, feat_2, fusion_perc):
    """feat_1 * (1 - p) + feat_2 * p via a tiled, mem-bound Pallas kernel."""
    assert feat_1.shape == feat_2.shape, "fused features must match in shape"
    assert feat_1.dtype == feat_2.dtype, "fused features must match in dtype"
    assert isinstance(fusion_perc, (int, float)), (
        "fusion_perc is a static module hyper-parameter, not a traced value")

    w2 = float(fusion_perc)
    w1 = float(1.0 - w2)

    orig_shape = feat_1.shape
    dtype = feat_1.dtype
    itemsize = jnp.dtype(dtype).itemsize
    total = 1
    for s in orig_shape:
        total *= int(s)
    total_bytes = total * itemsize

    # Lane width that exactly divides the element count -> no pad/slice copies.
    lane = next((l for l in _LANE_CANDIDATES if total % l == 0), None)

    # Tiny tensors or ragged totals: XLA's fused elementwise op beats a
    # pallas_call launch and avoids any extra HBM traffic.
    if lane is None or total_bytes < _SMALL_FALLBACK_BYTES:
        return feat_1 * w1 + feat_2 * w2

    rows = total // lane
    sub = _sublane_multiple(dtype)

    # Biggest block that fits comfortably: resident VMEM is
    # 3 arrays x 2 (double-buffer) x block, so target block <= budget / 8.
    vmem_budget = _vmem_budget_bytes()
    target_block_bytes = max(vmem_budget // 8, lane * sub * itemsize)
    rows_block = _round_down(target_block_bytes // (lane * itemsize), sub)
    rows_block = max(rows_block, sub)
    rows_block = min(rows_block, _round_up(rows, sub))
    # Keep >= 2 grid steps when there is enough work, so both v7x TensorCores
    # get a share under dimension_semantics=("parallel",).
    if rows > sub and pl.cdiv(rows, rows_block) < 2:
        rows_block = max(sub, _round_up(pl.cdiv(rows, 2), sub))

    grid = (pl.cdiv(rows, rows_block),)   # partial last block handled by Pallas

    a2 = feat_1.reshape(rows, lane)
    b2 = feat_2.reshape(rows, lane)

    out = pl.pallas_call(
        _make_fusion_kernel(w1, w2),
        out_shape=jax.ShapeDtypeStruct((rows, lane), dtype),
        grid=grid,
        in_specs=[
            pl.BlockSpec((rows_block, lane), lambda i: (i, 0)),
            pl.BlockSpec((rows_block, lane), lambda i: (i, 0)),
        ],
        out_specs=pl.BlockSpec((rows_block, lane), lambda i: (i, 0)),
        compiler_params=pltpu.CompilerParams(
            dimension_semantics=("parallel",),
            vmem_limit_bytes=vmem_budget,
        ),
        cost_estimate=pl.CostEstimate(
            flops=3 * total,
            transcendentals=0,
            bytes_accessed=3 * total_bytes,
        ),
        # TODO(synk): add input_output_aliases={0: 0} when the caller donates
        # feat_1 (removes the output allocation; no HBM-traffic change).
    )(a2, b2)

    return out.reshape(orig_shape)


# ---------------------------------------------------------------------------
# Module wrapper (mirrors the PyTorch EarlyFusionBlock)
# ---------------------------------------------------------------------------

class EarlyFusionBlock:
    def __init__(self, fuse=True, fusion_perc=0.5):
        # `cuda=True` in the PyTorch module is a device placement no-op here.
        self.fuse = fuse
        self.fusion_perc = fusion_perc

    def __call__(self, feat_1, feat_2):
        if self.fuse:
            return pallas_early_fusion(feat_1, feat_2, self.fusion_perc)
        return feat_1


# ---------------------------------------------------------------------------
# Main
# ---------------------------------------------------------------------------

if __name__ == "__main__":
    key = jax.random.PRNGKey(0)
    k1, k2, k3, k4 = jax.random.split(key, 4)

    block = EarlyFusionBlock(fuse=True, fusion_perc=0.5)
    fwd = jax.jit(block.__call__)

    # 1) Shape large enough to exercise the Pallas kernel path (4 MiB/operand).
    big_shape = (2, 4, 256, 512)
    f1 = jax.random.normal(k1, big_shape, jnp.float32)
    f2 = jax.random.normal(k2, big_shape, jnp.float32)
    out = jax.block_until_ready(fwd(f1, f2))
    ref = f1 * (1.0 - block.fusion_perc) + f2 * block.fusion_perc
    assert out.shape == big_shape
    assert bool(jnp.all(jnp.isfinite(out)))
    assert bool(jnp.allclose(out, ref, atol=1e-6, rtol=1e-6))

    # 2) Small shape consistent with the module demo: small-input fallback,
    #    identical forward semantics.
    small_shape = (2, 4, 16, 16)
    g1 = jax.random.normal(k3, small_shape, jnp.float32)
    g2 = jax.random.normal(k4, small_shape, jnp.float32)
    out_s = jax.block_until_ready(fwd(g1, g2))
    ref_s = g1 * (1.0 - block.fusion_perc) + g2 * block.fusion_perc
    assert out_s.shape == small_shape
    assert bool(jnp.allclose(out_s, ref_s, atol=1e-6, rtol=1e-6))

    # 3) fuse=False path (identity) — resolved statically, no kernel launched.
    block_nofuse = EarlyFusionBlock(fuse=False)
    out_id = jax.block_until_ready(jax.jit(block_nofuse.__call__)(g1, g2))
    assert bool(jnp.allclose(out_id, g1))

    print("KERNEL_OK")
</pallas_src>

<mosaic_0001>
module attributes {stable_mosaic.version = 11 : i64} {
  func.func @kernel(%arg0: i32, %arg1: memref<1024x512xf32, #tpu.memory_space<vmem>>, %arg2: memref<1024x512xf32, #tpu.memory_space<vmem>>, %arg3: memref<1024x512xf32, #tpu.memory_space<vmem>>) attributes {dimension_semantics = [#tpu.dimension_semantics<parallel>], iteration_bounds = array<i64: 2>, scalar_prefetch = 0 : i64, scratch_operands = 0 : i64, tpu.core_type = #tpu.core_type<tc>, window_params = [{transform_indices = @transform_0, window_bounds = array<i64: 1024, 512>}, {transform_indices = @transform_1, window_bounds = array<i64: 1024, 512>}, {transform_indices = @transform_2, window_bounds = array<i64: 1024, 512>}]} {
    %c0 = arith.constant 0 : index
    %c0_0 = arith.constant 0 : index
    %0 = vector.load %arg1[%c0, %c0_0] : memref<1024x512xf32, #tpu.memory_space<vmem>>, vector<1024x512xf32>
    %cst = arith.constant 5.000000e-01 : f32
    %1 = vector.broadcast %cst : f32 to vector<1024x512xf32>
    %2 = arith.mulf %0, %1 : vector<1024x512xf32>
    %c0_1 = arith.constant 0 : index
    %c0_2 = arith.constant 0 : index
    %3 = vector.load %arg2[%c0_1, %c0_2] : memref<1024x512xf32, #tpu.memory_space<vmem>>, vector<1024x512xf32>
    %cst_3 = arith.constant 5.000000e-01 : f32
    %4 = vector.broadcast %cst_3 : f32 to vector<1024x512xf32>
    %5 = arith.mulf %3, %4 : vector<1024x512xf32>
    %6 = arith.addf %2, %5 : vector<1024x512xf32>
    %c0_4 = arith.constant 0 : index
    %c0_5 = arith.constant 0 : index
    %7 = vector.load %arg3[%c0_4, %c0_5] : memref<1024x512xf32, #tpu.memory_space<vmem>>, vector<1024x512xf32>
    tpu.vector_store %arg3[%c0_4, %c0_5], %6 {strides = array<i32>} : memref<1024x512xf32, #tpu.memory_space<vmem>>, vector<1024x512xf32>,
    return
  }
  func.func @transform_0(%arg0: i32) -> (i32, i32) {
    %c0_i32 = arith.constant 0 : i32
    %c0_i32_0 = arith.constant 0 : i32
    return %arg0, %c0_i32 : i32, i32
  }
  func.func @transform_1(%arg0: i32) -> (i32, i32) {
    %c0_i32 = arith.constant 0 : i32
    %c0_i32_0 = arith.constant 0 : i32
    return %arg0, %c0_i32 : i32, i32
  }
  func.func @transform_2(%arg0: i32) -> (i32, i32) {
    %c0_i32 = arith.constant 0 : i32
    %c0_i32_0 = arith.constant 0 : i32
    return %arg0, %c0_i32 : i32, i32
  }
}

</mosaic_0001>

<llo_original>
// kernel: a_call__.1
$region0: #{a_call__.1}
  #allocation0 [shape = 'u32[]', space=smem, size = 0x4, offset = 0x4, fixed_abs, tag = 'smem constant byte address 0x4 - core index']
  #allocation1 [shape = 'u32[144,128]{1,0:T(1,128)}', space=vmem, size = 0x12000, scoped, tag = 'internal scratch']
  %s0 = inlined_call_operand.hbm [shape: f32[2048,512], index: 0, kind: input, shape index: {}]
  %s1 = inlined_call_operand.hbm [shape: f32[2048,512], index: 1, kind: input, shape index: {}]
  %s2 = inlined_call_operand.hbm [shape: f32[2048,512], index: 2, kind: output, shape index: {}]
  %s3 = sld [smem:[#allocation0]]
  $region49: #{a_call__.1} parent=0
    _
  %s5 = ssub.s32 1, %s3
  %s6 = scalar_select 0, %s5, %s3
  $region1: #{a_call__.1} parent=0
    #allocation2 [shape = 'u8[4194304]{0}', space=vmem, size = 0x400000, scoped, tag = 'input window, operand 0']
    #allocation3 [shape = 's32[2]{0}', space=sflag, size = 0x8, scoped, tag = 'scoped memory for a_call__.1']
    #allocation4 [shape = 's32[2]{0}', space=sflag, size = 0x8, scoped, tag = 'scoped memory for a_call__.1']
    #allocation5 [shape = 'u8[4194304]{0}', space=vmem, size = 0x400000, scoped, tag = 'input window, operand 1']
    #allocation6 [shape = 's32[2]{0}', space=sflag, size = 0x8, scoped, tag = 'scoped memory for a_call__.1']
    #allocation7 [shape = 'u8[4194304]{0}', space=vmem, size = 0x400000, scoped, tag = 'output window, operand 0']
    %7 = vsyncpa [#allocation3], 0
    %s8 = scalar_lea.sflag [#allocation3], 1
    %9 = vsyncpa %s8, 0
    %10 = vsyncpa [#allocation6], 0
    %s11 = scalar_lea.sflag [#allocation6], 1
    %12 = vsyncpa %s11, 0
    %13 = vsyncpa [#allocation4], 0
    %s14 = scalar_lea.sflag [#allocation4], 1
    %15 = vsyncpa %s14, 0
    loop: start=0, step=1, limit=4
    $region2: #{a_call__.1} parent=1 // loop_pre_header
      _
    $region3: #{a_call__.1} parent=1 // loop_header
      %s17 = sphi 0, %s21
      %p18 = scmp.ge.s32.totalorder %s17, 4
      %s27 = sphi 0, %s29
      %s30 = sphi 0, %s27
      %s31 = sphi 0, %s30
      %s47 = sphi 0, %s31
      %s53 = sphi 0, %s55
      %s56 = sphi 0, %s53
      %s57 = sphi 0, %s56
      %s73 = sphi 0, %s57
      %s79 = sphi 0, %s81
      %s82 = sphi 0, %s79
      %s83 = sphi 0, %s82
      %s99 = sphi 0, %s83
    $region4: #{a_call__.1} parent=1 // loop_header_branch
      %20 = sbr.rel (%p18) target = $region8
    $region5: #{a_call__.1} parent=1 // loop_body
      %s22 = ssub.s32 %s17, 1
      %s23 = ssub.s32 %s17, 2
      %s24 = sadd.s32 %s17, 1
      %s25 = ssub.s32 %s17, %s24
      %p26 = scmp.eq.s32.totalorder %s25, 0
      %s28 = sadd.s32 %s27, 1
      %s29 = scalar_select %p26, %s27, %s28
      %p32 = pneg %p26
      %p33 = scmp.eq.s32.totalorder %s17, 1
      %p34 = por %p32, %p33
      %p35 = scmp.ne.s32.totalorder %s27, %s30
      %p36 = scmp.eq.s32.totalorder %s17, 0
      %p37 = por %p35, %p36
      %p38 = scmp.ne.s32.totalorder %s27, %s30
      %p39 = scmp.eq.s32.totalorder %s22, 1
      %p40 = por %p38, %p39
      %p41 = scmp.ne.s32.totalorder %s30, %s31
      %p42 = scmp.eq.s32.totalorder %s22, 0
      %p43 = por %p41, %p42
      %p44 = scmp.ne.s32.totalorder %s30, %s31
      %p45 = scmp.eq.s32.totalorder %s23, 1
      %p46 = por %p44, %p45
      %p48 = scmp.ne.s32.totalorder %s31, %s47
      %p49 = scmp.eq.s32.totalorder %s23, 0
      %p50 = por %p48, %p49
      %s51 = ssub.s32 %s17, %s24
      %p52 = scmp.eq.s32.totalorder %s51, 0
      %s54 = sadd.s32 %s53, 1
      %s55 = scalar_select %p52, %s53, %s54
      %p58 = pneg %p52
      %p59 = scmp.eq.s32.totalorder %s17, 1
      %p60 = por %p58, %p59
      %p61 = scmp.ne.s32.totalorder %s53, %s56
      %p62 = scmp.eq.s32.totalorder %s17, 0
      %p63 = por %p61, %p62
      %p64 = scmp.ne.s32.totalorder %s53, %s56
      %p65 = scmp.eq.s32.totalorder %s22, 1
      %p66 = por %p64, %p65
      %p67 = scmp.ne.s32.totalorder %s56, %s57
      %p68 = scmp.eq.s32.totalorder %s22, 0
      %p69 = por %p67, %p68
      %p70 = scmp.ne.s32.totalorder %s56, %s57
      %p71 = scmp.eq.s32.totalorder %s23, 1
      %p72 = por %p70, %p71
      %p74 = scmp.ne.s32.totalorder %s57, %s73
      %p75 = scmp.eq.s32.totalorder %s23, 0
      %p76 = por %p74, %p75
      %s77 = ssub.s32 %s17, %s24
      %p78 = scmp.eq.s32.totalorder %s77, 0
      %s80 = sadd.s32 %s79, 1
      %s81 = scalar_select %p78, %s79, %s80
      %p84 = pneg %p78
      %p85 = scmp.eq.s32.totalorder %s17, 1
      %p86 = por %p84, %p85
      %p87 = scmp.ne.s32.totalorder %s79, %s82
      %p88 = scmp.eq.s32.totalorder %s17, 0
      %p89 = por %p87, %p88
      %p90 = scmp.ne.s32.totalorder %s79, %s82
      %p91 = scmp.eq.s32.totalorder %s22, 1
      %p92 = por %p90, %p91
      %p93 = scmp.ne.s32.totalorder %s82, %s83
      %p94 = scmp.eq.s32.totalorder %s22, 0
      %p95 = por %p93, %p94
      %p96 = scmp.ne.s32.totalorder %s82, %s83
      %p97 = scmp.eq.s32.totalorder %s23, 1
      %p98 = por %p96, %p97
      %p100 = scmp.ne.s32.totalorder %s83, %s99
      %p101 = scmp.eq.s32.totalorder %s23, 0
      %p102 = por %p100, %p101
      %p103 = scmp.le.s32.totalorder 1, %s17
      %p104 = scmp.lt.s32.totalorder %s17, 3
      %p105 = pnand %p103, %p104
      %p106 = pneg %p105
      // Predicated region
      $region9: #{a_call__.1} parent=5 // pred_check
        _
      $region10: #{a_call__.1} parent=5 // pred_check_branch
        %108 = sbr.rel (%p105) target = $region12
      $region11: #{a_call__.1} parent=5 // pred_region
        %s109 = ssub.s32 %s17, 1
      $region12: #{a_call__.1} parent=5 // pred_fallthru
        _
      %p110 = scmp.lt.s32.totalorder %s17, 2
      // Predicated region
      $region13: #{a_call__.1} parent=5 // pred_check
        %p111 = pneg %p110
      $region14: #{a_call__.1} parent=5 // pred_check_branch
        %113 = sbr.rel (%p111) target = $region16
      $region15: #{a_call__.1} parent=5 // pred_region
        // Predicated region
        $region17: #{a_call__.1} parent=15 // pred_check
          %p114 = pneg %p37
        $region18: #{a_call__.1} parent=15 // pred_check_branch
          %116 = sbr.rel (%p114) target = $region20
        $region19: #{a_call__.1} parent=15 // pred_region
          %s117 = sand.u32 %s27, 1
          %s118 = scalar_lea.sflag [#allocation3], %s117
          %s119 = sand.u32 %s27, 1
          %s120 = smul.addr %s119, 4096
          %s121 = scalar_lea.vmem [#allocation2], %s120
          %s122 = smul.u32 128, %s17
          %s124 = ssub.s32 65536, 65536
          %125 = vsyncadd %s118, %s124
          %s126 = smul.addr %s122, 4
          %s127 = smul.addr %s126, 128
          %s128 = scalar_lea.hbm %s0, %s127
          %s129 = sshll.u32 %s121, 4
          %s130 = int_to_ptr.vmem [resolvable:$true] %s129
          %135 = dma.hbm_to_vmem [thread:$0]  %s128, 65536, %s130, %s118, 512, 512, 32
        $region20: #{a_call__.1} parent=15 // pred_fallthru
          _
        // Predicated region
        $region21: #{a_call__.1} parent=15 // pred_check
          %p136 = pneg %p63
        $region22: #{a_call__.1} parent=15 // pred_check_branch
          %138 = sbr.rel (%p136) target = $region24
        $region23: #{a_call__.1} parent=15 // pred_region
          %s139 = sand.u32 %s53, 1
          %s140 = scalar_lea.sflag [#allocation6], %s139
          %s141 = sand.u32 %s53, 1
          %s142 = smul.addr %s141, 4096
          %s143 = scalar_lea.vmem [#allocation5], %s142
          %s144 = smul.u32 128, %s17
          %s146 = ssub.s32 65536, 65536
          %147 = vsyncadd %s140, %s146
          %s148 = smul.addr %s144, 4
          %s149 = smul.addr %s148, 128
          %s150 = scalar_lea.hbm %s1, %s149
          %s151 = sshll.u32 %s143, 4
          %s152 = int_to_ptr.vmem [resolvable:$true] %s151
          %157 = dma.hbm_to_vmem [thread:$0]  %s150, 65536, %s152, %s140, 512, 512, 32
        $region24: #{a_call__.1} parent=15 // pred_fallthru
          _
      $region16: #{a_call__.1} parent=5 // pred_fallthru
        _
      %p158 = scmp.le.s32.totalorder 1, %s17
      %p159 = scmp.lt.s32.totalorder %s17, 3
      %p160 = pnand %p158, %p159
      %p161 = pneg %p160
      // Predicated region
      $region25: #{a_call__.1} parent=5 // pred_check
        _
      $region26: #{a_call__.1} parent=5 // pred_check_branch
        %163 = sbr.rel (%p160) target = $region28
      $region27: #{a_call__.1} parent=5 // pred_region
        %s164 = ssub.s32 %s17, 1
        %s165 = sand.u32 %s30, 1
        %s166 = scalar_lea.sflag [#allocation3], %s165
        %s167 = sand.u32 %s30, 1
        %s168 = smul.addr %s167, 4096
        %s169 = scalar_lea.vmem [#allocation2], %s168
        // Predicated region
        $region29: #{a_call__.1} parent=27 // pred_check
          %p170 = pneg %p43
        $region30: #{a_call__.1} parent=27 // pred_check_branch
          %172 = sbr.rel (%p170) target = $region32
        $region31: #{a_call__.1} parent=27 // pred_region
          %173 = dma.done %s166, 65536
        $region32: #{a_call__.1} parent=27 // pred_fallthru
          _
        %s174 = sand.u32 %s56, 1
        %s175 = scalar_lea.sflag [#allocation6], %s174
        %s176 = sand.u32 %s56, 1
        %s177 = smul.addr %s176, 4096
        %s178 = scalar_lea.vmem [#allocation5], %s177
        // Predicated region
        $region33: #{a_call__.1} parent=27 // pred_check
          %p179 = pneg %p69
        $region34: #{a_call__.1} parent=27 // pred_check_branch
          %181 = sbr.rel (%p179) target = $region36
        $region35: #{a_call__.1} parent=27 // pred_region
          %182 = dma.done %s175, 65536
        $region36: #{a_call__.1} parent=27 // pred_fallthru
          _
        %s183 = sand.u32 %s30, 1
        %s184 = scalar_lea.sflag [#allocation3], %s183
        %s185 = sand.u32 %s30, 1
        %s186 = smul.addr %s185, 4096
        %s187 = scalar_lea.vmem [#allocation2], %s186
        %p188 = pneg %p43
        %p189 = pneg %p40
        %s190 = sand.u32 %s56, 1
        %s191 = scalar_lea.sflag [#allocation6], %s190
        %s192 = sand.u32 %s56, 1
        %s193 = smul.addr %s192, 4096
        %s194 = scalar_lea.vmem [#allocation5], %s193
        %p195 = pneg %p69
        %p196 = pneg %p66
        %p197 = pneg %p95
        %p198 = pneg %p92
        %s199 = sand.u32 %s82, 1
        %s200 = scalar_lea.sflag [#allocation4], %s199
        %s201 = sand.u32 %s82, 1
        %s202 = smul.addr %s201, 4096
        %s203 = scalar_lea.vmem [#allocation7], %s202
        %s204 = smul.u32 128, %s22
        %s205 = smul.u32 128, %s22
        %s206 = smul.u32 128, %s22
        %v207 = vld [vmem:[%s169] sm:$0xff]
        %v208 = vld [vmem:[%s169 + $0x8] sm:$0xff]
        %v209 = vld [vmem:[%s169 + $0x10] sm:$0xff]
        %v210 = vld [vmem:[%s169 + $0x18] sm:$0xff]
        %v211 = vld [vmem:[%s169 + $0x20] sm:$0xff]
        %v212 = vld [vmem:[%s169 + $0x28] sm:$0xff]
        %v213 = vld [vmem:[%s169 + $0x30] sm:$0xff]
        %v214 = vld [vmem:[%s169 + $0x38] sm:$0xff]
        %v215 = vld [vmem:[%s169 + $0x40] sm:$0xff]
        %v216 = vld [vmem:[%s169 + $0x48] sm:$0xff]
        %v217 = vld [vmem:[%s169 + $0x50] sm:$0xff]
        %v218 = vld [vmem:[%s169 + $0x58] sm:$0xff]
        %v219 = vld [vmem:[%s169 + $0x60] sm:$0xff]
        %v220 = vld [vmem:[%s169 + $0x68] sm:$0xff]
        %v221 = vld [vmem:[%s169 + $0x70] sm:$0xff]
        %v222 = vld [vmem:[%s169 + $0x78] sm:$0xff]
        %v223 = vld [vmem:[%s169 + $0x80] sm:$0xff]
        %v224 = vld [vmem:[%s169 + $0x88] sm:$0xff]
        %v225 = vld [vmem:[%s169 + $0x90] sm:$0xff]
        %v226 = vld [vmem:[%s169 + $0x98] sm:$0xff]
        %v227 = vld [vmem:[%s169 + $0xa0] sm:$0xff]
        %v228 = vld [vmem:[%s169 + $0xa8] sm:$0xff]
        %v229 = vld [vmem:[%s169 + $0xb0] sm:$0xff]
        %v230 = vld [vmem:[%s169 + $0xb8] sm:$0xff]
        %v231 = vld [vmem:[%s169 + $0xc0] sm:$0xff]
        %v232 = vld [vmem:[%s169 + $0xc8] sm:$0xff]
        %v233 = vld [vmem:[%s169 + $0xd0] sm:$0xff]
        %v234 = vld [vmem:[%s169 + $0xd8] sm:$0xff]
        %v235 = vld [vmem:[%s169 + $0xe0] sm:$0xff]
        %v236 = vld [vmem:[%s169 + $0xe8] sm:$0xff]
        %v237 = vld [vmem:[%s169 + $0xf0] sm:$0xff]
        %v238 = vld [vmem:[%s169 + $0xf8] sm:$0xff]
        %v239 = vld [vmem:[%s169 + $0x100] sm:$0xff]
        %v240 = vld [vmem:[%s169 + $0x108] sm:$0xff]
        %v241 = vld [vmem:[%s169 + $0x110] sm:$0xff]
        %v242 = vld [vmem:[%s169 + $0x118] sm:$0xff]
        %v243 = vld [vmem:[%s169 + $0x120] sm:$0xff]
        %v244 = vld [vmem:[%s169 + $0x128] sm:$0xff]
        %v245 = vld [vmem:[%s169 + $0x130] sm:$0xff]
        %v246 = vld [vmem:[%s169 + $0x138] sm:$0xff]
        %v247 = vld [vmem:[%s169 + $0x140] sm:$0xff]
        %v248 = vld [vmem:[%s169 + $0x148] sm:$0xff]
        %v249 = vld [vmem:[%s169 + $0x150] sm:$0xff]
        %v250 = vld [vmem:[%s169 + $0x158] sm:$0xff]
        %v251 = vld [vmem:[%s169 + $0x160] sm:$0xff]
        %v252 = vld [vmem:[%s169 + $0x168] sm:$0xff]
        %v253 = vld [vmem:[%s169 + $0x170] sm:$0xff]
        %v254 = vld [vmem:[%s169 + $0x178] sm:$0xff]
        %v255 = vld [vmem:[%s169 + $0x180] sm:$0xff]
        %v256 = vld [vmem:[%s169 + $0x188] sm:$0xff]
        %v257 = vld [vmem:[%s169 + $0x190] sm:$0xff]
        %v258 = vld [vmem:[%s169 + $0x198] sm:$0xff]
        %v259 = vld [vmem:[%s169 + $0x1a0] sm:$0xff]
        %v260 = vld [vmem:[%s169 + $0x1a8] sm:$0xff]
        %v261 = vld [vmem:[%s169 + $0x1b0] sm:$0xff]
        %v262 = vld [vmem:[%s169 + $0x1b8] sm:$0xff]
        %v263 = vld [vmem:[%s169 + $0x1c0] sm:$0xff]
        %v264 = vld [vmem:[%s169 + $0x1c8] sm:$0xff]
        %v265 = vld [vmem:[%s169 + $0x1d0] sm:$0xff]
        %v266 = vld [vmem:[%s169 + $0x1d8] sm:$0xff]
        %v267 = vld [vmem:[%s169 + $0x1e0] sm:$0xff]
        %v268 = vld [vmem:[%s169 + $0x1e8] sm:$0xff]
        %v269 = vld [vmem:[%s169 + $0x1f0] sm:$0xff]
        %v270 = vld [vmem:[%s169 + $0x1f8] sm:$0xff]
        %v271 = vld [vmem:[%s169 + $0x200] sm:$0xff]
        %v272 = vld [vmem:[%s169 + $0x208] sm:$0xff]
        %v273 = vld [vmem:[%s169 + $0x210] sm:$0xff]
        %v274 = vld [vmem:[%s169 + $0x218] sm:$0xff]
        %v275 = vld [vmem:[%s169 + $0x220] sm:$0xff]
        %v276 = vld [vmem:[%s169 + $0x228] sm:$0xff]
        %v277 = vld [vmem:[%s169 + $0x230] sm:$0xff]
        %v278 = vld [vmem:[%s169 + $0x238] sm:$0xff]
        %v279 = vld [vmem:[%s169 + $0x240] sm:$0xff]
        %v280 = vld [vmem:[%s169 + $0x248] sm:$0xff]
        %v281 = vld [vmem:[%s169 + $0x250] sm:$0xff]
        %v282 = vld [vmem:[%s169 + $0x258] sm:$0xff]
        %v283 = vld [vmem:[%s169 + $0x260] sm:$0xff]
        %v284 = vld [vmem:[%s169 + $0x268] sm:$0xff]
        %v285 = vld [vmem:[%s169 + $0x270] sm:$0xff]
        %v286 = vld [vmem:[%s169 + $0x278] sm:$0xff]
        %v287 = vld [vmem:[%s169 + $0x280] sm:$0xff]
        %v288 = vld [vmem:[%s169 + $0x288] sm:$0xff]
        %v289 = vld [vmem:[%s169 + $0x290] sm:$0xff]
        %v290 = vld [vmem:[%s169 + $0x298] sm:$0xff]
        %v291 = vld [vmem:[%s169 + $0x2a0] sm:$0xff]
        %v292 = vld [vmem:[%s169 + $0x2a8] sm:$0xff]
        %v293 = vld [vmem:[%s169 + $0x2b0] sm:$0xff]
        %v294 = vld [vmem:[%s169 + $0x2b8] sm:$0xff]
        %v295 = vld [vmem:[%s169 + $0x2c0] sm:$0xff]
        %v296 = vld [vmem:[%s169 + $0x2c8] sm:$0xff]
        %v297 = vld [vmem:[%s169 + $0x2d0] sm:$0xff]
        %v298 = vld [vmem:[%s169 + $0x2d8] sm:$0xff]
        %v299 = vld [vmem:[%s169 + $0x2e0] sm:$0xff]
        %v300 = vld [vmem:[%s169 + $0x2e8] sm:$0xff]
        %v301 = vld [vmem:[%s169 + $0x2f0] sm:$0xff]
        %v302 = vld [vmem:[%s169 + $0x2f8] sm:$0xff]
        %v303 = vld [vmem:[%s169 + $0x300] sm:$0xff]
        %v304 = vld [vmem:[%s169 + $0x308] sm:$0xff]
        %v305 = vld [vmem:[%s169 + $0x310] sm:$0xff]
        %v306 = vld [vmem:[%s169 + $0x318] sm:$0xff]
        %v307 = vld [vmem:[%s169 + $0x320] sm:$0xff]
        %v308 = vld [vmem:[%s169 + $0x328] sm:$0xff]
        %v309 = vld [vmem:[%s169 + $0x330] sm:$0xff]
        %v310 = vld [vmem:[%s169 + $0x338] sm:$0xff]
        %v311 = vld [vmem:[%s169 + $0x340] sm:$0xff]
        %v312 = vld [vmem:[%s169 + $0x348] sm:$0xff]
        %v313 = vld [vmem:[%s169 + $0x350] sm:$0xff]
        %v314 = vld [vmem:[%s169 + $0x358] sm:$0xff]
        %v315 = vld [vmem:[%s169 + $0x360] sm:$0xff]
        %v316 = vld [vmem:[%s169 + $0x368] sm:$0xff]
        %v317 = vld [vmem:[%s169 + $0x370] sm:$0xff]
        %v318 = vld [vmem:[%s169 + $0x378] sm:$0xff]
        %v319 = vld [vmem:[%s169 + $0x380] sm:$0xff]
        %v320 = vld [vmem:[%s169 + $0x388] sm:$0xff]
        %v321 = vld [vmem:[%s169 + $0x390] sm:$0xff]
        %v322 = vld [vmem:[%s169 + $0x398] sm:$0xff]
        %v323 = vld [vmem:[%s169 + $0x3a0] sm:$0xff]
        %v324 = vld [vmem:[%s169 + $0x3a8] sm:$0xff]
        %v325 = vld [vmem:[%s169 + $0x3b0] sm:$0xff]
        %v326 = vld [vmem:[%s169 + $0x3b8] sm:$0xff]
        %v327 = vld [vmem:[%s169 + $0x3c0] sm:$0xff]
        %v328 = vld [vmem:[%s169 + $0x3c8] sm:$0xff]
        %v329 = vld [vmem:[%s169 + $0x3d0] sm:$0xff]
        %v330 = vld [vmem:[%s169 + $0x3d8] sm:$0xff]
        %v331 = vld [vmem:[%s169 + $0x3e0] sm:$0xff]
        %v332 = vld [vmem:[%s169 + $0x3e8] sm:$0xff]
        %v333 = vld [vmem:[%s169 + $0x3f0] sm:$0xff]
        %v334 = vld [vmem:[%s169 + $0x3f8] sm:$0xff]
        %v335 = vld [vmem:[%s169 + $0x400] sm:$0xff]
        %v336 = vld [vmem:[%s169 + $0x408] sm:$0xff]
        %v337 = vld [vmem:[%s169 + $0x410] sm:$0xff]
        %v338 = vld [vmem:[%s169 + $0x418] sm:$0xff]
        %v339 = vld [vmem:[%s169 + $0x420] sm:$0xff]
        %v340 = vld [vmem:[%s169 + $0x428] sm:$0xff]
        %v341 = vld [vmem:[%s169 + $0x430] sm:$0xff]
        %v342 = vld [vmem:[%s169 + $0x438] sm:$0xff]
        %v343 = vld [vmem:[%s169 + $0x440] sm:$0xff]
        %v344 = vld [vmem:[%s169 + $0x448] sm:$0xff]
        %v345 = vld [vmem:[%s169 + $0x450] sm:$0xff]
        %v346 = vld [vmem:[%s169 + $0x458] sm:$0xff]
        %v347 = vld [vmem:[%s169 + $0x460] sm:$0xff]
        %v348 = vld [vmem:[%s169 + $0x468] sm:$0xff]
        %v349 = vld [vmem:[%s169 + $0x470] sm:$0xff]
        %v350 = vld [vmem:[%s169 + $0x478] sm:$0xff]
        %v351 = vld [vmem:[%s169 + $0x480] sm:$0xff]
        %v352 = vld [vmem:[%s169 + $0x488] sm:$0xff]
        %v353 = vld [vmem:[%s169 + $0x490] sm:$0xff]
        %v354 = vld [vmem:[%s169 + $0x498] sm:$0xff]
        %v355 = vld [vmem:[%s169 + $0x4a0] sm:$0xff]
        %v356 = vld [vmem:[%s169 + $0x4a8] sm:$0xff]
        %v357 = vld [vmem:[%s169 + $0x4b0] sm:$0xff]
        %v358 = vld [vmem:[%s169 + $0x4b8] sm:$0xff]
        %v359 = vld [vmem:[%s169 + $0x4c0] sm:$0xff]
        %v360 = vld [vmem:[%s169 + $0x4c8] sm:$0xff]
        %v361 = vld [vmem:[%s169 + $0x4d0] sm:$0xff]
        %v362 = vld [vmem:[%s169 + $0x4d8] sm:$0xff]
        %v363 = vld [vmem:[%s169 + $0x4e0] sm:$0xff]
        %v364 = vld [vmem:[%s169 + $0x4e8] sm:$0xff]
        %v365 = vld [vmem:[%s169 + $0x4f0] sm:$0xff]
        %v366 = vld [vmem:[%s169 + $0x4f8] sm:$0xff]
        %v367 = vld [vmem:[%s169 + $0x500] sm:$0xff]
        %v368 = vld [vmem:[%s169 + $0x508] sm:$0xff]
        %v369 = vld [vmem:[%s169 + $0x510] sm:$0xff]
        %v370 = vld [vmem:[%s169 + $0x518] sm:$0xff]
        %v371 = vld [vmem:[%s169 + $0x520] sm:$0xff]
        %v372 = vld [vmem:[%s169 + $0x528] sm:$0xff]
        %v373 = vld [vmem:[%s169 + $0x530] sm:$0xff]
        %v374 = vld [vmem:[%s169 + $0x538] sm:$0xff]
        %v375 = vld [vmem:[%s169 + $0x540] sm:$0xff]
        %v376 = vld [vmem:[%s169 + $0x548] sm:$0xff]
        %v377 = vld [vmem:[%s169 + $0x550] sm:$0xff]
        %v378 = vld [vmem:[%s169 + $0x558] sm:$0xff]
        %v379 = vld [vmem:[%s169 + $0x560] sm:$0xff]
        %v380 = vld [vmem:[%s169 + $0x568] sm:$0xff]
        %v381 = vld [vmem:[%s169 + $0x570] sm:$0xff]
        %v382 = vld [vmem:[%s169 + $0x578] sm:$0xff]
        %v383 = vld [vmem:[%s169 + $0x580] sm:$0xff]
        %v384 = vld [vmem:[%s169 + $0x588] sm:$0xff]
        %v385 = vld [vmem:[%s169 + $0x590] sm:$0xff]
        %v386 = vld [vmem:[%s169 + $0x598] sm:$0xff]
        %v387 = vld [vmem:[%s169 + $0x5a0] sm:$0xff]
        %v388 = vld [vmem:[%s169 + $0x5a8] sm:$0xff]
        %v389 = vld [vmem:[%s169 + $0x5b0] sm:$0xff]
        %v390 = vld [vmem:[%s169 + $0x5b8] sm:$0xff]
        %v391 = vld [vmem:[%s169 + $0x5c0] sm:$0xff]
        %v392 = vld [vmem:[%s169 + $0x5c8] sm:$0xff]
        %v393 = vld [vmem:[%s169 + $0x5d0] sm:$0xff]
        %v394 = vld [vmem:[%s169 + $0x5d8] sm:$0xff]
        %v395 = vld [vmem:[%s169 + $0x5e0] sm:$0xff]
        %v396 = vld [vmem:[%s169 + $0x5e8] sm:$0xff]
        %v397 = vld [vmem:[%s169 + $0x5f0] sm:$0xff]
        %v398 = vld [vmem:[%s169 + $0x5f8] sm:$0xff]
        %v399 = vld [vmem:[%s169 + $0x600] sm:$0xff]
        %v400 = vld [vmem:[%s169 + $0x608] sm:$0xff]
        %v401 = vld [vmem:[%s169 + $0x610] sm:$0xff]
        %v402 = vld [vmem:[%s169 + $0x618] sm:$0xff]
        %v403 = vld [vmem:[%s169 + $0x620] sm:$0xff]
        %v404 = vld [vmem:[%s169 + $0x628] sm:$0xff]
        %v405 = vld [vmem:[%s169 + $0x630] sm:$0xff]
        %v406 = vld [vmem:[%s169 + $0x638] sm:$0xff]
        %v407 = vld [vmem:[%s169 + $0x640] sm:$0xff]
        %v408 = vld [vmem:[%s169 + $0x648] sm:$0xff]
        %v409 = vld [vmem:[%s169 + $0x650] sm:$0xff]
        %v410 = vld [vmem:[%s169 + $0x658] sm:$0xff]
        %v411 = vld [vmem:[%s169 + $0x660] sm:$0xff]
        %v412 = vld [vmem:[%s169 + $0x668] sm:$0xff]
        %v413 = vld [vmem:[%s169 + $0x670] sm:$0xff]
        %v414 = vld [vmem:[%s169 + $0x678] sm:$0xff]
        %v415 = vld [vmem:[%s169 + $0x680] sm:$0xff]
        %v416 = vld [vmem:[%s169 + $0x688] sm:$0xff]
        %v417 = vld [vmem:[%s169 + $0x690] sm:$0xff]
        %v418 = vld [vmem:[%s169 + $0x698] sm:$0xff]
        %v419 = vld [vmem:[%s169 + $0x6a0] sm:$0xff]
        %v420 = vld [vmem:[%s169 + $0x6a8] sm:$0xff]
        %v421 = vld [vmem:[%s169 + $0x6b0] sm:$0xff]
        %v422 = vld [vmem:[%s169 + $0x6b8] sm:$0xff]
        %v423 = vld [vmem:[%s169 + $0x6c0] sm:$0xff]
        %v424 = vld [vmem:[%s169 + $0x6c8] sm:$0xff]
        %v425 = vld [vmem:[%s169 + $0x6d0] sm:$0xff]
        %v426 = vld [vmem:[%s169 + $0x6d8] sm:$0xff]
        %v427 = vld [vmem:[%s169 + $0x6e0] sm:$0xff]
        %v428 = vld [vmem:[%s169 + $0x6e8] sm:$0xff]
        %v429 = vld [vmem:[%s169 + $0x6f0] sm:$0xff]
        %v430 = vld [vmem:[%s169 + $0x6f8] sm:$0xff]
        %v431 = vld [vmem:[%s169 + $0x700] sm:$0xff]
        %v432 = vld [vmem:[%s169 + $0x708] sm:$0xff]
        %v433 = vld [vmem:[%s169 + $0x710] sm:$0xff]
        %v434 = vld [vmem:[%s169 + $0x718] sm:$0xff]
        %v435 = vld [vmem:[%s169 + $0x720] sm:$0xff]
        %v436 = vld [vmem:[%s169 + $0x728] sm:$0xff]
        %v437 = vld [vmem:[%s169 + $0x730] sm:$0xff]
        %v438 = vld [vmem:[%s169 + $0x738] sm:$0xff]
        %v439 = vld [vmem:[%s169 + $0x740] sm:$0xff]
        %v440 = vld [vmem:[%s169 + $0x748] sm:$0xff]
        %v441 = vld [vmem:[%s169 + $0x750] sm:$0xff]
        %v442 = vld [vmem:[%s169 + $0x758] sm:$0xff]
        %v443 = vld [vmem:[%s169 + $0x760] sm:$0xff]
        %v444 = vld [vmem:[%s169 + $0x768] sm:$0xff]
        %v445 = vld [vmem:[%s169 + $0x770] sm:$0xff]
        %v446 = vld [vmem:[%s169 + $0x778] sm:$0xff]
        %v447 = vld [vmem:[%s169 + $0x780] sm:$0xff]
        %v448 = vld [vmem:[%s169 + $0x788] sm:$0xff]
        %v449 = vld [vmem:[%s169 + $0x790] sm:$0xff]
        %v450 = vld [vmem:[%s169 + $0x798] sm:$0xff]
        %v451 = vld [vmem:[%s169 + $0x7a0] sm:$0xff]
        %v452 = vld [vmem:[%s169 + $0x7a8] sm:$0xff]
        %v453 = vld [vmem:[%s169 + $0x7b0] sm:$0xff]
        %v454 = vld [vmem:[%s169 + $0x7b8] sm:$0xff]
        %v455 = vld [vmem:[%s169 + $0x7c0] sm:$0xff]
        %v456 = vld [vmem:[%s169 + $0x7c8] sm:$0xff]
        %v457 = vld [vmem:[%s169 + $0x7d0] sm:$0xff]
        %v458 = vld [vmem:[%s169 + $0x7d8] sm:$0xff]
        %v459 = vld [vmem:[%s169 + $0x7e0] sm:$0xff]
        %v460 = vld [vmem:[%s169 + $0x7e8] sm:$0xff]
        %v461 = vld [vmem:[%s169 + $0x7f0] sm:$0xff]
        %v462 = vld [vmem:[%s169 + $0x7f8] sm:$0xff]
        %v463 = vld [vmem:[%s169 + $0x800] sm:$0xff]
        %v464 = vld [vmem:[%s169 + $0x808] sm:$0xff]
        %v465 = vld [vmem:[%s169 + $0x810] sm:$0xff]
        %v466 = vld [vmem:[%s169 + $0x818] sm:$0xff]
        %v467 = vld [vmem:[%s169 + $0x820] sm:$0xff]
        %v468 = vld [vmem:[%s169 + $0x828] sm:$0xff]
        %v469 = vld [vmem:[%s169 + $0x830] sm:$0xff]
        %v470 = vld [vmem:[%s169 + $0x838] sm:$0xff]
        %v471 = vld [vmem:[%s169 + $0x840] sm:$0xff]
        %v472 = vld [vmem:[%s169 + $0x848] sm:$0xff]
        %v473 = vld [vmem:[%s169 + $0x850] sm:$0xff]
        %v474 = vld [vmem:[%s169 + $0x858] sm:$0xff]
        %v475 = vld [vmem:[%s169 + $0x860] sm:$0xff]
        %v476 = vld [vmem:[%s169 + $0x868] sm:$0xff]
        %v477 = vld [vmem:[%s169 + $0x870] sm:$0xff]
        %v478 = vld [vmem:[%s169 + $0x878] sm:$0xff]
        %v479 = vld [vmem:[%s169 + $0x880] sm:$0xff]
        %v480 = vld [vmem:[%s169 + $0x888] sm:$0xff]
        %v481 = vld [vmem:[%s169 + $0x890] sm:$0xff]
        %v482 = vld [vmem:[%s169 + $0x898] sm:$0xff]
        %v483 = vld [vmem:[%s169 + $0x8a0] sm:$0xff]
        %v484 = vld [vmem:[%s169 + $0x8a8] sm:$0xff]
        %v485 = vld [vmem:[%s169 + $0x8b0] sm:$0xff]
        %v486 = vld [vmem:[%s169 + $0x8b8] sm:$0xff]
        %v487 = vld [vmem:[%s169 + $0x8c0] sm:$0xff]
        %v488 = vld [vmem:[%s169 + $0x8c8] sm:$0xff]
        %v489 = vld [vmem:[%s169 + $0x8d0] sm:$0xff]
        %v490 = vld [vmem:[%s169 + $0x8d8] sm:$0xff]
        %v491 = vld [vmem:[%s169 + $0x8e0] sm:$0xff]
        %v492 = vld [vmem:[%s169 + $0x8e8] sm:$0xff]
        %v493 = vld [vmem:[%s169 + $0x8f0] sm:$0xff]
        %v494 = vld [vmem:[%s169 + $0x8f8] sm:$0xff]
        %v495 = vld [vmem:[%s169 + $0x900] sm:$0xff]
        %v496 = vld [vmem:[%s169 + $0x908] sm:$0xff]
        %v497 = vld [vmem:[%s169 + $0x910] sm:$0xff]
        %v498 = vld [vmem:[%s169 + $0x918] sm:$0xff]
        %v499 = vld [vmem:[%s169 + $0x920] sm:$0xff]
        %v500 = vld [vmem:[%s169 + $0x928] sm:$0xff]
        %v501 = vld [vmem:[%s169 + $0x930] sm:$0xff]
        %v502 = vld [vmem:[%s169 + $0x938] sm:$0xff]
        %v503 = vld [vmem:[%s169 + $0x940] sm:$0xff]
        %v504 = vld [vmem:[%s169 + $0x948] sm:$0xff]
        %v505 = vld [vmem:[%s169 + $0x950] sm:$0xff]
        %v506 = vld [vmem:[%s169 + $0x958] sm:$0xff]
        %v507 = vld [vmem:[%s169 + $0x960] sm:$0xff]
        %v508 = vld [vmem:[%s169 + $0x968] sm:$0xff]
        %v509 = vld [vmem:[%s169 + $0x970] sm:$0xff]
        %v510 = vld [vmem:[%s169 + $0x978] sm:$0xff]
        %v511 = vld [vmem:[%s169 + $0x980] sm:$0xff]
        %v512 = vld [vmem:[%s169 + $0x988] sm:$0xff]
        %v513 = vld [vmem:[%s169 + $0x990] sm:$0xff]
        %v514 = vld [vmem:[%s169 + $0x998] sm:$0xff]
        %v515 = vld [vmem:[%s169 + $0x9a0] sm:$0xff]
        %v516 = vld [vmem:[%s169 + $0x9a8] sm:$0xff]
        %v517 = vld [vmem:[%s169 + $0x9b0] sm:$0xff]
        %v518 = vld [vmem:[%s169 + $0x9b8] sm:$0xff]
        %v519 = vld [vmem:[%s169 + $0x9c0] sm:$0xff]
        %v520 = vld [vmem:[%s169 + $0x9c8] sm:$0xff]
        %v521 = vld [vmem:[%s169 + $0x9d0] sm:$0xff]
        %v522 = vld [vmem:[%s169 + $0x9d8] sm:$0xff]
        %v523 = vld [vmem:[%s169 + $0x9e0] sm:$0xff]
        %v524 = vld [vmem:[%s169 + $0x9e8] sm:$0xff]
        %v525 = vld [vmem:[%s169 + $0x9f0] sm:$0xff]
        %v526 = vld [vmem:[%s169 + $0x9f8] sm:$0xff]
        %v527 = vld [vmem:[%s169 + $0xa00] sm:$0xff]
        %v528 = vld [vmem:[%s169 + $0xa08] sm:$0xff]
        %v529 = vld [vmem:[%s169 + $0xa10] sm:$0xff]
        %v530 = vld [vmem:[%s169 + $0xa18] sm:$0xff]
        %v531 = vld [vmem:[%s169 + $0xa20] sm:$0xff]
        %v532 = vld [vmem:[%s169 + $0xa28] sm:$0xff]
        %v533 = vld [vmem:[%s169 + $0xa30] sm:$0xff]
        %v534 = vld [vmem:[%s169 + $0xa38] sm:$0xff]
        %v535 = vld [vmem:[%s169 + $0xa40] sm:$0xff]
        %v536 = vld [vmem:[%s169 + $0xa48] sm:$0xff]
        %v537 = vld [vmem:[%s169 + $0xa50] sm:$0xff]
        %v538 = vld [vmem:[%s169 + $0xa58] sm:$0xff]
        %v539 = vld [vmem:[%s169 + $0xa60] sm:$0xff]
        %v540 = vld [vmem:[%s169 + $0xa68] sm:$0xff]
        %v541 = vld [vmem:[%s169 + $0xa70] sm:$0xff]
        %v542 = vld [vmem:[%s169 + $0xa78] sm:$0xff]
        %v543 = vld [vmem:[%s169 + $0xa80] sm:$0xff]
        %v544 = vld [vmem:[%s169 + $0xa88] sm:$0xff]
        %v545 = vld [vmem:[%s169 + $0xa90] sm:$0xff]
        %v546 = vld [vmem:[%s169 + $0xa98] sm:$0xff]
        %v547 = vld [vmem:[%s169 + $0xaa0] sm:$0xff]
        %v548 = vld [vmem:[%s169 + $0xaa8] sm:$0xff]
        %v549 = vld [vmem:[%s169 + $0xab0] sm:$0xff]
        %v550 = vld [vmem:[%s169 + $0xab8] sm:$0xff]
        %v551 = vld [vmem:[%s169 + $0xac0] sm:$0xff]
        %v552 = vld [vmem:[%s169 + $0xac8] sm:$0xff]
        %v553 = vld [vmem:[%s169 + $0xad0] sm:$0xff]
        %v554 = vld [vmem:[%s169 + $0xad8] sm:$0xff]
        %v555 = vld [vmem:[%s169 + $0xae0] sm:$0xff]
        %v556 = vld [vmem:[%s169 + $0xae8] sm:$0xff]
        %v557 = vld [vmem:[%s169 + $0xaf0] sm:$0xff]
        %v558 = vld [vmem:[%s169 + $0xaf8] sm:$0xff]
        %v559 = vld [vmem:[%s169 + $0xb00] sm:$0xff]
        %v560 = vld [vmem:[%s169 + $0xb08] sm:$0xff]
        %v561 = vld [vmem:[%s169 + $0xb10] sm:$0xff]
        %v562 = vld [vmem:[%s169 + $0xb18] sm:$0xff]
        %v563 = vld [vmem:[%s169 + $0xb20] sm:$0xff]
        %v564 = vld [vmem:[%s169 + $0xb28] sm:$0xff]
        %v565 = vld [vmem:[%s169 + $0xb30] sm:$0xff]
        %v566 = vld [vmem:[%s169 + $0xb38] sm:$0xff]
        %v567 = vld [vmem:[%s169 + $0xb40] sm:$0xff]
        %v568 = vld [vmem:[%s169 + $0xb48] sm:$0xff]
        %v569 = vld [vmem:[%s169 + $0xb50] sm:$0xff]
        %v570 = vld [vmem:[%s169 + $0xb58] sm:$0xff]
        %v571 = vld [vmem:[%s169 + $0xb60] sm:$0xff]
        %v572 = vld [vmem:[%s169 + $0xb68] sm:$0xff]
        %v573 = vld [vmem:[%s169 + $0xb70] sm:$0xff]
        %v574 = vld [vmem:[%s169 + $0xb78] sm:$0xff]
        %v575 = vld [vmem:[%s169 + $0xb80] sm:$0xff]
        %v576 = vld [vmem:[%s169 + $0xb88] sm:$0xff]
        %v577 = vld [vmem:[%s169 + $0xb90] sm:$0xff]
        %v578 = vld [vmem:[%s169 + $0xb98] sm:$0xff]
        %v579 = vld [vmem:[%s169 + $0xba0] sm:$0xff]
        %v580 = vld [vmem:[%s169 + $0xba8] sm:$0xff]
        %v581 = vld [vmem:[%s169 + $0xbb0] sm:$0xff]
        %v582 = vld [vmem:[%s169 + $0xbb8] sm:$0xff]
        %v583 = vld [vmem:[%s169 + $0xbc0] sm:$0xff]
        %v584 = vld [vmem:[%s169 + $0xbc8] sm:$0xff]
        %v585 = vld [vmem:[%s169 + $0xbd0] sm:$0xff]
        %v586 = vld [vmem:[%s169 + $0xbd8] sm:$0xff]
        %v587 = vld [vmem:[%s169 + $0xbe0] sm:$0xff]
        %v588 = vld [vmem:[%s169 + $0xbe8] sm:$0xff]
        %v589 = vld [vmem:[%s169 + $0xbf0] sm:$0xff]
        %v590 = vld [vmem:[%s169 + $0xbf8] sm:$0xff]
        %v591 = vld [vmem:[%s169 + $0xc00] sm:$0xff]
        %v592 = vld [vmem:[%s169 + $0xc08] sm:$0xff]
        %v593 = vld [vmem:[%s169 + $0xc10] sm:$0xff]
        %v594 = vld [vmem:[%s169 + $0xc18] sm:$0xff]
        %v595 = vld [vmem:[%s169 + $0xc20] sm:$0xff]
        %v596 = vld [vmem:[%s169 + $0xc28] sm:$0xff]
        %v597 = vld [vmem:[%s169 + $0xc30] sm:$0xff]
        %v598 = vld [vmem:[%s169 + $0xc38] sm:$0xff]
        %v599 = vld [vmem:[%s169 + $0xc40] sm:$0xff]
        %v600 = vld [vmem:[%s169 + $0xc48] sm:$0xff]
        %v601 = vld [vmem:[%s169 + $0xc50] sm:$0xff]
        %v602 = vld [vmem:[%s169 + $0xc58] sm:$0xff]
        %v603 = vld [vmem:[%s169 + $0xc60] sm:$0xff]
        %v604 = vld [vmem:[%s169 + $0xc68] sm:$0xff]
        %v605 = vld [vmem:[%s169 + $0xc70] sm:$0xff]
        %v606 = vld [vmem:[%s169 + $0xc78] sm:$0xff]
        %v607 = vld [vmem:[%s169 + $0xc80] sm:$0xff]
        %v608 = vld [vmem:[%s169 + $0xc88] sm:$0xff]
        %v609 = vld [vmem:[%s169 + $0xc90] sm:$0xff]
        %v610 = vld [vmem:[%s169 + $0xc98] sm:$0xff]
        %v611 = vld [vmem:[%s169 + $0xca0] sm:$0xff]
        %v612 = vld [vmem:[%s169 + $0xca8] sm:$0xff]
        %v613 = vld [vmem:[%s169 + $0xcb0] sm:$0xff]
        %v614 = vld [vmem:[%s169 + $0xcb8] sm:$0xff]
        %v615 = vld [vmem:[%s169 + $0xcc0] sm:$0xff]
        %v616 = vld [vmem:[%s169 + $0xcc8] sm:$0xff]
        %v617 = vld [vmem:[%s169 + $0xcd0] sm:$0xff]
        %v618 = vld [vmem:[%s169 + $0xcd8] sm:$0xff]
        %v619 = vld [vmem:[%s169 + $0xce0] sm:$0xff]
        %v620 = vld [vmem:[%s169 + $0xce8] sm:$0xff]
        %v621 = vld [vmem:[%s169 + $0xcf0] sm:$0xff]
        %v622 = vld [vmem:[%s169 + $0xcf8] sm:$0xff]
        %v623 = vld [vmem:[%s169 + $0xd00] sm:$0xff]
        %v624 = vld [vmem:[%s169 + $0xd08] sm:$0xff]
        %v625 = vld [vmem:[%s169 + $0xd10] sm:$0xff]
        %v626 = vld [vmem:[%s169 + $0xd18] sm:$0xff]
        %v627 = vld [vmem:[%s169 + $0xd20] sm:$0xff]
        %v628 = vld [vmem:[%s169 + $0xd28] sm:$0xff]
        %v629 = vld [vmem:[%s169 + $0xd30] sm:$0xff]
        %v630 = vld [vmem:[%s169 + $0xd38] sm:$0xff]
        %v631 = vld [vmem:[%s169 + $0xd40] sm:$0xff]
        %v632 = vld [vmem:[%s169 + $0xd48] sm:$0xff]
        %v633 = vld [vmem:[%s169 + $0xd50] sm:$0xff]
        %v634 = vld [vmem:[%s169 + $0xd58] sm:$0xff]
        %v635 = vld [vmem:[%s169 + $0xd60] sm:$0xff]
        %v636 = vld [vmem:[%s169 + $0xd68] sm:$0xff]
        %v637 = vld [vmem:[%s169 + $0xd70] sm:$0xff]
        %v638 = vld [vmem:[%s169 + $0xd78] sm:$0xff]
        %v639 = vld [vmem:[%s169 + $0xd80] sm:$0xff]
        %v640 = vld [vmem:[%s169 + $0xd88] sm:$0xff]
        %v641 = vld [vmem:[%s169 + $0xd90] sm:$0xff]
        %v642 = vld [vmem:[%s169 + $0xd98] sm:$0xff]
        %v643 = vld [vmem:[%s169 + $0xda0] sm:$0xff]
        %v644 = vld [vmem:[%s169 + $0xda8] sm:$0xff]
        %v645 = vld [vmem:[%s169 + $0xdb0] sm:$0xff]
        %v646 = vld [vmem:[%s169 + $0xdb8] sm:$0xff]
        %v647 = vld [vmem:[%s169 + $0xdc0] sm:$0xff]
        %v648 = vld [vmem:[%s169 + $0xdc8] sm:$0xff]
        %v649 = vld [vmem:[%s169 + $0xdd0] sm:$0xff]
        %v650 = vld [vmem:[%s169 + $0xdd8] sm:$0xff]
        %v651 = vld [vmem:[%s169 + $0xde0] sm:$0xff]
        %v652 = vld [vmem:[%s169 + $0xde8] sm:$0xff]
        %v653 = vld [vmem:[%s169 + $0xdf0] sm:$0xff]
        %v654 = vld [vmem:[%s169 + $0xdf8] sm:$0xff]
        %v655 = vld [vmem:[%s169 + $0xe00] sm:$0xff]
        %v656 = vld [vmem:[%s169 + $0xe08] sm:$0xff]
        %v657 = vld [vmem:[%s169 + $0xe10] sm:$0xff]
        %v658 = vld [vmem:[%s169 + $0xe18] sm:$0xff]
        %v659 = vld [vmem:[%s169 + $0xe20] sm:$0xff]
        %v660 = vld [vmem:[%s169 + $0xe28] sm:$0xff]
        %v661 = vld [vmem:[%s169 + $0xe30] sm:$0xff]
        %v662 = vld [vmem:[%s169 + $0xe38] sm:$0xff]
        %v663 = vld [vmem:[%s169 + $0xe40] sm:$0xff]
        %v664 = vld [vmem:[%s169 + $0xe48] sm:$0xff]
        %v665 = vld [vmem:[%s169 + $0xe50] sm:$0xff]
        %v666 = vld [vmem:[%s169 + $0xe58] sm:$0xff]
        %v667 = vld [vmem:[%s169 + $0xe60] sm:$0xff]
        %v668 = vld [vmem:[%s169 + $0xe68] sm:$0xff]
        %v669 = vld [vmem:[%s169 + $0xe70] sm:$0xff]
        %v670 = vld [vmem:[%s169 + $0xe78] sm:$0xff]
        %v671 = vld [vmem:[%s169 + $0xe80] sm:$0xff]
        %v672 = vld [vmem:[%s169 + $0xe88] sm:$0xff]
        %v673 = vld [vmem:[%s169 + $0xe90] sm:$0xff]
        %v674 = vld [vmem:[%s169 + $0xe98] sm:$0xff]
        %v675 = vld [vmem:[%s169 + $0xea0] sm:$0xff]
        %v676 = vld [vmem:[%s169 + $0xea8] sm:$0xff]
        %v677 = vld [vmem:[%s169 + $0xeb0] sm:$0xff]
        %v678 = vld [vmem:[%s169 + $0xeb8] sm:$0xff]
        %v679 = vld [vmem:[%s169 + $0xec0] sm:$0xff]
        %v680 = vld [vmem:[%s169 + $0xec8] sm:$0xff]
        %v681 = vld [vmem:[%s169 + $0xed0] sm:$0xff]
        %v682 = vld [vmem:[%s169 + $0xed8] sm:$0xff]
        %v683 = vld [vmem:[%s169 + $0xee0] sm:$0xff]
        %v684 = vld [vmem:[%s169 + $0xee8] sm:$0xff]
        %v685 = vld [vmem:[%s169 + $0xef0] sm:$0xff]
        %v686 = vld [vmem:[%s169 + $0xef8] sm:$0xff]
        %v687 = vld [vmem:[%s169 + $0xf00] sm:$0xff]
        %v688 = vld [vmem:[%s169 + $0xf08] sm:$0xff]
        %v689 = vld [vmem:[%s169 + $0xf10] sm:$0xff]
        %v690 = vld [vmem:[%s169 + $0xf18] sm:$0xff]
        %v691 = vld [vmem:[%s169 + $0xf20] sm:$0xff]
        %v692 = vld [vmem:[%s169 + $0xf28] sm:$0xff]
        %v693 = vld [vmem:[%s169 + $0xf30] sm:$0xff]
        %v694 = vld [vmem:[%s169 + $0xf38] sm:$0xff]
        %v695 = vld [vmem:[%s169 + $0xf40] sm:$0xff]
        %v696 = vld [vmem:[%s169 + $0xf48] sm:$0xff]
        %v697 = vld [vmem:[%s169 + $0xf50] sm:$0xff]
        %v698 = vld [vmem:[%s169 + $0xf58] sm:$0xff]
        %v699 = vld [vmem:[%s169 + $0xf60] sm:$0xff]
        %v700 = vld [vmem:[%s169 + $0xf68] sm:$0xff]
        %v701 = vld [vmem:[%s169 + $0xf70] sm:$0xff]
        %v702 = vld [vmem:[%s169 + $0xf78] sm:$0xff]
        %v703 = vld [vmem:[%s169 + $0xf80] sm:$0xff]
        %v704 = vld [vmem:[%s169 + $0xf88] sm:$0xff]
        %v705 = vld [vmem:[%s169 + $0xf90] sm:$0xff]
        %v706 = vld [vmem:[%s169 + $0xf98] sm:$0xff]
        %v707 = vld [vmem:[%s169 + $0xfa0] sm:$0xff]
        %v708 = vld [vmem:[%s169 + $0xfa8] sm:$0xff]
        %v709 = vld [vmem:[%s169 + $0xfb0] sm:$0xff]
        %v710 = vld [vmem:[%s169 + $0xfb8] sm:$0xff]
        %v711 = vld [vmem:[%s169 + $0xfc0] sm:$0xff]
        %v712 = vld [vmem:[%s169 + $0xfc8] sm:$0xff]
        %v713 = vld [vmem:[%s169 + $0xfd0] sm:$0xff]
        %v714 = vld [vmem:[%s169 + $0xfd8] sm:$0xff]
        %v715 = vld [vmem:[%s169 + $0xfe0] sm:$0xff]
        %v716 = vld [vmem:[%s169 + $0xfe8] sm:$0xff]
        %v717 = vld [vmem:[%s169 + $0xff0] sm:$0xff]
        %v718 = vld [vmem:[%s169 + $0xff8] sm:$0xff]
        %v719 = vmul.f32 %v207, 0.5
        %v720 = vmul.f32 %v208, 0.5
        %v721 = vmul.f32 %v209, 0.5
        %v722 = vmul.f32 %v210, 0.5
        %v723 = vmul.f32 %v211, 0.5
        %v724 = vmul.f32 %v212, 0.5
        %v725 = vmul.f32 %v213, 0.5
        %v726 = vmul.f32 %v214, 0.5
        %v727 = vmul.f32 %v215, 0.5
        %v728 = vmul.f32 %v216, 0.5
        %v729 = vmul.f32 %v217, 0.5
        %v730 = vmul.f32 %v218, 0.5
        %v731 = vmul.f32 %v219, 0.5
        %v732 = vmul.f32 %v220, 0.5
        %v733 = vmul.f32 %v221, 0.5
        %v734 = vmul.f32 %v222, 0.5
        %v735 = vmul.f32 %v223, 0.5
        %v736 = vmul.f32 %v224, 0.5
        %v737 = vmul.f32 %v225, 0.5
        %v738 = vmul.f32 %v226, 0.5
        %v739 = vmul.f32 %v227, 0.5
        %v740 = vmul.f32 %v228, 0.5
        %v741 = vmul.f32 %v229, 0.5
        %v742 = vmul.f32 %v230, 0.5
        %v743 = vmul.f32 %v231, 0.5
        %v744 = vmul.f32 %v232, 0.5
        %v745 = vmul.f32 %v233, 0.5
        %v746 = vmul.f32 %v234, 0.5
        %v747 = vmul.f32 %v235, 0.5
        %v748 = vmul.f32 %v236, 0.5
        %v749 = vmul.f32 %v237, 0.5
        %v750 = vmul.f32 %v238, 0.5
        %v751 = vmul.f32 %v239, 0.5
        %v752 = vmul.f32 %v240, 0.5
        %v753 = vmul.f32 %v241, 0.5
        %v754 = vmul.f32 %v242, 0.5
        %v755 = vmul.f32 %v243, 0.5
        %v756 = vmul.f32 %v244, 0.5
        %v757 = vmul.f32 %v245, 0.5
        %v758 = vmul.f32 %v246, 0.5
        %v759 = vmul.f32 %v247, 0.5
        %v760 = vmul.f32 %v248, 0.5
        %v761 = vmul.f32 %v249, 0.5
        %v762 = vmul.f32 %v250, 0.5
        %v763 = vmul.f32 %v251, 0.5
        %v764 = vmul.f32 %v252, 0.5
        %v765 = vmul.f32 %v253, 0.5
        %v766 = vmul.f32 %v254, 0.5
        %v767 = vmul.f32 %v255, 0.5
        %v768 = vmul.f32 %v256, 0.5
        %v769 = vmul.f32 %v257, 0.5
        %v770 = vmul.f32 %v258, 0.5
        %v771 = vmul.f32 %v259, 0.5
        %v772 = vmul.f32 %v260, 0.5
        %v773 = vmul.f32 %v261, 0.5
        %v774 = vmul.f32 %v262, 0.5
        %v775 = vmul.f32 %v263, 0.5
        %v776 = vmul.f32 %v264, 0.5
        %v777 = vmul.f32 %v265, 0.5
        %v778 = vmul.f32 %v266, 0.5
        %v779 = vmul.f32 %v267, 0.5
        %v780 = vmul.f32 %v268, 0.5
        %v781 = vmul.f32 %v269, 0.5
        %v782 = vmul.f32 %v270, 0.5
        %v783 = vmul.f32 %v271, 0.5
        %v784 = vmul.f32 %v272, 0.5
        %v785 = vmul.f32 %v273, 0.5
        %v786 = vmul.f32 %v274, 0.5
        %v787 = vmul.f32 %v275, 0.5
        %v788 = vmul.f32 %v276, 0.5
        %v789 = vmul.f32 %v277, 0.5
        %v790 = vmul.f32 %v278, 0.5
        %v791 = vmul.f32 %v279, 0.5
        %v792 = vmul.f32 %v280, 0.5
        %v793 = vmul.f32 %v281, 0.5
        %v794 = vmul.f32 %v282, 0.5
        %v795 = vmul.f32 %v283, 0.5
        %v796 = vmul.f32 %v284, 0.5
        %v797 = vmul.f32 %v285, 0.5
        %v798 = vmul.f32 %v286, 0.5
        %v799 = vmul.f32 %v287, 0.5
        %v800 = vmul.f32 %v288, 0.5
        %v801 = vmul.f32 %v289, 0.5
        %v802 = vmul.f32 %v290, 0.5
        %v803 = vmul.f32 %v291, 0.5
        %v804 = vmul.f32 %v292, 0.5
        %v805 = vmul.f32 %v293, 0.5
        %v806 = vmul.f32 %v294, 0.5
        %v807 = vmul.f32 %v295, 0.5
        %v808 = vmul.f32 %v296, 0.5
        %v809 = vmul.f32 %v297, 0.5
        %v810 = vmul.f32 %v298, 0.5
        %v811 = vmul.f32 %v299, 0.5
        %v812 = vmul.f32 %v300, 0.5
        %v813 = vmul.f32 %v301, 0.5
        %v814 = vmul.f32 %v302, 0.5
        %v815 = vmul.f32 %v303, 0.5
        %v816 = vmul.f32 %v304, 0.5
        %v817 = vmul.f32 %v305, 0.5
        %v818 = vmul.f32 %v306, 0.5
        %v819 = vmul.f32 %v307, 0.5
        %v820 = vmul.f32 %v308, 0.5
        %v821 = vmul.f32 %v309, 0.5
        %v822 = vmul.f32 %v310, 0.5
        %v823 = vmul.f32 %v311, 0.5
        %v824 = vmul.f32 %v312, 0.5
        %v825 = vmul.f32 %v313, 0.5
        %v826 = vmul.f32 %v314, 0.5
        %v827 = vmul.f32 %v315, 0.5
        %v828 = vmul.f32 %v316, 0.5
        %v829 = vmul.f32 %v317, 0.5
        %v830 = vmul.f32 %v318, 0.5
        %v831 = vmul.f32 %v319, 0.5
        %v832 = vmul.f32 %v320, 0.5
        %v833 = vmul.f32 %v321, 0.5
        %v834 = vmul.f32 %v322, 0.5
        %v835 = vmul.f32 %v323, 0.5
        %v836 = vmul.f32 %v324, 0.5
        %v837 = vmul.f32 %v325, 0.5
        %v838 = vmul.f32 %v326, 0.5
        %v839 = vmul.f32 %v327, 0.5
        %v840 = vmul.f32 %v328, 0.5
        %v841 = vmul.f32 %v329, 0.5
        %v842 = vmul.f32 %v330, 0.5
        %v843 = vmul.f32 %v331, 0.5
        %v844 = vmul.f32 %v332, 0.5
        %v845 = vmul.f32 %v333, 0.5
        %v846 = vmul.f32 %v334, 0.5
        %v847 = vmul.f32 %v335, 0.5
        %v848 = vmul.f32 %v336, 0.5
        %v849 = vmul.f32 %v337, 0.5
        %v850 = vmul.f32 %v338, 0.5
        %v851 = vmul.f32 %v339, 0.5
        %v852 = vmul.f32 %v340, 0.5
        %v853 = vmul.f32 %v341, 0.5
        %v854 = vmul.f32 %v342, 0.5
        %v855 = vmul.f32 %v343, 0.5
        %v856 = vmul.f32 %v344, 0.5
        %v857 = vmul.f32 %v345, 0.5
        %v858 = vmul.f32 %v346, 0.5
        %v859 = vmul.f32 %v347, 0.5
        %v860 = vmul.f32 %v348, 0.5
        %v861 = vmul.f32 %v349, 0.5
        %v862 = vmul.f32 %v350, 0.5
        %v863 = vmul.f32 %v351, 0.5
        %v864 = vmul.f32 %v352, 0.5
        %v865 = vmul.f32 %v353, 0.5
        %v866 = vmul.f32 %v354, 0.5
        %v867 = vmul.f32 %v355, 0.5
        %v868 = vmul.f32 %v356, 0.5
        %v869 = vmul.f32 %v357, 0.5
        %v870 = vmul.f32 %v358, 0.5
        %v871 = vmul.f32 %v359, 0.5
        %v872 = vmul.f32 %v360, 0.5
        %v873 = vmul.f32 %v361, 0.5
        %v874 = vmul.f32 %v362, 0.5
        %v875 = vmul.f32 %v363, 0.5
        %v876 = vmul.f32 %v364, 0.5
        %v877 = vmul.f32 %v365, 0.5
        %v878 = vmul.f32 %v366, 0.5
        %v879 = vmul.f32 %v367, 0.5
        %v880 = vmul.f32 %v368, 0.5
        %v881 = vmul.f32 %v369, 0.5
        %v882 = vmul.f32 %v370, 0.5
        %v883 = vmul.f32 %v371, 0.5
        %v884 = vmul.f32 %v372, 0.5
        %v885 = vmul.f32 %v373, 0.5
        %v886 = vmul.f32 %v374, 0.5
        %v887 = vmul.f32 %v375, 0.5
        %v888 = vmul.f32 %v376, 0.5
        %v889 = vmul.f32 %v377, 0.5
        %v890 = vmul.f32 %v378, 0.5
        %v891 = vmul.f32 %v379, 0.5
        %v892 = vmul.f32 %v380, 0.5
        %v893 = vmul.f32 %v381, 0.5
        %v894 = vmul.f32 %v382, 0.5
        %v895 = vmul.f32 %v383, 0.5
        %v896 = vmul.f32 %v384, 0.5
        %v897 = vmul.f32 %v385, 0.5
        %v898 = vmul.f32 %v386, 0.5
        %v899 = vmul.f32 %v387, 0.5
        %v900 = vmul.f32 %v388, 0.5
        %v901 = vmul.f32 %v389, 0.5
        %v902 = vmul.f32 %v390, 0.5
        %v903 = vmul.f32 %v391, 0.5
        %v904 = vmul.f32 %v392, 0.5
        %v905 = vmul.f32 %v393, 0.5
        %v906 = vmul.f32 %v394, 0.5
        %v907 = vmul.f32 %v395, 0.5
        %v908 = vmul.f32 %v396, 0.5
        %v909 = vmul.f32 %v397, 0.5
        %v910 = vmul.f32 %v398, 0.5
        %v911 = vmul.f32 %v399, 0.5
        %v912 = vmul.f32 %v400, 0.5
        %v913 = vmul.f32 %v401, 0.5
        %v914 = vmul.f32 %v402, 0.5
        %v915 = vmul.f32 %v403, 0.5
        %v916 = vmul.f32 %v404, 0.5
        %v917 = vmul.f32 %v405, 0.5
        %v918 = vmul.f32 %v406, 0.5
        %v919 = vmul.f32 %v407, 0.5
        %v920 = vmul.f32 %v408, 0.5
        %v921 = vmul.f32 %v409, 0.5
        %v922 = vmul.f32 %v410, 0.5
        %v923 = vmul.f32 %v411, 0.5
        %v924 = vmul.f32 %v412, 0.5
        %v925 = vmul.f32 %v413, 0.5
        %v926 = vmul.f32 %v414, 0.5
        %v927 = vmul.f32 %v415, 0.5
        %v928 = vmul.f32 %v416, 0.5
        %v929 = vmul.f32 %v417, 0.5
        %v930 = vmul.f32 %v418, 0.5
        %v931 = vmul.f32 %v419, 0.5
        %v932 = vmul.f32 %v420, 0.5
        %v933 = vmul.f32 %v421, 0.5
        %v934 = vmul.f32 %v422, 0.5
        %v935 = vmul.f32 %v423, 0.5
        %v936 = vmul.f32 %v424, 0.5
        %v937 = vmul.f32 %v425, 0.5
        %v938 = vmul.f32 %v426, 0.5
        %v939 = vmul.f32 %v427, 0.5
        %v940 = vmul.f32 %v428, 0.5
        %v941 = vmul.f32 %v429, 0.5
        %v942 = vmul.f32 %v430, 0.5
        %v943 = vmul.f32 %v431, 0.5
        %v944 = vmul.f32 %v432, 0.5
        %v945 = vmul.f32 %v433, 0.5
        %v946 = vmul.f32 %v434, 0.5
        %v947 = vmul.f32 %v435, 0.5
        %v948 = vmul.f32 %v436, 0.5
        %v949 = vmul.f32 %v437, 0.5
        %v950 = vmul.f32 %v438, 0.5
        %v951 = vmul.f32 %v439, 0.5
        %v952 = vmul.f32 %v440, 0.5
        %v953 = vmul.f32 %v441, 0.5
        %v954 = vmul.f32 %v442, 0.5
        %v955 = vmul.f32 %v443, 0.5
        %v956 = vmul.f32 %v444, 0.5
        %v957 = vmul.f32 %v445, 0.5
        %v958 = vmul.f32 %v446, 0.5
        %v959 = vmul.f32 %v447, 0.5
        %v960 = vmul.f32 %v448, 0.5
        %v961 = vmul.f32 %v449, 0.5
        %v962 = vmul.f32 %v450, 0.5
        %v963 = vmul.f32 %v451, 0.5
        %v964 = vmul.f32 %v452, 0.5
        %v965 = vmul.f32 %v453, 0.5
        %v966 = vmul.f32 %v454, 0.5
        %v967 = vmul.f32 %v455, 0.5
        %v968 = vmul.f32 %v456, 0.5
        %v969 = vmul.f32 %v457, 0.5
        %v970 = vmul.f32 %v458, 0.5
        %v971 = vmul.f32 %v459, 0.5
        %v972 = vmul.f32 %v460, 0.5
        %v973 = vmul.f32 %v461, 0.5
        %v974 = vmul.f32 %v462, 0.5
        %v975 = vmul.f32 %v463, 0.5
        %v976 = vmul.f32 %v464, 0.5
        %v977 = vmul.f32 %v465, 0.5
        %v978 = vmul.f32 %v466, 0.5
        %v979 = vmul.f32 %v467, 0.5
        %v980 = vmul.f32 %v468, 0.5
        %v981 = vmul.f32 %v469, 0.5
        %v982 = vmul.f32 %v470, 0.5
        %v983 = vmul.f32 %v471, 0.5
        %v984 = vmul.f32 %v472, 0.5
        %v985 = vmul.f32 %v473, 0.5
        %v986 = vmul.f32 %v474, 0.5
        %v987 = vmul.f32 %v475, 0.5
        %v988 = vmul.f32 %v476, 0.5
        %v989 = vmul.f32 %v477, 0.5
        %v990 = vmul.f32 %v478, 0.5
        %v991 = vmul.f32 %v479, 0.5
        %v992 = vmul.f32 %v480, 0.5
        %v993 = vmul.f32 %v481, 0.5
        %v994 = vmul.f32 %v482, 0.5
        %v995 = vmul.f32 %v483, 0.5
        %v996 = vmul.f32 %v484, 0.5
        %v997 = vmul.f32 %v485, 0.5
        %v998 = vmul.f32 %v486, 0.5
        %v999 = vmul.f32 %v487, 0.5
        %v1000 = vmul.f32 %v488, 0.5
        %v1001 = vmul.f32 %v489, 0.5
        %v1002 = vmul.f32 %v490, 0.5
        %v1003 = vmul.f32 %v491, 0.5
        %v1004 = vmul.f32 %v492, 0.5
        %v1005 = vmul.f32 %v493, 0.5
        %v1006 = vmul.f32 %v494, 0.5
        %v1007 = vmul.f32 %v495, 0.5
        %v1008 = vmul.f32 %v496, 0.5
        %v1009 = vmul.f32 %v497, 0.5
        %v1010 = vmul.f32 %v498, 0.5
        %v1011 = vmul.f32 %v499, 0.5
        %v1012 = vmul.f32 %v500, 0.5
        %v1013 = vmul.f32 %v501, 0.5
        %v1014 = vmul.f32 %v502, 0.5
        %v1015 = vmul.f32 %v503, 0.5
        %v1016 = vmul.f32 %v504, 0.5
        %v1017 = vmul.f32 %v505, 0.5
        %v1018 = vmul.f32 %v506, 0.5
        %v1019 = vmul.f32 %v507, 0.5
        %v1020 = vmul.f32 %v508, 0.5
        %v1021 = vmul.f32 %v509, 0.5
        %v1022 = vmul.f32 %v510, 0.5
        %v1023 = vmul.f32 %v511, 0.5
        %v1024 = vmul.f32 %v512, 0.5
        %v1025 = vmul.f32 %v513, 0.5
        %v1026 = vmul.f32 %v514, 0.5
        %v1027 = vmul.f32 %v515, 0.5
        %v1028 = vmul.f32 %v516, 0.5
        %v1029 = vmul.f32 %v517, 0.5
        %v1030 = vmul.f32 %v518, 0.5
        %v1031 = vmul.f32 %v519, 0.5
        %v1032 = vmul.f32 %v520, 0.5
        %v1033 = vmul.f32 %v521, 0.5
        %v1034 = vmul.f32 %v522, 0.5
        %v1035 = vmul.f32 %v523, 0.5
        %v1036 = vmul.f32 %v524, 0.5
        %v1037 = vmul.f32 %v525, 0.5
        %v1038 = vmul.f32 %v526, 0.5
        %v1039 = vmul.f32 %v527, 0.5
        %v1040 = vmul.f32 %v528, 0.5
        %v1041 = vmul.f32 %v529, 0.5
        %v1042 = vmul.f32 %v530, 0.5
        %v1043 = vmul.f32 %v531, 0.5
        %v1044 = vmul.f32 %v532, 0.5
        %v1045 = vmul.f32 %v533, 0.5
        %v1046 = vmul.f32 %v534, 0.5
        %v1047 = vmul.f32 %v535, 0.5
        %v1048 = vmul.f32 %v536, 0.5
        %v1049 = vmul.f32 %v537, 0.5
        %v1050 = vmul.f32 %v538, 0.5
        %v1051 = vmul.f32 %v539, 0.5
        %v1052 = vmul.f32 %v540, 0.5
        %v1053 = vmul.f32 %v541, 0.5
        %v1054 = vmul.f32 %v542, 0.5
        %v1055 = vmul.f32 %v543, 0.5
        %v1056 = vmul.f32 %v544, 0.5
        %v1057 = vmul.f32 %v545, 0.5
        %v1058 = vmul.f32 %v546, 0.5
        %v1059 = vmul.f32 %v547, 0.5
        %v1060 = vmul.f32 %v548, 0.5
        %v1061 = vmul.f32 %v549, 0.5
        %v1062 = vmul.f32 %v550, 0.5
        %v1063 = vmul.f32 %v551, 0.5
        %v1064 = vmul.f32 %v552, 0.5
        %v1065 = vmul.f32 %v553, 0.5
        %v1066 = vmul.f32 %v554, 0.5
        %v1067 = vmul.f32 %v555, 0.5
        %v1068 = vmul.f32 %v556, 0.5
        %v1069 = vmul.f32 %v557, 0.5
        %v1070 = vmul.f32 %v558, 0.5
        %v1071 = vmul.f32 %v559, 0.5
        %v1072 = vmul.f32 %v560, 0.5
        %v1073 = vmul.f32 %v561, 0.5
        %v1074 = vmul.f32 %v562, 0.5
        %v1075 = vmul.f32 %v563, 0.5
        %v1076 = vmul.f32 %v564, 0.5
        %v1077 = vmul.f32 %v565, 0.5
        %v1078 = vmul.f32 %v566, 0.5
        %v1079 = vmul.f32 %v567, 0.5
        %v1080 = vmul.f32 %v568, 0.5
        %v1081 = vmul.f32 %v569, 0.5
        %v1082 = vmul.f32 %v570, 0.5
        %v1083 = vmul.f32 %v571, 0.5
        %v1084 = vmul.f32 %v572, 0.5
        %v1085 = vmul.f32 %v573, 0.5
        %v1086 = vmul.f32 %v574, 0.5
        %v1087 = vmul.f32 %v575, 0.5
        %v1088 = vmul.f32 %v576, 0.5
        %v1089 = vmul.f32 %v577, 0.5
        %v1090 = vmul.f32 %v578, 0.5
        %v1091 = vmul.f32 %v579, 0.5
        %v1092 = vmul.f32 %v580, 0.5
        %v1093 = vmul.f32 %v581, 0.5
        %v1094 = vmul.f32 %v582, 0.5
        %v1095 = vmul.f32 %v583, 0.5
        %v1096 = vmul.f32 %v584, 0.5
        %v1097 = vmul.f32 %v585, 0.5
        %v1098 = vmul.f32 %v586, 0.5
        %v1099 = vmul.f32 %v587, 0.5
        %v1100 = vmul.f32 %v588, 0.5
        %v1101 = vmul.f32 %v589, 0.5
        %v1102 = vmul.f32 %v590, 0.5
        %v1103 = vmul.f32 %v591, 0.5
        %v1104 = vmul.f32 %v592, 0.5
        %v1105 = vmul.f32 %v593, 0.5
        %v1106 = vmul.f32 %v594, 0.5
        %v1107 = vmul.f32 %v595, 0.5
        %v1108 = vmul.f32 %v596, 0.5
        %v1109 = vmul.f32 %v597, 0.5
        %v1110 = vmul.f32 %v598, 0.5
        %v1111 = vmul.f32 %v599, 0.5
        %v1112 = vmul.f32 %v600, 0.5
        %v1113 = vmul.f32 %v601, 0.5
        %v1114 = vmul.f32 %v602, 0.5
        %v1115 = vmul.f32 %v603, 0.5
        %v1116 = vmul.f32 %v604, 0.5
        %v1117 = vmul.f32 %v605, 0.5
        %v1118 = vmul.f32 %v606, 0.5
        %v1119 = vmul.f32 %v607, 0.5
        %v1120 = vmul.f32 %v608, 0.5
        %v1121 = vmul.f32 %v609, 0.5
        %v1122 = vmul.f32 %v610, 0.5
        %v1123 = vmul.f32 %v611, 0.5
        %v1124 = vmul.f32 %v612, 0.5
        %v1125 = vmul.f32 %v613, 0.5
        %v1126 = vmul.f32 %v614, 0.5
        %v1127 = vmul.f32 %v615, 0.5
        %v1128 = vmul.f32 %v616, 0.5
        %v1129 = vmul.f32 %v617, 0.5
        %v1130 = vmul.f32 %v618, 0.5
        %v1131 = vmul.f32 %v619, 0.5
        %v1132 = vmul.f32 %v620, 0.5
        %v1133 = vmul.f32 %v621, 0.5
        %v1134 = vmul.f32 %v622, 0.5
        %v1135 = vmul.f32 %v623, 0.5
        %v1136 = vmul.f32 %v624, 0.5
        %v1137 = vmul.f32 %v625, 0.5
        %v1138 = vmul.f32 %v626, 0.5
        %v1139 = vmul.f32 %v627, 0.5
        %v1140 = vmul.f32 %v628, 0.5
        %v1141 = vmul.f32 %v629, 0.5
        %v1142 = vmul.f32 %v630, 0.5
        %v1143 = vmul.f32 %v631, 0.5
        %v1144 = vmul.f32 %v632, 0.5
        %v1145 = vmul.f32 %v633, 0.5
        %v1146 = vmul.f32 %v634, 0.5
        %v1147 = vmul.f32 %v635, 0.5
        %v1148 = vmul.f32 %v636, 0.5
        %v1149 = vmul.f32 %v637, 0.5
        %v1150 = vmul.f32 %v638, 0.5
        %v1151 = vmul.f32 %v639, 0.5
        %v1152 = vmul.f32 %v640, 0.5
        %v1153 = vmul.f32 %v641, 0.5
        %v1154 = vmul.f32 %v642, 0.5
        %v1155 = vmul.f32 %v643, 0.5
        %v1156 = vmul.f32 %v644, 0.5
        %v1157 = vmul.f32 %v645, 0.5
        %v1158 = vmul.f32 %v646, 0.5
        %v1159 = vmul.f32 %v647, 0.5
        %v1160 = vmul.f32 %v648, 0.5
        %v1161 = vmul.f32 %v649, 0.5
        %v1162 = vmul.f32 %v650, 0.5
        %v1163 = vmul.f32 %v651, 0.5
        %v1164 = vmul.f32 %v652, 0.5
        %v1165 = vmul.f32 %v653, 0.5
        %v1166 = vmul.f32 %v654, 0.5
        %v1167 = vmul.f32 %v655, 0.5
        %v1168 = vmul.f32 %v656, 0.5
        %v1169 = vmul.f32 %v657, 0.5
        %v1170 = vmul.f32 %v658, 0.5
        %v1171 = vmul.f32 %v659, 0.5
        %v1172 = vmul.f32 %v660, 0.5
        %v1173 = vmul.f32 %v661, 0.5
        %v1174 = vmul.f32 %v662, 0.5
        %v1175 = vmul.f32 %v663, 0.5
        %v1176 = vmul.f32 %v664, 0.5
        %v1177 = vmul.f32 %v665, 0.5
        %v1178 = vmul.f32 %v666, 0.5
        %v1179 = vmul.f32 %v667, 0.5
        %v1180 = vmul.f32 %v668, 0.5
        %v1181 = vmul.f32 %v669, 0.5
        %v1182 = vmul.f32 %v670, 0.5
        %v1183 = vmul.f32 %v671, 0.5
        %v1184 = vmul.f32 %v672, 0.5
        %v1185 = vmul.f32 %v673, 0.5
        %v1186 = vmul.f32 %v674, 0.5
        %v1187 = vmul.f32 %v675, 0.5
        %v1188 = vmul.f32 %v676, 0.5
        %v1189 = vmul.f32 %v677, 0.5
        %v1190 = vmul.f32 %v678, 0.5
        %v1191 = vmul.f32 %v679, 0.5
        %v1192 = vmul.f32 %v680, 0.5
        %v1193 = vmul.f32 %v681, 0.5
        %v1194 = vmul.f32 %v682, 0.5
        %v1195 = vmul.f32 %v683, 0.5
        %v1196 = vmul.f32 %v684, 0.5
        %v1197 = vmul.f32 %v685, 0.5
        %v1198 = vmul.f32 %v686, 0.5
        %v1199 = vmul.f32 %v687, 0.5
        %v1200 = vmul.f32 %v688, 0.5
        %v1201 = vmul.f32 %v689, 0.5
        %v1202 = vmul.f32 %v690, 0.5
        %v1203 = vmul.f32 %v691, 0.5
        %v1204 = vmul.f32 %v692, 0.5
        %v1205 = vmul.f32 %v693, 0.5
        %v1206 = vmul.f32 %v694, 0.5
        %v1207 = vmul.f32 %v695, 0.5
        %v1208 = vmul.f32 %v696, 0.5
        %v1209 = vmul.f32 %v697, 0.5
        %v1210 = vmul.f32 %v698, 0.5
        %v1211 = vmul.f32 %v699, 0.5
        %v1212 = vmul.f32 %v700, 0.5
        %v1213 = vmul.f32 %v701, 0.5
        %v1214 = vmul.f32 %v702, 0.5
        %v1215 = vmul.f32 %v703, 0.5
        %v1216 = vmul.f32 %v704, 0.5
        %v1217 = vmul.f32 %v705, 0.5
        %v1218 = vmul.f32 %v706, 0.5
        %v1219 = vmul.f32 %v707, 0.5
        %v1220 = vmul.f32 %v708, 0.5
        %v1221 = vmul.f32 %v709, 0.5
        %v1222 = vmul.f32 %v710, 0.5
        %v1223 = vmul.f32 %v711, 0.5
        %v1224 = vmul.f32 %v712, 0.5
        %v1225 = vmul.f32 %v713, 0.5
        %v1226 = vmul.f32 %v714, 0.5
        %v1227 = vmul.f32 %v715, 0.5
        %v1228 = vmul.f32 %v716, 0.5
        %v1229 = vmul.f32 %v717, 0.5
        %v1230 = vmul.f32 %v718, 0.5
        %v1231 = vld [vmem:[%s178] sm:$0xff]
        %v1232 = vld [vmem:[%s178 + $0x8] sm:$0xff]
        %v1233 = vld [vmem:[%s178 + $0x10] sm:$0xff]
        %v1234 = vld [vmem:[%s178 + $0x18] sm:$0xff]
        %v1235 = vld [vmem:[%s178 + $0x20] sm:$0xff]
        %v1236 = vld [vmem:[%s178 + $0x28] sm:$0xff]
        %v1237 = vld [vmem:[%s178 + $0x30] sm:$0xff]
        %v1238 = vld [vmem:[%s178 + $0x38] sm:$0xff]
        %v1239 = vld [vmem:[%s178 + $0x40] sm:$0xff]
        %v1240 = vld [vmem:[%s178 + $0x48] sm:$0xff]
        %v1241 = vld [vmem:[%s178 + $0x50] sm:$0xff]
        %v1242 = vld [vmem:[%s178 + $0x58] sm:$0xff]
        %v1243 = vld [vmem:[%s178 + $0x60] sm:$0xff]
        %v1244 = vld [vmem:[%s178 + $0x68] sm:$0xff]
        %v1245 = vld [vmem:[%s178 + $0x70] sm:$0xff]
        %v1246 = vld [vmem:[%s178 + $0x78] sm:$0xff]
        %v1247 = vld [vmem:[%s178 + $0x80] sm:$0xff]
        %v1248 = vld [vmem:[%s178 + $0x88] sm:$0xff]
        %v1249 = vld [vmem:[%s178 + $0x90] sm:$0xff]
        %v1250 = vld [vmem:[%s178 + $0x98] sm:$0xff]
        %v1251 = vld [vmem:[%s178 + $0xa0] sm:$0xff]
        %v1252 = vld [vmem:[%s178 + $0xa8] sm:$0xff]
        %v1253 = vld [vmem:[%s178 + $0xb0] sm:$0xff]
        %v1254 = vld [vmem:[%s178 + $0xb8] sm:$0xff]
        %v1255 = vld [vmem:[%s178 + $0xc0] sm:$0xff]
        %v1256 = vld [vmem:[%s178 + $0xc8] sm:$0xff]
        %v1257 = vld [vmem:[%s178 + $0xd0] sm:$0xff]
        %v1258 = vld [vmem:[%s178 + $0xd8] sm:$0xff]
        %v1259 = vld [vmem:[%s178 + $0xe0] sm:$0xff]
        %v1260 = vld [vmem:[%s178 + $0xe8] sm:$0xff]
        %v1261 = vld [vmem:[%s178 + $0xf0] sm:$0xff]
        %v1262 = vld [vmem:[%s178 + $0xf8] sm:$0xff]
        %v1263 = vld [vmem:[%s178 + $0x100] sm:$0xff]
        %v1264 = vld [vmem:[%s178 + $0x108] sm:$0xff]
        %v1265 = vld [vmem:[%s178 + $0x110] sm:$0xff]
        %v1266 = vld [vmem:[%s178 + $0x118] sm:$0xff]
        %v1267 = vld [vmem:[%s178 + $0x120] sm:$0xff]
        %v1268 = vld [vmem:[%s178 + $0x128] sm:$0xff]
        %v1269 = vld [vmem:[%s178 + $0x130] sm:$0xff]
        %v1270 = vld [vmem:[%s178 + $0x138] sm:$0xff]
        %v1271 = vld [vmem:[%s178 + $0x140] sm:$0xff]
        %v1272 = vld [vmem:[%s178 + $0x148] sm:$0xff]
        %v1273 = vld [vmem:[%s178 + $0x150] sm:$0xff]
        %v1274 = vld [vmem:[%s178 + $0x158] sm:$0xff]
        %v1275 = vld [vmem:[%s178 + $0x160] sm:$0xff]
        %v1276 = vld [vmem:[%s178 + $0x168] sm:$0xff]
        %v1277 = vld [vmem:[%s178 + $0x170] sm:$0xff]
        %v1278 = vld [vmem:[%s178 + $0x178] sm:$0xff]
        %v1279 = vld [vmem:[%s178 + $0x180] sm:$0xff]
        %v1280 = vld [vmem:[%s178 + $0x188] sm:$0xff]
        %v1281 = vld [vmem:[%s178 + $0x190] sm:$0xff]
        %v1282 = vld [vmem:[%s178 + $0x198] sm:$0xff]
        %v1283 = vld [vmem:[%s178 + $0x1a0] sm:$0xff]
        %v1284 = vld [vmem:[%s178 + $0x1a8] sm:$0xff]
        %v1285 = vld [vmem:[%s178 + $0x1b0] sm:$0xff]
        %v1286 = vld [vmem:[%s178 + $0x1b8] sm:$0xff]
        %v1287 = vld [vmem:[%s178 + $0x1c0] sm:$0xff]
        %v1288 = vld [vmem:[%s178 + $0x1c8] sm:$0xff]
        %v1289 = vld [vmem:[%s178 + $0x1d0] sm:$0xff]
        %v1290 = vld [vmem:[%s178 + $0x1d8] sm:$0xff]
        %v1291 = vld [vmem:[%s178 + $0x1e0] sm:$0xff]
        %v1292 = vld [vmem:[%s178 + $0x1e8] sm:$0xff]
        %v1293 = vld [vmem:[%s178 + $0x1f0] sm:$0xff]
        %v1294 = vld [vmem:[%s178 + $0x1f8] sm:$0xff]
        %v1295 = vld [vmem:[%s178 + $0x200] sm:$0xff]
        %v1296 = vld [vmem:[%s178 + $0x208] sm:$0xff]
        %v1297 = vld [vmem:[%s178 + $0x210] sm:$0xff]
        %v1298 = vld [vmem:[%s178 + $0x218] sm:$0xff]
        %v1299 = vld [vmem:[%s178 + $0x220] sm:$0xff]
        %v1300 = vld [vmem:[%s178 + $0x228] sm:$0xff]
        %v1301 = vld [vmem:[%s178 + $0x230] sm:$0xff]
        %v1302 = vld [vmem:[%s178 + $0x238] sm:$0xff]
        %v1303 = vld [vmem:[%s178 + $0x240] sm:$0xff]
        %v1304 = vld [vmem:[%s178 + $0x248] sm:$0xff]
        %v1305 = vld [vmem:[%s178 + $0x250] sm:$0xff]
        %v1306 = vld [vmem:[%s178 + $0x258] sm:$0xff]
        %v1307 = vld [vmem:[%s178 + $0x260] sm:$0xff]
        %v1308 = vld [vmem:[%s178 + $0x268] sm:$0xff]
        %v1309 = vld [vmem:[%s178 + $0x270] sm:$0xff]
        %v1310 = vld [vmem:[%s178 + $0x278] sm:$0xff]
        %v1311 = vld [vmem:[%s178 + $0x280] sm:$0xff]
        %v1312 = vld [vmem:[%s178 + $0x288] sm:$0xff]
        %v1313 = vld [vmem:[%s178 + $0x290] sm:$0xff]
        %v1314 = vld [vmem:[%s178 + $0x298] sm:$0xff]
        %v1315 = vld [vmem:[%s178 + $0x2a0] sm:$0xff]
        %v1316 = vld [vmem:[%s178 + $0x2a8] sm:$0xff]
        %v1317 = vld [vmem:[%s178 + $0x2b0] sm:$0xff]
        %v1318 = vld [vmem:[%s178 + $0x2b8] sm:$0xff]
        %v1319 = vld [vmem:[%s178 + $0x2c0] sm:$0xff]
        %v1320 = vld [vmem:[%s178 + $0x2c8] sm:$0xff]
        %v1321 = vld [vmem:[%s178 + $0x2d0] sm:$0xff]
        %v1322 = vld [vmem:[%s178 + $0x2d8] sm:$0xff]
        %v1323 = vld [vmem:[%s178 + $0x2e0] sm:$0xff]
        %v1324 = vld [vmem:[%s178 + $0x2e8] sm:$0xff]
        %v1325 = vld [vmem:[%s178 + $0x2f0] sm:$0xff]
        %v1326 = vld [vmem:[%s178 + $0x2f8] sm:$0xff]
        %v1327 = vld [vmem:[%s178 + $0x300] sm:$0xff]
        %v1328 = vld [vmem:[%s178 + $0x308] sm:$0xff]
        %v1329 = vld [vmem:[%s178 + $0x310] sm:$0xff]
        %v1330 = vld [vmem:[%s178 + $0x318] sm:$0xff]
        %v1331 = vld [vmem:[%s178 + $0x320] sm:$0xff]
        %v1332 = vld [vmem:[%s178 + $0x328] sm:$0xff]
        %v1333 = vld [vmem:[%s178 + $0x330] sm:$0xff]
        %v1334 = vld [vmem:[%s178 + $0x338] sm:$0xff]
        %v1335 = vld [vmem:[%s178 + $0x340] sm:$0xff]
        %v1336 = vld [vmem:[%s178 + $0x348] sm:$0xff]
        %v1337 = vld [vmem:[%s178 + $0x350] sm:$0xff]
        %v1338 = vld [vmem:[%s178 + $0x358] sm:$0xff]
        %v1339 = vld [vmem:[%s178 + $0x360] sm:$0xff]
        %v1340 = vld [vmem:[%s178 + $0x368] sm:$0xff]
        %v1341 = vld [vmem:[%s178 + $0x370] sm:$0xff]
        %v1342 = vld [vmem:[%s178 + $0x378] sm:$0xff]
        %v1343 = vld [vmem:[%s178 + $0x380] sm:$0xff]
        %v1344 = vld [vmem:[%s178 + $0x388] sm:$0xff]
        %v1345 = vld [vmem:[%s178 + $0x390] sm:$0xff]
        %v1346 = vld [vmem:[%s178 + $0x398] sm:$0xff]
        %v1347 = vld [vmem:[%s178 + $0x3a0] sm:$0xff]
        %v1348 = vld [vmem:[%s178 + $0x3a8] sm:$0xff]
        %v1349 = vld [vmem:[%s178 + $0x3b0] sm:$0xff]
        %v1350 = vld [vmem:[%s178 + $0x3b8] sm:$0xff]
        %v1351 = vld [vmem:[%s178 + $0x3c0] sm:$0xff]
        %v1352 = vld [vmem:[%s178 + $0x3c8] sm:$0xff]
        %v1353 = vld [vmem:[%s178 + $0x3d0] sm:$0xff]
        %v1354 = vld [vmem:[%s178 + $0x3d8] sm:$0xff]
        %v1355 = vld [vmem:[%s178 + $0x3e0] sm:$0xff]
        %v1356 = vld [vmem:[%s178 + $0x3e8] sm:$0xff]
        %v1357 = vld [vmem:[%s178 + $0x3f0] sm:$0xff]
        %v1358 = vld [vmem:[%s178 + $0x3f8] sm:$0xff]
        %v1359 = vld [vmem:[%s178 + $0x400] sm:$0xff]
        %v1360 = vld [vmem:[%s178 + $0x408] sm:$0xff]
        %v1361 = vld [vmem:[%s178 + $0x410] sm:$0xff]
        %v1362 = vld [vmem:[%s178 + $0x418] sm:$0xff]
        %v1363 = vld [vmem:[%s178 + $0x420] sm:$0xff]
        %v1364 = vld [vmem:[%s178 + $0x428] sm:$0xff]
        %v1365 = vld [vmem:[%s178 + $0x430] sm:$0xff]
        %v1366 = vld [vmem:[%s178 + $0x438] sm:$0xff]
        %v1367 = vld [vmem:[%s178 + $0x440] sm:$0xff]
        %v1368 = vld [vmem:[%s178 + $0x448] sm:$0xff]
        %v1369 = vld [vmem:[%s178 + $0x450] sm:$0xff]
        %v1370 = vld [vmem:[%s178 + $0x458] sm:$0xff]
        %v1371 = vld [vmem:[%s178 + $0x460] sm:$0xff]
        %v1372 = vld [vmem:[%s178 + $0x468] sm:$0xff]
        %v1373 = vld [vmem:[%s178 + $0x470] sm:$0xff]
        %v1374 = vld [vmem:[%s178 + $0x478] sm:$0xff]
        %v1375 = vld [vmem:[%s178 + $0x480] sm:$0xff]
        %v1376 = vld [vmem:[%s178 + $0x488] sm:$0xff]
        %v1377 = vld [vmem:[%s178 + $0x490] sm:$0xff]
        %v1378 = vld [vmem:[%s178 + $0x498] sm:$0xff]
        %v1379 = vld [vmem:[%s178 + $0x4a0] sm:$0xff]
        %v1380 = vld [vmem:[%s178 + $0x4a8] sm:$0xff]
        %v1381 = vld [vmem:[%s178 + $0x4b0] sm:$0xff]
        %v1382 = vld [vmem:[%s178 + $0x4b8] sm:$0xff]
        %v1383 = vld [vmem:[%s178 + $0x4c0] sm:$0xff]
        %v1384 = vld [vmem:[%s178 + $0x4c8] sm:$0xff]
        %v1385 = vld [vmem:[%s178 + $0x4d0] sm:$0xff]
        %v1386 = vld [vmem:[%s178 + $0x4d8] sm:$0xff]
        %v1387 = vld [vmem:[%s178 + $0x4e0] sm:$0xff]
        %v1388 = vld [vmem:[%s178 + $0x4e8] sm:$0xff]
        %v1389 = vld [vmem:[%s178 + $0x4f0] sm:$0xff]
        %v1390 = vld [vmem:[%s178 + $0x4f8] sm:$0xff]
        %v1391 = vld [vmem:[%s178 + $0x500] sm:$0xff]
        %v1392 = vld [vmem:[%s178 + $0x508] sm:$0xff]
        %v1393 = vld [vmem:[%s178 + $0x510] sm:$0xff]
        %v1394 = vld [vmem:[%s178 + $0x518] sm:$0xff]
        %v1395 = vld [vmem:[%s178 + $0x520] sm:$0xff]
        %v1396 = vld [vmem:[%s178 + $0x528] sm:$0xff]
        %v1397 = vld [vmem:[%s178 + $0x530] sm:$0xff]
        %v1398 = vld [vmem:[%s178 + $0x538] sm:$0xff]
        %v1399 = vld [vmem:[%s178 + $0x540] sm:$0xff]
        %v1400 = vld [vmem:[%s178 + $0x548] sm:$0xff]
        %v1401 = vld [vmem:[%s178 + $0x550] sm:$0xff]
        %v1402 = vld [vmem:[%s178 + $0x558] sm:$0xff]
        %v1403 = vld [vmem:[%s178 + $0x560] sm:$0xff]
        %v1404 = vld [vmem:[%s178 + $0x568] sm:$0xff]
        %v1405 = vld [vmem:[%s178 + $0x570] sm:$0xff]
        %v1406 = vld [vmem:[%s178 + $0x578] sm:$0xff]
        %v1407 = vld [vmem:[%s178 + $0x580] sm:$0xff]
        %v1408 = vld [vmem:[%s178 + $0x588] sm:$0xff]
        %v1409 = vld [vmem:[%s178 + $0x590] sm:$0xff]
        %v1410 = vld [vmem:[%s178 + $0x598] sm:$0xff]
        %v1411 = vld [vmem:[%s178 + $0x5a0] sm:$0xff]
        %v1412 = vld [vmem:[%s178 + $0x5a8] sm:$0xff]
        %v1413 = vld [vmem:[%s178 + $0x5b0] sm:$0xff]
        %v1414 = vld [vmem:[%s178 + $0x5b8] sm:$0xff]
        %v1415 = vld [vmem:[%s178 + $0x5c0] sm:$0xff]
        %v1416 = vld [vmem:[%s178 + $0x5c8] sm:$0xff]
        %v1417 = vld [vmem:[%s178 + $0x5d0] sm:$0xff]
        %v1418 = vld [vmem:[%s178 + $0x5d8] sm:$0xff]
        %v1419 = vld [vmem:[%s178 + $0x5e0] sm:$0xff]
        %v1420 = vld [vmem:[%s178 + $0x5e8] sm:$0xff]
        %v1421 = vld [vmem:[%s178 + $0x5f0] sm:$0xff]
        %v1422 = vld [vmem:[%s178 + $0x5f8] sm:$0xff]
        %v1423 = vld [vmem:[%s178 + $0x600] sm:$0xff]
        %v1424 = vld [vmem:[%s178 + $0x608] sm:$0xff]
        %v1425 = vld [vmem:[%s178 + $0x610] sm:$0xff]
        %v1426 = vld [vmem:[%s178 + $0x618] sm:$0xff]
        %v1427 = vld [vmem:[%s178 + $0x620] sm:$0xff]
        %v1428 = vld [vmem:[%s178 + $0x628] sm:$0xff]
        %v1429 = vld [vmem:[%s178 + $0x630] sm:$0xff]
        %v1430 = vld [vmem:[%s178 + $0x638] sm:$0xff]
        %v1431 = vld [vmem:[%s178 + $0x640] sm:$0xff]
        %v1432 = vld [vmem:[%s178 + $0x648] sm:$0xff]
        %v1433 = vld [vmem:[%s178 + $0x650] sm:$0xff]
        %v1434 = vld [vmem:[%s178 + $0x658] sm:$0xff]
        %v1435 = vld [vmem:[%s178 + $0x660] sm:$0xff]
        %v1436 = vld [vmem:[%s178 + $0x668] sm:$0xff]
        %v1437 = vld [vmem:[%s178 + $0x670] sm:$0xff]
        %v1438 = vld [vmem:[%s178 + $0x678] sm:$0xff]
        %v1439 = vld [vmem:[%s178 + $0x680] sm:$0xff]
        %v1440 = vld [vmem:[%s178 + $0x688] sm:$0xff]
        %v1441 = vld [vmem:[%s178 + $0x690] sm:$0xff]
        %v1442 = vld [vmem:[%s178 + $0x698] sm:$0xff]
        %v1443 = vld [vmem:[%s178 + $0x6a0] sm:$0xff]
        %v1444 = vld [vmem:[%s178 + $0x6a8] sm:$0xff]
        %v1445 = vld [vmem:[%s178 + $0x6b0] sm:$0xff]
        %v1446 = vld [vmem:[%s178 + $0x6b8] sm:$0xff]
        %v1447 = vld [vmem:[%s178 + $0x6c0] sm:$0xff]
        %v1448 = vld [vmem:[%s178 + $0x6c8] sm:$0xff]
        %v1449 = vld [vmem:[%s178 + $0x6d0] sm:$0xff]
        %v1450 = vld [vmem:[%s178 + $0x6d8] sm:$0xff]
        %v1451 = vld [vmem:[%s178 + $0x6e0] sm:$0xff]
        %v1452 = vld [vmem:[%s178 + $0x6e8] sm:$0xff]
        %v1453 = vld [vmem:[%s178 + $0x6f0] sm:$0xff]
        %v1454 = vld [vmem:[%s178 + $0x6f8] sm:$0xff]
        %v1455 = vld [vmem:[%s178 + $0x700] sm:$0xff]
        %v1456 = vld [vmem:[%s178 + $0x708] sm:$0xff]
        %v1457 = vld [vmem:[%s178 + $0x710] sm:$0xff]
        %v1458 = vld [vmem:[%s178 + $0x718] sm:$0xff]
        %v1459 = vld [vmem:[%s178 + $0x720] sm:$0xff]
        %v1460 = vld [vmem:[%s178 + $0x728] sm:$0xff]
        %v1461 = vld [vmem:[%s178 + $0x730] sm:$0xff]
        %v1462 = vld [vmem:[%s178 + $0x738] sm:$0xff]
        %v1463 = vld [vmem:[%s178 + $0x740] sm:$0xff]
        %v1464 = vld [vmem:[%s178 + $0x748] sm:$0xff]
        %v1465 = vld [vmem:[%s178 + $0x750] sm:$0xff]
        %v1466 = vld [vmem:[%s178 + $0x758] sm:$0xff]
        %v1467 = vld [vmem:[%s178 + $0x760] sm:$0xff]
        %v1468 = vld [vmem:[%s178 + $0x768] sm:$0xff]
        %v1469 = vld [vmem:[%s178 + $0x770] sm:$0xff]
        %v1470 = vld [vmem:[%s178 + $0x778] sm:$0xff]
        %v1471 = vld [vmem:[%s178 + $0x780] sm:$0xff]
        %v1472 = vld [vmem:[%s178 + $0x788] sm:$0xff]
        %v1473 = vld [vmem:[%s178 + $0x790] sm:$0xff]
        %v1474 = vld [vmem:[%s178 + $0x798] sm:$0xff]
        %v1475 = vld [vmem:[%s178 + $0x7a0] sm:$0xff]
        %v1476 = vld [vmem:[%s178 + $0x7a8] sm:$0xff]
        %v1477 = vld [vmem:[%s178 + $0x7b0] sm:$0xff]
        %v1478 = vld [vmem:[%s178 + $0x7b8] sm:$0xff]
        %v1479 = vld [vmem:[%s178 + $0x7c0] sm:$0xff]
        %v1480 = vld [vmem:[%s178 + $0x7c8] sm:$0xff]
        %v1481 = vld [vmem:[%s178 + $0x7d0] sm:$0xff]
        %v1482 = vld [vmem:[%s178 + $0x7d8] sm:$0xff]
        %v1483 = vld [vmem:[%s178 + $0x7e0] sm:$0xff]
        %v1484 = vld [vmem:[%s178 + $0x7e8] sm:$0xff]
        %v1485 = vld [vmem:[%s178 + $0x7f0] sm:$0xff]
        %v1486 = vld [vmem:[%s178 + $0x7f8] sm:$0xff]
        %v1487 = vld [vmem:[%s178 + $0x800] sm:$0xff]
        %v1488 = vld [vmem:[%s178 + $0x808] sm:$0xff]
        %v1489 = vld [vmem:[%s178 + $0x810] sm:$0xff]
        %v1490 = vld [vmem:[%s178 + $0x818] sm:$0xff]
        %v1491 = vld [vmem:[%s178 + $0x820] sm:$0xff]
        %v1492 = vld [vmem:[%s178 + $0x828] sm:$0xff]
        %v1493 = vld [vmem:[%s178 + $0x830] sm:$0xff]
        %v1494 = vld [vmem:[%s178 + $0x838] sm:$0xff]
        %v1495 = vld [vmem:[%s178 + $0x840] sm:$0xff]
        %v1496 = vld [vmem:[%s178 + $0x848] sm:$0xff]
        %v1497 = vld [vmem:[%s178 + $0x850] sm:$0xff]
        %v1498 = vld [vmem:[%s178 + $0x858] sm:$0xff]
        %v1499 = vld [vmem:[%s178 + $0x860] sm:$0xff]
        %v1500 = vld [vmem:[%s178 + $0x868] sm:$0xff]
        %v1501 = vld [vmem:[%s178 + $0x870] sm:$0xff]
        %v1502 = vld [vmem:[%s178 + $0x878] sm:$0xff]
        %v1503 = vld [vmem:[%s178 + $0x880] sm:$0xff]
        %v1504 = vld [vmem:[%s178 + $0x888] sm:$0xff]
        %v1505 = vld [vmem:[%s178 + $0x890] sm:$0xff]
        %v1506 = vld [vmem:[%s178 + $0x898] sm:$0xff]
        %v1507 = vld [vmem:[%s178 + $0x8a0] sm:$0xff]
        %v1508 = vld [vmem:[%s178 + $0x8a8] sm:$0xff]
        %v1509 = vld [vmem:[%s178 + $0x8b0] sm:$0xff]
        %v1510 = vld [vmem:[%s178 + $0x8b8] sm:$0xff]
        %v1511 = vld [vmem:[%s178 + $0x8c0] sm:$0xff]
        %v1512 = vld [vmem:[%s178 + $0x8c8] sm:$0xff]
        %v1513 = vld [vmem:[%s178 + $0x8d0] sm:$0xff]
        %v1514 = vld [vmem:[%s178 + $0x8d8] sm:$0xff]
        %v1515 = vld [vmem:[%s178 + $0x8e0] sm:$0xff]
        %v1516 = vld [vmem:[%s178 + $0x8e8] sm:$0xff]
        %v1517 = vld [vmem:[%s178 + $0x8f0] sm:$0xff]
        %v1518 = vld [vmem:[%s178 + $0x8f8] sm:$0xff]
        %v1519 = vld [vmem:[%s178 + $0x900] sm:$0xff]
        %v1520 = vld [vmem:[%s178 + $0x908] sm:$0xff]
        %v1521 = vld [vmem:[%s178 + $0x910] sm:$0xff]
        %v1522 = vld [vmem:[%s178 + $0x918] sm:$0xff]
        %v1523 = vld [vmem:[%s178 + $0x920] sm:$0xff]
        %v1524 = vld [vmem:[%s178 + $0x928] sm:$0xff]
        %v1525 = vld [vmem:[%s178 + $0x930] sm:$0xff]
        %v1526 = vld [vmem:[%s178 + $0x938] sm:$0xff]
        %v1527 = vld [vmem:[%s178 + $0x940] sm:$0xff]
        %v1528 = vld [vmem:[%s178 + $0x948] sm:$0xff]
        %v1529 = vld [vmem:[%s178 + $0x950] sm:$0xff]
        %v1530 = vld [vmem:[%s178 + $0x958] sm:$0xff]
        %v1531 = vld [vmem:[%s178 + $0x960] sm:$0xff]
        %v1532 = vld [vmem:[%s178 + $0x968] sm:$0xff]
        %v1533 = vld [vmem:[%s178 + $0x970] sm:$0xff]
        %v1534 = vld [vmem:[%s178 + $0x978] sm:$0xff]
        %v1535 = vld [vmem:[%s178 + $0x980] sm:$0xff]
        %v1536 = vld [vmem:[%s178 + $0x988] sm:$0xff]
        %v1537 = vld [vmem:[%s178 + $0x990] sm:$0xff]
        %v1538 = vld [vmem:[%s178 + $0x998] sm:$0xff]
        %v1539 = vld [vmem:[%s178 + $0x9a0] sm:$0xff]
        %v1540 = vld [vmem:[%s178 + $0x9a8] sm:$0xff]
        %v1541 = vld [vmem:[%s178 + $0x9b0] sm:$0xff]
        %v1542 = vld [vmem:[%s178 + $0x9b8] sm:$0xff]
        %v1543 = vld [vmem:[%s178 + $0x9c0] sm:$0xff]
        %v1544 = vld [vmem:[%s178 + $0x9c8] sm:$0xff]
        %v1545 = vld [vmem:[%s178 + $0x9d0] sm:$0xff]
        %v1546 = vld [vmem:[%s178 + $0x9d8] sm:$0xff]
        %v1547 = vld [vmem:[%s178 + $0x9e0] sm:$0xff]
        %v1548 = vld [vmem:[%s178 + $0x9e8] sm:$0xff]
        %v1549 = vld [vmem:[%s178 + $0x9f0] sm:$0xff]
        %v1550 = vld [vmem:[%s178 + $0x9f8] sm:$0xff]
        %v1551 = vld [vmem:[%s178 + $0xa00] sm:$0xff]
        %v1552 = vld [vmem:[%s178 + $0xa08] sm:$0xff]
        %v1553 = vld [vmem:[%s178 + $0xa10] sm:$0xff]
        %v1554 = vld [vmem:[%s178 + $0xa18] sm:$0xff]
        %v1555 = vld [vmem:[%s178 + $0xa20] sm:$0xff]
        %v1556 = vld [vmem:[%s178 + $0xa28] sm:$0xff]
        %v1557 = vld [vmem:[%s178 + $0xa30] sm:$0xff]
        %v1558 = vld [vmem:[%s178 + $0xa38] sm:$0xff]
        %v1559 = vld [vmem:[%s178 + $0xa40] sm:$0xff]
        %v1560 = vld [vmem:[%s178 + $0xa48] sm:$0xff]
        %v1561 = vld [vmem:[%s178 + $0xa50] sm:$0xff]
        %v1562 = vld [vmem:[%s178 + $0xa58] sm:$0xff]
        %v1563 = vld [vmem:[%s178 + $0xa60] sm:$0xff]
        %v1564 = vld [vmem:[%s178 + $0xa68] sm:$0xff]
        %v1565 = vld [vmem:[%s178 + $0xa70] sm:$0xff]
        %v1566 = vld [vmem:[%s178 + $0xa78] sm:$0xff]
        %v1567 = vld [vmem:[%s178 + $0xa80] sm:$0xff]
        %v1568 = vld [vmem:[%s178 + $0xa88] sm:$0xff]
        %v1569 = vld [vmem:[%s178 + $0xa90] sm:$0xff]
        %v1570 = vld [vmem:[%s178 + $0xa98] sm:$0xff]
        %v1571 = vld [vmem:[%s178 + $0xaa0] sm:$0xff]
        %v1572 = vld [vmem:[%s178 + $0xaa8] sm:$0xff]
        %v1573 = vld [vmem:[%s178 + $0xab0] sm:$0xff]
        %v1574 = vld [vmem:[%s178 + $0xab8] sm:$0xff]
        %v1575 = vld [vmem:[%s178 + $0xac0] sm:$0xff]
        %v1576 = vld [vmem:[%s178 + $0xac8] sm:$0xff]
        %v1577 = vld [vmem:[%s178 + $0xad0] sm:$0xff]
        %v1578 = vld [vmem:[%s178 + $0xad8] sm:$0xff]
        %v1579 = vld [vmem:[%s178 + $0xae0] sm:$0xff]
        %v1580 = vld [vmem:[%s178 + $0xae8] sm:$0xff]
        %v1581 = vld [vmem:[%s178 + $0xaf0] sm:$0xff]
        %v1582 = vld [vmem:[%s178 + $0xaf8] sm:$0xff]
        %v1583 = vld [vmem:[%s178 + $0xb00] sm:$0xff]
        %v1584 = vld [vmem:[%s178 + $0xb08] sm:$0xff]
        %v1585 = vld [vmem:[%s178 + $0xb10] sm:$0xff]
        %v1586 = vld [vmem:[%s178 + $0xb18] sm:$0xff]
        %v1587 = vld [vmem:[%s178 + $0xb20] sm:$0xff]
        %v1588 = vld [vmem:[%s178 + $0xb28] sm:$0xff]
        %v1589 = vld [vmem:[%s178 + $0xb30] sm:$0xff]
        %v1590 = vld [vmem:[%s178 + $0xb38] sm:$0xff]
        %v1591 = vld [vmem:[%s178 + $0xb40] sm:$0xff]
        %v1592 = vld [vmem:[%s178 + $0xb48] sm:$0xff]
        %v1593 = vld [vmem:[%s178 + $0xb50] sm:$0xff]
        %v1594 = vld [vmem:[%s178 + $0xb58] sm:$0xff]
        %v1595 = vld [vmem:[%s178 + $0xb60] sm:$0xff]
        %v1596 = vld [vmem:[%s178 + $0xb68] sm:$0xff]
        %v1597 = vld [vmem:[%s178 + $0xb70] sm:$0xff]
        %v1598 = vld [vmem:[%s178 + $0xb78] sm:$0xff]
        %v1599 = vld [vmem:[%s178 + $0xb80] sm:$0xff]
        %v1600 = vld [vmem:[%s178 + $0xb88] sm:$0xff]
        %v1601 = vld [vmem:[%s178 + $0xb90] sm:$0xff]
        %v1602 = vld [vmem:[%s178 + $0xb98] sm:$0xff]
        %v1603 = vld [vmem:[%s178 + $0xba0] sm:$0xff]
        %v1604 = vld [vmem:[%s178 + $0xba8] sm:$0xff]
        %v1605 = vld [vmem:[%s178 + $0xbb0] sm:$0xff]
        %v1606 = vld [vmem:[%s178 + $0xbb8] sm:$0xff]
        %v1607 = vld [vmem:[%s178 + $0xbc0] sm:$0xff]
        %v1608 = vld [vmem:[%s178 + $0xbc8] sm:$0xff]
        %v1609 = vld [vmem:[%s178 + $0xbd0] sm:$0xff]
        %v1610 = vld [vmem:[%s178 + $0xbd8] sm:$0xff]
        %v1611 = vld [vmem:[%s178 + $0xbe0] sm:$0xff]
        %v1612 = vld [vmem:[%s178 + $0xbe8] sm:$0xff]
        %v1613 = vld [vmem:[%s178 + $0xbf0] sm:$0xff]
        %v1614 = vld [vmem:[%s178 + $0xbf8] sm:$0xff]
        %v1615 = vld [vmem:[%s178 + $0xc00] sm:$0xff]
        %v1616 = vld [vmem:[%s178 + $0xc08] sm:$0xff]
        %v1617 = vld [vmem:[%s178 + $0xc10] sm:$0xff]
        %v1618 = vld [vmem:[%s178 + $0xc18] sm:$0xff]
        %v1619 = vld [vmem:[%s178 + $0xc20] sm:$0xff]
        %v1620 = vld [vmem:[%s178 + $0xc28] sm:$0xff]
        %v1621 = vld [vmem:[%s178 + $0xc30] sm:$0xff]
        %v1622 = vld [vmem:[%s178 + $0xc38] sm:$0xff]
        %v1623 = vld [vmem:[%s178 + $0xc40] sm:$0xff]
        %v1624 = vld [vmem:[%s178 + $0xc48] sm:$0xff]
        %v1625 = vld [vmem:[%s178 + $0xc50] sm:$0xff]
        %v1626 = vld [vmem:[%s178 + $0xc58] sm:$0xff]
        %v1627 = vld [vmem:[%s178 + $0xc60] sm:$0xff]
        %v1628 = vld [vmem:[%s178 + $0xc68] sm:$0xff]
        %v1629 = vld [vmem:[%s178 + $0xc70] sm:$0xff]
        %v1630 = vld [vmem:[%s178 + $0xc78] sm:$0xff]
        %v1631 = vld [vmem:[%s178 + $0xc80] sm:$0xff]
        %v1632 = vld [vmem:[%s178 + $0xc88] sm:$0xff]
        %v1633 = vld [vmem:[%s178 + $0xc90] sm:$0xff]
        %v1634 = vld [vmem:[%s178 + $0xc98] sm:$0xff]
        %v1635 = vld [vmem:[%s178 + $0xca0] sm:$0xff]
        %v1636 = vld [vmem:[%s178 + $0xca8] sm:$0xff]
        %v1637 = vld [vmem:[%s178 + $0xcb0] sm:$0xff]
        %v1638 = vld [vmem:[%s178 + $0xcb8] sm:$0xff]
        %v1639 = vld [vmem:[%s178 + $0xcc0] sm:$0xff]
        %v1640 = vld [vmem:[%s178 + $0xcc8] sm:$0xff]
        %v1641 = vld [vmem:[%s178 + $0xcd0] sm:$0xff]
        %v1642 = vld [vmem:[%s178 + $0xcd8] sm:$0xff]
        %v1643 = vld [vmem:[%s178 + $0xce0] sm:$0xff]
        %v1644 = vld [vmem:[%s178 + $0xce8] sm:$0xff]
        %v1645 = vld [vmem:[%s178 + $0xcf0] sm:$0xff]
        %v1646 = vld [vmem:[%s178 + $0xcf8] sm:$0xff]
        %v1647 = vld [vmem:[%s178 + $0xd00] sm:$0xff]
        %v1648 = vld [vmem:[%s178 + $0xd08] sm:$0xff]
        %v1649 = vld [vmem:[%s178 + $0xd10] sm:$0xff]
        %v1650 = vld [vmem:[%s178 + $0xd18] sm:$0xff]
        %v1651 = vld [vmem:[%s178 + $0xd20] sm:$0xff]
        %v1652 = vld [vmem:[%s178 + $0xd28] sm:$0xff]
        %v1653 = vld [vmem:[%s178 + $0xd30] sm:$0xff]
        %v1654 = vld [vmem:[%s178 + $0xd38] sm:$0xff]
        %v1655 = vld [vmem:[%s178 + $0xd40] sm:$0xff]
        %v1656 = vld [vmem:[%s178 + $0xd48] sm:$0xff]
        %v1657 = vld [vmem:[%s178 + $0xd50] sm:$0xff]
        %v1658 = vld [vmem:[%s178 + $0xd58] sm:$0xff]
        %v1659 = vld [vmem:[%s178 + $0xd60] sm:$0xff]
        %v1660 = vld [vmem:[%s178 + $0xd68] sm:$0xff]
        %v1661 = vld [vmem:[%s178 + $0xd70] sm:$0xff]
        %v1662 = vld [vmem:[%s178 + $0xd78] sm:$0xff]
        %v1663 = vld [vmem:[%s178 + $0xd80] sm:$0xff]
        %v1664 = vld [vmem:[%s178 + $0xd88] sm:$0xff]
        %v1665 = vld [vmem:[%s178 + $0xd90] sm:$0xff]
        %v1666 = vld [vmem:[%s178 + $0xd98] sm:$0xff]
        %v1667 = vld [vmem:[%s178 + $0xda0] sm:$0xff]
        %v1668 = vld [vmem:[%s178 + $0xda8] sm:$0xff]
        %v1669 = vld [vmem:[%s178 + $0xdb0] sm:$0xff]
        %v1670 = vld [vmem:[%s178 + $0xdb8] sm:$0xff]
        %v1671 = vld [vmem:[%s178 + $0xdc0] sm:$0xff]
        %v1672 = vld [vmem:[%s178 + $0xdc8] sm:$0xff]
        %v1673 = vld [vmem:[%s178 + $0xdd0] sm:$0xff]
        %v1674 = vld [vmem:[%s178 + $0xdd8] sm:$0xff]
        %v1675 = vld [vmem:[%s178 + $0xde0] sm:$0xff]
        %v1676 = vld [vmem:[%s178 + $0xde8] sm:$0xff]
        %v1677 = vld [vmem:[%s178 + $0xdf0] sm:$0xff]
        %v1678 = vld [vmem:[%s178 + $0xdf8] sm:$0xff]
        %v1679 = vld [vmem:[%s178 + $0xe00] sm:$0xff]
        %v1680 = vld [vmem:[%s178 + $0xe08] sm:$0xff]
        %v1681 = vld [vmem:[%s178 + $0xe10] sm:$0xff]
        %v1682 = vld [vmem:[%s178 + $0xe18] sm:$0xff]
        %v1683 = vld [vmem:[%s178 + $0xe20] sm:$0xff]
        %v1684 = vld [vmem:[%s178 + $0xe28] sm:$0xff]
        %v1685 = vld [vmem:[%s178 + $0xe30] sm:$0xff]
        %v1686 = vld [vmem:[%s178 + $0xe38] sm:$0xff]
        %v1687 = vld [vmem:[%s178 + $0xe40] sm:$0xff]
        %v1688 = vld [vmem:[%s178 + $0xe48] sm:$0xff]
        %v1689 = vld [vmem:[%s178 + $0xe50] sm:$0xff]
        %v1690 = vld [vmem:[%s178 + $0xe58] sm:$0xff]
        %v1691 = vld [vmem:[%s178 + $0xe60] sm:$0xff]
        %v1692 = vld [vmem:[%s178 + $0xe68] sm:$0xff]
        %v1693 = vld [vmem:[%s178 + $0xe70] sm:$0xff]
        %v1694 = vld [vmem:[%s178 + $0xe78] sm:$0xff]
        %v1695 = vld [vmem:[%s178 + $0xe80] sm:$0xff]
        %v1696 = vld [vmem:[%s178 + $0xe88] sm:$0xff]
        %v1697 = vld [vmem:[%s178 + $0xe90] sm:$0xff]
        %v1698 = vld [vmem:[%s178 + $0xe98] sm:$0xff]
        %v1699 = vld [vmem:[%s178 + $0xea0] sm:$0xff]
        %v1700 = vld [vmem:[%s178 + $0xea8] sm:$0xff]
        %v1701 = vld [vmem:[%s178 + $0xeb0] sm:$0xff]
        %v1702 = vld [vmem:[%s178 + $0xeb8] sm:$0xff]
        %v1703 = vld [vmem:[%s178 + $0xec0] sm:$0xff]
        %v1704 = vld [vmem:[%s178 + $0xec8] sm:$0xff]
        %v1705 = vld [vmem:[%s178 + $0xed0] sm:$0xff]
        %v1706 = vld [vmem:[%s178 + $0xed8] sm:$0xff]
        %v1707 = vld [vmem:[%s178 + $0xee0] sm:$0xff]
        %v1708 = vld [vmem:[%s178 + $0xee8] sm:$0xff]
        %v1709 = vld [vmem:[%s178 + $0xef0] sm:$0xff]
        %v1710 = vld [vmem:[%s178 + $0xef8] sm:$0xff]
        %v1711 = vld [vmem:[%s178 + $0xf00] sm:$0xff]
        %v1712 = vld [vmem:[%s178 + $0xf08] sm:$0xff]
        %v1713 = vld [vmem:[%s178 + $0xf10] sm:$0xff]
        %v1714 = vld [vmem:[%s178 + $0xf18] sm:$0xff]
        %v1715 = vld [vmem:[%s178 + $0xf20] sm:$0xff]
        %v1716 = vld [vmem:[%s178 + $0xf28] sm:$0xff]
        %v1717 = vld [vmem:[%s178 + $0xf30] sm:$0xff]
        %v1718 = vld [vmem:[%s178 + $0xf38] sm:$0xff]
        %v1719 = vld [vmem:[%s178 + $0xf40] sm:$0xff]
        %v1720 = vld [vmem:[%s178 + $0xf48] sm:$0xff]
        %v1721 = vld [vmem:[%s178 + $0xf50] sm:$0xff]
        %v1722 = vld [vmem:[%s178 + $0xf58] sm:$0xff]
        %v1723 = vld [vmem:[%s178 + $0xf60] sm:$0xff]
        %v1724 = vld [vmem:[%s178 + $0xf68] sm:$0xff]
        %v1725 = vld [vmem:[%s178 + $0xf70] sm:$0xff]
        %v1726 = vld [vmem:[%s178 + $0xf78] sm:$0xff]
        %v1727 = vld [vmem:[%s178 + $0xf80] sm:$0xff]
        %v1728 = vld [vmem:[%s178 + $0xf88] sm:$0xff]
        %v1729 = vld [vmem:[%s178 + $0xf90] sm:$0xff]
        %v1730 = vld [vmem:[%s178 + $0xf98] sm:$0xff]
        %v1731 = vld [vmem:[%s178 + $0xfa0] sm:$0xff]
        %v1732 = vld [vmem:[%s178 + $0xfa8] sm:$0xff]
        %v1733 = vld [vmem:[%s178 + $0xfb0] sm:$0xff]
        %v1734 = vld [vmem:[%s178 + $0xfb8] sm:$0xff]
        %v1735 = vld [vmem:[%s178 + $0xfc0] sm:$0xff]
        %v1736 = vld [vmem:[%s178 + $0xfc8] sm:$0xff]
        %v1737 = vld [vmem:[%s178 + $0xfd0] sm:$0xff]
        %v1738 = vld [vmem:[%s178 + $0xfd8] sm:$0xff]
        %v1739 = vld [vmem:[%s178 + $0xfe0] sm:$0xff]
        %v1740 = vld [vmem:[%s178 + $0xfe8] sm:$0xff]
        %v1741 = vld [vmem:[%s178 + $0xff0] sm:$0xff]
        %v1742 = vld [vmem:[%s178 + $0xff8] sm:$0xff]
        %v1743 = vmul.f32 %v1231, 0.5
        %v1744 = vmul.f32 %v1232, 0.5
        %v1745 = vmul.f32 %v1233, 0.5
        %v1746 = vmul.f32 %v1234, 0.5
        %v1747 = vmul.f32 %v1235, 0.5
        %v1748 = vmul.f32 %v1236, 0.5
        %v1749 = vmul.f32 %v1237, 0.5
        %v1750 = vmul.f32 %v1238, 0.5
        %v1751 = vmul.f32 %v1239, 0.5
        %v1752 = vmul.f32 %v1240, 0.5
        %v1753 = vmul.f32 %v1241, 0.5
        %v1754 = vmul.f32 %v1242, 0.5
        %v1755 = vmul.f32 %v1243, 0.5
        %v1756 = vmul.f32 %v1244, 0.5
        %v1757 = vmul.f32 %v1245, 0.5
        %v1758 = vmul.f32 %v1246, 0.5
        %v1759 = vmul.f32 %v1247, 0.5
        %v1760 = vmul.f32 %v1248, 0.5
        %v1761 = vmul.f32 %v1249, 0.5
        %v1762 = vmul.f32 %v1250, 0.5
        %v1763 = vmul.f32 %v1251, 0.5
        %v1764 = vmul.f32 %v1252, 0.5
        %v1765 = vmul.f32 %v1253, 0.5
        %v1766 = vmul.f32 %v1254, 0.5
        %v1767 = vmul.f32 %v1255, 0.5
        %v1768 = vmul.f32 %v1256, 0.5
        %v1769 = vmul.f32 %v1257, 0.5
        %v1770 = vmul.f32 %v1258, 0.5
        %v1771 = vmul.f32 %v1259, 0.5
        %v1772 = vmul.f32 %v1260, 0.5
        %v1773 = vmul.f32 %v1261, 0.5
        %v1774 = vmul.f32 %v1262, 0.5
        %v1775 = vmul.f32 %v1263, 0.5
        %v1776 = vmul.f32 %v1264, 0.5
        %v1777 = vmul.f32 %v1265, 0.5
        %v1778 = vmul.f32 %v1266, 0.5
        %v1779 = vmul.f32 %v1267, 0.5
        %v1780 = vmul.f32 %v1268, 0.5
        %v1781 = vmul.f32 %v1269, 0.5
        %v1782 = vmul.f32 %v1270, 0.5
        %v1783 = vmul.f32 %v1271, 0.5
        %v1784 = vmul.f32 %v1272, 0.5
        %v1785 = vmul.f32 %v1273, 0.5
        %v1786 = vmul.f32 %v1274, 0.5
        %v1787 = vmul.f32 %v1275, 0.5
        %v1788 = vmul.f32 %v1276, 0.5
        %v1789 = vmul.f32 %v1277, 0.5
        %v1790 = vmul.f32 %v1278, 0.5
        %v1791 = vmul.f32 %v1279, 0.5
        %v1792 = vmul.f32 %v1280, 0.5
        %v1793 = vmul.f32 %v1281, 0.5
        %v1794 = vmul.f32 %v1282, 0.5
        %v1795 = vmul.f32 %v1283, 0.5
        %v1796 = vmul.f32 %v1284, 0.5
        %v1797 = vmul.f32 %v1285, 0.5
        %v1798 = vmul.f32 %v1286, 0.5
        %v1799 = vmul.f32 %v1287, 0.5
        %v1800 = vmul.f32 %v1288, 0.5
        %v1801 = vmul.f32 %v1289, 0.5
        %v1802 = vmul.f32 %v1290, 0.5
        %v1803 = vmul.f32 %v1291, 0.5
        %v1804 = vmul.f32 %v1292, 0.5
        %v1805 = vmul.f32 %v1293, 0.5
        %v1806 = vmul.f32 %v1294, 0.5
        %v1807 = vmul.f32 %v1295, 0.5
        %v1808 = vmul.f32 %v1296, 0.5
        %v1809 = vmul.f32 %v1297, 0.5
        %v1810 = vmul.f32 %v1298, 0.5
        %v1811 = vmul.f32 %v1299, 0.5
        %v1812 = vmul.f32 %v1300, 0.5
        %v1813 = vmul.f32 %v1301, 0.5
        %v1814 = vmul.f32 %v1302, 0.5
        %v1815 = vmul.f32 %v1303, 0.5
        %v1816 = vmul.f32 %v1304, 0.5
        %v1817 = vmul.f32 %v1305, 0.5
        %v1818 = vmul.f32 %v1306, 0.5
        %v1819 = vmul.f32 %v1307, 0.5
        %v1820 = vmul.f32 %v1308, 0.5
        %v1821 = vmul.f32 %v1309, 0.5
        %v1822 = vmul.f32 %v1310, 0.5
        %v1823 = vmul.f32 %v1311, 0.5
        %v1824 = vmul.f32 %v1312, 0.5
        %v1825 = vmul.f32 %v1313, 0.5
        %v1826 = vmul.f32 %v1314, 0.5
        %v1827 = vmul.f32 %v1315, 0.5
        %v1828 = vmul.f32 %v1316, 0.5
        %v1829 = vmul.f32 %v1317, 0.5
        %v1830 = vmul.f32 %v1318, 0.5
        %v1831 = vmul.f32 %v1319, 0.5
        %v1832 = vmul.f32 %v1320, 0.5
        %v1833 = vmul.f32 %v1321, 0.5
        %v1834 = vmul.f32 %v1322, 0.5
        %v1835 = vmul.f32 %v1323, 0.5
        %v1836 = vmul.f32 %v1324, 0.5
        %v1837 = vmul.f32 %v1325, 0.5
        %v1838 = vmul.f32 %v1326, 0.5
        %v1839 = vmul.f32 %v1327, 0.5
        %v1840 = vmul.f32 %v1328, 0.5
        %v1841 = vmul.f32 %v1329, 0.5
        %v1842 = vmul.f32 %v1330, 0.5
        %v1843 = vmul.f32 %v1331, 0.5
        %v1844 = vmul.f32 %v1332, 0.5
        %v1845 = vmul.f32 %v1333, 0.5
        %v1846 = vmul.f32 %v1334, 0.5
        %v1847 = vmul.f32 %v1335, 0.5
        %v1848 = vmul.f32 %v1336, 0.5
        %v1849 = vmul.f32 %v1337, 0.5
        %v1850 = vmul.f32 %v1338, 0.5
        %v1851 = vmul.f32 %v1339, 0.5
        %v1852 = vmul.f32 %v1340, 0.5
        %v1853 = vmul.f32 %v1341, 0.5
        %v1854 = vmul.f32 %v1342, 0.5
        %v1855 = vmul.f32 %v1343, 0.5
        %v1856 = vmul.f32 %v1344, 0.5
        %v1857 = vmul.f32 %v1345, 0.5
        %v1858 = vmul.f32 %v1346, 0.5
        %v1859 = vmul.f32 %v1347, 0.5
        %v1860 = vmul.f32 %v1348, 0.5
        %v1861 = vmul.f32 %v1349, 0.5
        %v1862 = vmul.f32 %v1350, 0.5
        %v1863 = vmul.f32 %v1351, 0.5
        %v1864 = vmul.f32 %v1352, 0.5
        %v1865 = vmul.f32 %v1353, 0.5
        %v1866 = vmul.f32 %v1354, 0.5
        %v1867 = vmul.f32 %v1355, 0.5
        %v1868 = vmul.f32 %v1356, 0.5
        %v1869 = vmul.f32 %v1357, 0.5
        %v1870 = vmul.f32 %v1358, 0.5
        %v1871 = vmul.f32 %v1359, 0.5
        %v1872 = vmul.f32 %v1360, 0.5
        %v1873 = vmul.f32 %v1361, 0.5
        %v1874 = vmul.f32 %v1362, 0.5
        %v1875 = vmul.f32 %v1363, 0.5
        %v1876 = vmul.f32 %v1364, 0.5
        %v1877 = vmul.f32 %v1365, 0.5
        %v1878 = vmul.f32 %v1366, 0.5
        %v1879 = vmul.f32 %v1367, 0.5
        %v1880 = vmul.f32 %v1368, 0.5
        %v1881 = vmul.f32 %v1369, 0.5
        %v1882 = vmul.f32 %v1370, 0.5
        %v1883 = vmul.f32 %v1371, 0.5
        %v1884 = vmul.f32 %v1372, 0.5
        %v1885 = vmul.f32 %v1373, 0.5
        %v1886 = vmul.f32 %v1374, 0.5
        %v1887 = vmul.f32 %v1375, 0.5
        %v1888 = vmul.f32 %v1376, 0.5
        %v1889 = vmul.f32 %v1377, 0.5
        %v1890 = vmul.f32 %v1378, 0.5
        %v1891 = vmul.f32 %v1379, 0.5
        %v1892 = vmul.f32 %v1380, 0.5
        %v1893 = vmul.f32 %v1381, 0.5
        %v1894 = vmul.f32 %v1382, 0.5
        %v1895 = vmul.f32 %v1383, 0.5
        %v1896 = vmul.f32 %v1384, 0.5
        %v1897 = vmul.f32 %v1385, 0.5
        %v1898 = vmul.f32 %v1386, 0.5
        %v1899 = vmul.f32 %v1387, 0.5
        %v1900 = vmul.f32 %v1388, 0.5
        %v1901 = vmul.f32 %v1389, 0.5
        %v1902 = vmul.f32 %v1390, 0.5
        %v1903 = vmul.f32 %v1391, 0.5
        %v1904 = vmul.f32 %v1392, 0.5
        %v1905 = vmul.f32 %v1393, 0.5
        %v1906 = vmul.f32 %v1394, 0.5
        %v1907 = vmul.f32 %v1395, 0.5
        %v1908 = vmul.f32 %v1396, 0.5
        %v1909 = vmul.f32 %v1397, 0.5
        %v1910 = vmul.f32 %v1398, 0.5
        %v1911 = vmul.f32 %v1399, 0.5
        %v1912 = vmul.f32 %v1400, 0.5
        %v1913 = vmul.f32 %v1401, 0.5
        %v1914 = vmul.f32 %v1402, 0.5
        %v1915 = vmul.f32 %v1403, 0.5
        %v1916 = vmul.f32 %v1404, 0.5
        %v1917 = vmul.f32 %v1405, 0.5
        %v1918 = vmul.f32 %v1406, 0.5
        %v1919 = vmul.f32 %v1407, 0.5
        %v1920 = vmul.f32 %v1408, 0.5
        %v1921 = vmul.f32 %v1409, 0.5
        %v1922 = vmul.f32 %v1410, 0.5
        %v1923 = vmul.f32 %v1411, 0.5
        %v1924 = vmul.f32 %v1412, 0.5
        %v1925 = vmul.f32 %v1413, 0.5
        %v1926 = vmul.f32 %v1414, 0.5
        %v1927 = vmul.f32 %v1415, 0.5
        %v1928 = vmul.f32 %v1416, 0.5
        %v1929 = vmul.f32 %v1417, 0.5
        %v1930 = vmul.f32 %v1418, 0.5
        %v1931 = vmul.f32 %v1419, 0.5
        %v1932 = vmul.f32 %v1420, 0.5
        %v1933 = vmul.f32 %v1421, 0.5
        %v1934 = vmul.f32 %v1422, 0.5
        %v1935 = vmul.f32 %v1423, 0.5
        %v1936 = vmul.f32 %v1424, 0.5
        %v1937 = vmul.f32 %v1425, 0.5
        %v1938 = vmul.f32 %v1426, 0.5
        %v1939 = vmul.f32 %v1427, 0.5
        %v1940 = vmul.f32 %v1428, 0.5
        %v1941 = vmul.f32 %v1429, 0.5
        %v1942 = vmul.f32 %v1430, 0.5
        %v1943 = vmul.f32 %v1431, 0.5
        %v1944 = vmul.f32 %v1432, 0.5
        %v1945 = vmul.f32 %v1433, 0.5
        %v1946 = vmul.f32 %v1434, 0.5
        %v1947 = vmul.f32 %v1435, 0.5
        %v1948 = vmul.f32 %v1436, 0.5
        %v1949 = vmul.f32 %v1437, 0.5
        %v1950 = vmul.f32 %v1438, 0.5
        %v1951 = vmul.f32 %v1439, 0.5
        %v1952 = vmul.f32 %v1440, 0.5
        %v1953 = vmul.f32 %v1441, 0.5
        %v1954 = vmul.f32 %v1442, 0.5
        %v1955 = vmul.f32 %v1443, 0.5
        %v1956 = vmul.f32 %v1444, 0.5
        %v1957 = vmul.f32 %v1445, 0.5
        %v1958 = vmul.f32 %v1446, 0.5
        %v1959 = vmul.f32 %v1447, 0.5
        %v1960 = vmul.f32 %v1448, 0.5
        %v1961 = vmul.f32 %v1449, 0.5
        %v1962 = vmul.f32 %v1450, 0.5
        %v1963 = vmul.f32 %v1451, 0.5
        %v1964 = vmul.f32 %v1452, 0.5
        %v1965 = vmul.f32 %v1453, 0.5
        %v1966 = vmul.f32 %v1454, 0.5
        %v1967 = vmul.f32 %v1455, 0.5
        %v1968 = vmul.f32 %v1456, 0.5
        %v1969 = vmul.f32 %v1457, 0.5
        %v1970 = vmul.f32 %v1458, 0.5
        %v1971 = vmul.f32 %v1459, 0.5
        %v1972 = vmul.f32 %v1460, 0.5
        %v1973 = vmul.f32 %v1461, 0.5
        %v1974 = vmul.f32 %v1462, 0.5
        %v1975 = vmul.f32 %v1463, 0.5
        %v1976 = vmul.f32 %v1464, 0.5
        %v1977 = vmul.f32 %v1465, 0.5
        %v1978 = vmul.f32 %v1466, 0.5
        %v1979 = vmul.f32 %v1467, 0.5
        %v1980 = vmul.f32 %v1468, 0.5
        %v1981 = vmul.f32 %v1469, 0.5
        %v1982 = vmul.f32 %v1470, 0.5
        %v1983 = vmul.f32 %v1471, 0.5
        %v1984 = vmul.f32 %v1472, 0.5
        %v1985 = vmul.f32 %v1473, 0.5
        %v1986 = vmul.f32 %v1474, 0.5
        %v1987 = vmul.f32 %v1475, 0.5
        %v1988 = vmul.f32 %v1476, 0.5
        %v1989 = vmul.f32 %v1477, 0.5
        %v1990 = vmul.f32 %v1478, 0.5
        %v1991 = vmul.f32 %v1479, 0.5
        %v1992 = vmul.f32 %v1480, 0.5
        %v1993 = vmul.f32 %v1481, 0.5
        %v1994 = vmul.f32 %v1482, 0.5
        %v1995 = vmul.f32 %v1483, 0.5
        %v1996 = vmul.f32 %v1484, 0.5
        %v1997 = vmul.f32 %v1485, 0.5
        %v1998 = vmul.f32 %v1486, 0.5
        %v1999 = vmul.f32 %v1487, 0.5
        %v2000 = vmul.f32 %v1488, 0.5
        %v2001 = vmul.f32 %v1489, 0.5
        %v2002 = vmul.f32 %v1490, 0.5
        %v2003 = vmul.f32 %v1491, 0.5
        %v2004 = vmul.f32 %v1492, 0.5
        %v2005 = vmul.f32 %v1493, 0.5
        %v2006 = vmul.f32 %v1494, 0.5
        %v2007 = vmul.f32 %v1495, 0.5
        %v2008 = vmul.f32 %v1496, 0.5
        %v2009 = vmul.f32 %v1497, 0.5
        %v2010 = vmul.f32 %v1498, 0.5
        %v2011 = vmul.f32 %v1499, 0.5
        %v2012 = vmul.f32 %v1500, 0.5
        %v2013 = vmul.f32 %v1501, 0.5
        %v2014 = vmul.f32 %v1502, 0.5
        %v2015 = vmul.f32 %v1503, 0.5
        %v2016 = vmul.f32 %v1504, 0.5
        %v2017 = vmul.f32 %v1505, 0.5
        %v2018 = vmul.f32 %v1506, 0.5
        %v2019 = vmul.f32 %v1507, 0.5
        %v2020 = vmul.f32 %v1508, 0.5
        %v2021 = vmul.f32 %v1509, 0.5
        %v2022 = vmul.f32 %v1510, 0.5
        %v2023 = vmul.f32 %v1511, 0.5
        %v2024 = vmul.f32 %v1512, 0.5
        %v2025 = vmul.f32 %v1513, 0.5
        %v2026 = vmul.f32 %v1514, 0.5
        %v2027 = vmul.f32 %v1515, 0.5
        %v2028 = vmul.f32 %v1516, 0.5
        %v2029 = vmul.f32 %v1517, 0.5
        %v2030 = vmul.f32 %v1518, 0.5
        %v2031 = vmul.f32 %v1519, 0.5
        %v2032 = vmul.f32 %v1520, 0.5
        %v2033 = vmul.f32 %v1521, 0.5
        %v2034 = vmul.f32 %v1522, 0.5
        %v2035 = vmul.f32 %v1523, 0.5
        %v2036 = vmul.f32 %v1524, 0.5
        %v2037 = vmul.f32 %v1525, 0.5
        %v2038 = vmul.f32 %v1526, 0.5
        %v2039 = vmul.f32 %v1527, 0.5
        %v2040 = vmul.f32 %v1528, 0.5
        %v2041 = vmul.f32 %v1529, 0.5
        %v2042 = vmul.f32 %v1530, 0.5
        %v2043 = vmul.f32 %v1531, 0.5
        %v2044 = vmul.f32 %v1532, 0.5
        %v2045 = vmul.f32 %v1533, 0.5
        %v2046 = vmul.f32 %v1534, 0.5
        %v2047 = vmul.f32 %v1535, 0.5
        %v2048 = vmul.f32 %v1536, 0.5
        %v2049 = vmul.f32 %v1537, 0.5
        %v2050 = vmul.f32 %v1538, 0.5
        %v2051 = vmul.f32 %v1539, 0.5
        %v2052 = vmul.f32 %v1540, 0.5
        %v2053 = vmul.f32 %v1541, 0.5
        %v2054 = vmul.f32 %v1542, 0.5
        %v2055 = vmul.f32 %v1543, 0.5
        %v2056 = vmul.f32 %v1544, 0.5
        %v2057 = vmul.f32 %v1545, 0.5
        %v2058 = vmul.f32 %v1546, 0.5
        %v2059 = vmul.f32 %v1547, 0.5
        %v2060 = vmul.f32 %v1548, 0.5
        %v2061 = vmul.f32 %v1549, 0.5
        %v2062 = vmul.f32 %v1550, 0.5
        %v2063 = vmul.f32 %v1551, 0.5
        %v2064 = vmul.f32 %v1552, 0.5
        %v2065 = vmul.f32 %v1553, 0.5
        %v2066 = vmul.f32 %v1554, 0.5
        %v2067 = vmul.f32 %v1555, 0.5
        %v2068 = vmul.f32 %v1556, 0.5
        %v2069 = vmul.f32 %v1557, 0.5
        %v2070 = vmul.f32 %v1558, 0.5
        %v2071 = vmul.f32 %v1559, 0.5
        %v2072 = vmul.f32 %v1560, 0.5
        %v2073 = vmul.f32 %v1561, 0.5
        %v2074 = vmul.f32 %v1562, 0.5
        %v2075 = vmul.f32 %v1563, 0.5
        %v2076 = vmul.f32 %v1564, 0.5
        %v2077 = vmul.f32 %v1565, 0.5
        %v2078 = vmul.f32 %v1566, 0.5
        %v2079 = vmul.f32 %v1567, 0.5
        %v2080 = vmul.f32 %v1568, 0.5
        %v2081 = vmul.f32 %v1569, 0.5
        %v2082 = vmul.f32 %v1570, 0.5
        %v2083 = vmul.f32 %v1571, 0.5
        %v2084 = vmul.f32 %v1572, 0.5
        %v2085 = vmul.f32 %v1573, 0.5
        %v2086 = vmul.f32 %v1574, 0.5
        %v2087 = vmul.f32 %v1575, 0.5
        %v2088 = vmul.f32 %v1576, 0.5
        %v2089 = vmul.f32 %v1577, 0.5
        %v2090 = vmul.f32 %v1578, 0.5
        %v2091 = vmul.f32 %v1579, 0.5
        %v2092 = vmul.f32 %v1580, 0.5
        %v2093 = vmul.f32 %v1581, 0.5
        %v2094 = vmul.f32 %v1582, 0.5
        %v2095 = vmul.f32 %v1583, 0.5
        %v2096 = vmul.f32 %v1584, 0.5
        %v2097 = vmul.f32 %v1585, 0.5
        %v2098 = vmul.f32 %v1586, 0.5
        %v2099 = vmul.f32 %v1587, 0.5
        %v2100 = vmul.f32 %v1588, 0.5
        %v2101 = vmul.f32 %v1589, 0.5
        %v2102 = vmul.f32 %v1590, 0.5
        %v2103 = vmul.f32 %v1591, 0.5
        %v2104 = vmul.f32 %v1592, 0.5
        %v2105 = vmul.f32 %v1593, 0.5
        %v2106 = vmul.f32 %v1594, 0.5
        %v2107 = vmul.f32 %v1595, 0.5
        %v2108 = vmul.f32 %v1596, 0.5
        %v2109 = vmul.f32 %v1597, 0.5
        %v2110 = vmul.f32 %v1598, 0.5
        %v2111 = vmul.f32 %v1599, 0.5
        %v2112 = vmul.f32 %v1600, 0.5
        %v2113 = vmul.f32 %v1601, 0.5
        %v2114 = vmul.f32 %v1602, 0.5
        %v2115 = vmul.f32 %v1603, 0.5
        %v2116 = vmul.f32 %v1604, 0.5
        %v2117 = vmul.f32 %v1605, 0.5
        %v2118 = vmul.f32 %v1606, 0.5
        %v2119 = vmul.f32 %v1607, 0.5
        %v2120 = vmul.f32 %v1608, 0.5
        %v2121 = vmul.f32 %v1609, 0.5
        %v2122 = vmul.f32 %v1610, 0.5
        %v2123 = vmul.f32 %v1611, 0.5
        %v2124 = vmul.f32 %v1612, 0.5
        %v2125 = vmul.f32 %v1613, 0.5
        %v2126 = vmul.f32 %v1614, 0.5
        %v2127 = vmul.f32 %v1615, 0.5
        %v2128 = vmul.f32 %v1616, 0.5
        %v2129 = vmul.f32 %v1617, 0.5
        %v2130 = vmul.f32 %v1618, 0.5
        %v2131 = vmul.f32 %v1619, 0.5
        %v2132 = vmul.f32 %v1620, 0.5
        %v2133 = vmul.f32 %v1621, 0.5
        %v2134 = vmul.f32 %v1622, 0.5
        %v2135 = vmul.f32 %v1623, 0.5
        %v2136 = vmul.f32 %v1624, 0.5
        %v2137 = vmul.f32 %v1625, 0.5
        %v2138 = vmul.f32 %v1626, 0.5
        %v2139 = vmul.f32 %v1627, 0.5
        %v2140 = vmul.f32 %v1628, 0.5
        %v2141 = vmul.f32 %v1629, 0.5
        %v2142 = vmul.f32 %v1630, 0.5
        %v2143 = vmul.f32 %v1631, 0.5
        %v2144 = vmul.f32 %v1632, 0.5
        %v2145 = vmul.f32 %v1633, 0.5
        %v2146 = vmul.f32 %v1634, 0.5
        %v2147 = vmul.f32 %v1635, 0.5
        %v2148 = vmul.f32 %v1636, 0.5
        %v2149 = vmul.f32 %v1637, 0.5
        %v2150 = vmul.f32 %v1638, 0.5
        %v2151 = vmul.f32 %v1639, 0.5
        %v2152 = vmul.f32 %v1640, 0.5
        %v2153 = vmul.f32 %v1641, 0.5
        %v2154 = vmul.f32 %v1642, 0.5
        %v2155 = vmul.f32 %v1643, 0.5
        %v2156 = vmul.f32 %v1644, 0.5
        %v2157 = vmul.f32 %v1645, 0.5
        %v2158 = vmul.f32 %v1646, 0.5
        %v2159 = vmul.f32 %v1647, 0.5
        %v2160 = vmul.f32 %v1648, 0.5
        %v2161 = vmul.f32 %v1649, 0.5
        %v2162 = vmul.f32 %v1650, 0.5
        %v2163 = vmul.f32 %v1651, 0.5
        %v2164 = vmul.f32 %v1652, 0.5
        %v2165 = vmul.f32 %v1653, 0.5
        %v2166 = vmul.f32 %v1654, 0.5
        %v2167 = vmul.f32 %v1655, 0.5
        %v2168 = vmul.f32 %v1656, 0.5
        %v2169 = vmul.f32 %v1657, 0.5
        %v2170 = vmul.f32 %v1658, 0.5
        %v2171 = vmul.f32 %v1659, 0.5
        %v2172 = vmul.f32 %v1660, 0.5
        %v2173 = vmul.f32 %v1661, 0.5
        %v2174 = vmul.f32 %v1662, 0.5
        %v2175 = vmul.f32 %v1663, 0.5
        %v2176 = vmul.f32 %v1664, 0.5
        %v2177 = vmul.f32 %v1665, 0.5
        %v2178 = vmul.f32 %v1666, 0.5
        %v2179 = vmul.f32 %v1667, 0.5
        %v2180 = vmul.f32 %v1668, 0.5
        %v2181 = vmul.f32 %v1669, 0.5
        %v2182 = vmul.f32 %v1670, 0.5
        %v2183 = vmul.f32 %v1671, 0.5
        %v2184 = vmul.f32 %v1672, 0.5
        %v2185 = vmul.f32 %v1673, 0.5
        %v2186 = vmul.f32 %v1674, 0.5
        %v2187 = vmul.f32 %v1675, 0.5
        %v2188 = vmul.f32 %v1676, 0.5
        %v2189 = vmul.f32 %v1677, 0.5
        %v2190 = vmul.f32 %v1678, 0.5
        %v2191 = vmul.f32 %v1679, 0.5
        %v2192 = vmul.f32 %v1680, 0.5
        %v2193 = vmul.f32 %v1681, 0.5
        %v2194 = vmul.f32 %v1682, 0.5
        %v2195 = vmul.f32 %v1683, 0.5
        %v2196 = vmul.f32 %v1684, 0.5
        %v2197 = vmul.f32 %v1685, 0.5
        %v2198 = vmul.f32 %v1686, 0.5
        %v2199 = vmul.f32 %v1687, 0.5
        %v2200 = vmul.f32 %v1688, 0.5
        %v2201 = vmul.f32 %v1689, 0.5
        %v2202 = vmul.f32 %v1690, 0.5
        %v2203 = vmul.f32 %v1691, 0.5
        %v2204 = vmul.f32 %v1692, 0.5
        %v2205 = vmul.f32 %v1693, 0.5
        %v2206 = vmul.f32 %v1694, 0.5
        %v2207 = vmul.f32 %v1695, 0.5
        %v2208 = vmul.f32 %v1696, 0.5
        %v2209 = vmul.f32 %v1697, 0.5
        %v2210 = vmul.f32 %v1698, 0.5
        %v2211 = vmul.f32 %v1699, 0.5
        %v2212 = vmul.f32 %v1700, 0.5
        %v2213 = vmul.f32 %v1701, 0.5
        %v2214 = vmul.f32 %v1702, 0.5
        %v2215 = vmul.f32 %v1703, 0.5
        %v2216 = vmul.f32 %v1704, 0.5
        %v2217 = vmul.f32 %v1705, 0.5
        %v2218 = vmul.f32 %v1706, 0.5
        %v2219 = vmul.f32 %v1707, 0.5
        %v2220 = vmul.f32 %v1708, 0.5
        %v2221 = vmul.f32 %v1709, 0.5
        %v2222 = vmul.f32 %v1710, 0.5
        %v2223 = vmul.f32 %v1711, 0.5
        %v2224 = vmul.f32 %v1712, 0.5
        %v2225 = vmul.f32 %v1713, 0.5
        %v2226 = vmul.f32 %v1714, 0.5
        %v2227 = vmul.f32 %v1715, 0.5
        %v2228 = vmul.f32 %v1716, 0.5
        %v2229 = vmul.f32 %v1717, 0.5
        %v2230 = vmul.f32 %v1718, 0.5
        %v2231 = vmul.f32 %v1719, 0.5
        %v2232 = vmul.f32 %v1720, 0.5
        %v2233 = vmul.f32 %v1721, 0.5
        %v2234 = vmul.f32 %v1722, 0.5
        %v2235 = vmul.f32 %v1723, 0.5
        %v2236 = vmul.f32 %v1724, 0.5
        %v2237 = vmul.f32 %v1725, 0.5
        %v2238 = vmul.f32 %v1726, 0.5
        %v2239 = vmul.f32 %v1727, 0.5
        %v2240 = vmul.f32 %v1728, 0.5
        %v2241 = vmul.f32 %v1729, 0.5
        %v2242 = vmul.f32 %v1730, 0.5
        %v2243 = vmul.f32 %v1731, 0.5
        %v2244 = vmul.f32 %v1732, 0.5
        %v2245 = vmul.f32 %v1733, 0.5
        %v2246 = vmul.f32 %v1734, 0.5
        %v2247 = vmul.f32 %v1735, 0.5
        %v2248 = vmul.f32 %v1736, 0.5
        %v2249 = vmul.f32 %v1737, 0.5
        %v2250 = vmul.f32 %v1738, 0.5
        %v2251 = vmul.f32 %v1739, 0.5
        %v2252 = vmul.f32 %v1740, 0.5
        %v2253 = vmul.f32 %v1741, 0.5
        %v2254 = vmul.f32 %v1742, 0.5
        %v2255 = vadd.f32 %v719, %v1743
        %v2256 = vadd.f32 %v720, %v1744
        %v2257 = vadd.f32 %v721, %v1745
        %v2258 = vadd.f32 %v722, %v1746
        %v2259 = vadd.f32 %v723, %v1747
        %v2260 = vadd.f32 %v724, %v1748
        %v2261 = vadd.f32 %v725, %v1749
        %v2262 = vadd.f32 %v726, %v1750
        %v2263 = vadd.f32 %v727, %v1751
        %v2264 = vadd.f32 %v728, %v1752
        %v2265 = vadd.f32 %v729, %v1753
        %v2266 = vadd.f32 %v730, %v1754
        %v2267 = vadd.f32 %v731, %v1755
        %v2268 = vadd.f32 %v732, %v1756
        %v2269 = vadd.f32 %v733, %v1757
        %v2270 = vadd.f32 %v734, %v1758
        %v2271 = vadd.f32 %v735, %v1759
        %v2272 = vadd.f32 %v736, %v1760
        %v2273 = vadd.f32 %v737, %v1761
        %v2274 = vadd.f32 %v738, %v1762
        %v2275 = vadd.f32 %v739, %v1763
        %v2276 = vadd.f32 %v740, %v1764
        %v2277 = vadd.f32 %v741, %v1765
        %v2278 = vadd.f32 %v742, %v1766
        %v2279 = vadd.f32 %v743, %v1767
        %v2280 = vadd.f32 %v744, %v1768
        %v2281 = vadd.f32 %v745, %v1769
        %v2282 = vadd.f32 %v746, %v1770
        %v2283 = vadd.f32 %v747, %v1771
        %v2284 = vadd.f32 %v748, %v1772
        %v2285 = vadd.f32 %v749, %v1773
        %v2286 = vadd.f32 %v750, %v1774
        %v2287 = vadd.f32 %v751, %v1775
        %v2288 = vadd.f32 %v752, %v1776
        %v2289 = vadd.f32 %v753, %v1777
        %v2290 = vadd.f32 %v754, %v1778
        %v2291 = vadd.f32 %v755, %v1779
        %v2292 = vadd.f32 %v756, %v1780
        %v2293 = vadd.f32 %v757, %v1781
        %v2294 = vadd.f32 %v758, %v1782
        %v2295 = vadd.f32 %v759, %v1783
        %v2296 = vadd.f32 %v760, %v1784
        %v2297 = vadd.f32 %v761, %v1785
        %v2298 = vadd.f32 %v762, %v1786
        %v2299 = vadd.f32 %v763, %v1787
        %v2300 = vadd.f32 %v764, %v1788
        %v2301 = vadd.f32 %v765, %v1789
        %v2302 = vadd.f32 %v766, %v1790
        %v2303 = vadd.f32 %v767, %v1791
        %v2304 = vadd.f32 %v768, %v1792
        %v2305 = vadd.f32 %v769, %v1793
        %v2306 = vadd.f32 %v770, %v1794
        %v2307 = vadd.f32 %v771, %v1795
        %v2308 = vadd.f32 %v772, %v1796
        %v2309 = vadd.f32 %v773, %v1797
        %v2310 = vadd.f32 %v774, %v1798
        %v2311 = vadd.f32 %v775, %v1799
        %v2312 = vadd.f32 %v776, %v1800
        %v2313 = vadd.f32 %v777, %v1801
        %v2314 = vadd.f32 %v778, %v1802
        %v2315 = vadd.f32 %v779, %v1803
        %v2316 = vadd.f32 %v780, %v1804
        %v2317 = vadd.f32 %v781, %v1805
        %v2318 = vadd.f32 %v782, %v1806
        %v2319 = vadd.f32 %v783, %v1807
        %v2320 = vadd.f32 %v784, %v1808
        %v2321 = vadd.f32 %v785, %v1809
        %v2322 = vadd.f32 %v786, %v1810
        %v2323 = vadd.f32 %v787, %v1811
        %v2324 = vadd.f32 %v788, %v1812
        %v2325 = vadd.f32 %v789, %v1813
        %v2326 = vadd.f32 %v790, %v1814
        %v2327 = vadd.f32 %v791, %v1815
        %v2328 = vadd.f32 %v792, %v1816
        %v2329 = vadd.f32 %v793, %v1817
        %v2330 = vadd.f32 %v794, %v1818
        %v2331 = vadd.f32 %v795, %v1819
        %v2332 = vadd.f32 %v796, %v1820
        %v2333 = vadd.f32 %v797, %v1821
        %v2334 = vadd.f32 %v798, %v1822
        %v2335 = vadd.f32 %v799, %v1823
        %v2336 = vadd.f32 %v800, %v1824
        %v2337 = vadd.f32 %v801, %v1825
        %v2338 = vadd.f32 %v802, %v1826
        %v2339 = vadd.f32 %v803, %v1827
        %v2340 = vadd.f32 %v804, %v1828
        %v2341 = vadd.f32 %v805, %v1829
        %v2342 = vadd.f32 %v806, %v1830
        %v2343 = vadd.f32 %v807, %v1831
        %v2344 = vadd.f32 %v808, %v1832
        %v2345 = vadd.f32 %v809, %v1833
        %v2346 = vadd.f32 %v810, %v1834
        %v2347 = vadd.f32 %v811, %v1835
        %v2348 = vadd.f32 %v812, %v1836
        %v2349 = vadd.f32 %v813, %v1837
        %v2350 = vadd.f32 %v814, %v1838
        %v2351 = vadd.f32 %v815, %v1839
        %v2352 = vadd.f32 %v816, %v1840
        %v2353 = vadd.f32 %v817, %v1841
        %v2354 = vadd.f32 %v818, %v1842
        %v2355 = vadd.f32 %v819, %v1843
        %v2356 = vadd.f32 %v820, %v1844
        %v2357 = vadd.f32 %v821, %v1845
        %v2358 = vadd.f32 %v822, %v1846
        %v2359 = vadd.f32 %v823, %v1847
        %v2360 = vadd.f32 %v824, %v1848
        %v2361 = vadd.f32 %v825, %v1849
        %v2362 = vadd.f32 %v826, %v1850
        %v2363 = vadd.f32 %v827, %v1851
        %v2364 = vadd.f32 %v828, %v1852
        %v2365 = vadd.f32 %v829, %v1853
        %v2366 = vadd.f32 %v830, %v1854
        %v2367 = vadd.f32 %v831, %v1855
        %v2368 = vadd.f32 %v832, %v1856
        %v2369 = vadd.f32 %v833, %v1857
        %v2370 = vadd.f32 %v834, %v1858
        %v2371 = vadd.f32 %v835, %v1859
        %v2372 = vadd.f32 %v836, %v1860
        %v2373 = vadd.f32 %v837, %v1861
        %v2374 = vadd.f32 %v838, %v1862
        %v2375 = vadd.f32 %v839, %v1863
        %v2376 = vadd.f32 %v840, %v1864
        %v2377 = vadd.f32 %v841, %v1865
        %v2378 = vadd.f32 %v842, %v1866
        %v2379 = vadd.f32 %v843, %v1867
        %v2380 = vadd.f32 %v844, %v1868
        %v2381 = vadd.f32 %v845, %v1869
        %v2382 = vadd.f32 %v846, %v1870
        %v2383 = vadd.f32 %v847, %v1871
        %v2384 = vadd.f32 %v848, %v1872
        %v2385 = vadd.f32 %v849, %v1873
        %v2386 = vadd.f32 %v850, %v1874
        %v2387 = vadd.f32 %v851, %v1875
        %v2388 = vadd.f32 %v852, %v1876
        %v2389 = vadd.f32 %v853, %v1877
        %v2390 = vadd.f32 %v854, %v1878
        %v2391 = vadd.f32 %v855, %v1879
        %v2392 = vadd.f32 %v856, %v1880
        %v2393 = vadd.f32 %v857, %v1881
        %v2394 = vadd.f32 %v858, %v1882
        %v2395 = vadd.f32 %v859, %v1883
        %v2396 = vadd.f32 %v860, %v1884
        %v2397 = vadd.f32 %v861, %v1885
        %v2398 = vadd.f32 %v862, %v1886
        %v2399 = vadd.f32 %v863, %v1887
        %v2400 = vadd.f32 %v864, %v1888
        %v2401 = vadd.f32 %v865, %v1889
        %v2402 = vadd.f32 %v866, %v1890
        %v2403 = vadd.f32 %v867, %v1891
        %v2404 = vadd.f32 %v868, %v1892
        %v2405 = vadd.f32 %v869, %v1893
        %v2406 = vadd.f32 %v870, %v1894
        %v2407 = vadd.f32 %v871, %v1895
        %v2408 = vadd.f32 %v872, %v1896
        %v2409 = vadd.f32 %v873, %v1897
        %v2410 = vadd.f32 %v874, %v1898
        %v2411 = vadd.f32 %v875, %v1899
        %v2412 = vadd.f32 %v876, %v1900
        %v2413 = vadd.f32 %v877, %v1901
        %v2414 = vadd.f32 %v878, %v1902
        %v2415 = vadd.f32 %v879, %v1903
        %v2416 = vadd.f32 %v880, %v1904
        %v2417 = vadd.f32 %v881, %v1905
        %v2418 = vadd.f32 %v882, %v1906
        %v2419 = vadd.f32 %v883, %v1907
        %v2420 = vadd.f32 %v884, %v1908
        %v2421 = vadd.f32 %v885, %v1909
        %v2422 = vadd.f32 %v886, %v1910
        %v2423 = vadd.f32 %v887, %v1911
        %v2424 = vadd.f32 %v888, %v1912
        %v2425 = vadd.f32 %v889, %v1913
        %v2426 = vadd.f32 %v890, %v1914
        %v2427 = vadd.f32 %v891, %v1915
        %v2428 = vadd.f32 %v892, %v1916
        %v2429 = vadd.f32 %v893, %v1917
        %v2430 = vadd.f32 %v894, %v1918
        %v2431 = vadd.f32 %v895, %v1919
        %v2432 = vadd.f32 %v896, %v1920
        %v2433 = vadd.f32 %v897, %v1921
        %v2434 = vadd.f32 %v898, %v1922
        %v2435 = vadd.f32 %v899, %v1923
        %v2436 = vadd.f32 %v900, %v1924
        %v2437 = vadd.f32 %v901, %v1925
        %v2438 = vadd.f32 %v902, %v1926
        %v2439 = vadd.f32 %v903, %v1927
        %v2440 = vadd.f32 %v904, %v1928
        %v2441 = vadd.f32 %v905, %v1929
        %v2442 = vadd.f32 %v906, %v1930
        %v2443 = vadd.f32 %v907, %v1931
        %v2444 = vadd.f32 %v908, %v1932
        %v2445 = vadd.f32 %v909, %v1933
        %v2446 = vadd.f32 %v910, %v1934
        %v2447 = vadd.f32 %v911, %v1935
        %v2448 = vadd.f32 %v912, %v1936
        %v2449 = vadd.f32 %v913, %v1937
        %v2450 = vadd.f32 %v914, %v1938
        %v2451 = vadd.f32 %v915, %v1939
        %v2452 = vadd.f32 %v916, %v1940
        %v2453 = vadd.f32 %v917, %v1941
        %v2454 = vadd.f32 %v918, %v1942
        %v2455 = vadd.f32 %v919, %v1943
        %v2456 = vadd.f32 %v920, %v1944
        %v2457 = vadd.f32 %v921, %v1945
        %v2458 = vadd.f32 %v922, %v1946
        %v2459 = vadd.f32 %v923, %v1947
        %v2460 = vadd.f32 %v924, %v1948
        %v2461 = vadd.f32 %v925, %v1949
        %v2462 = vadd.f32 %v926, %v1950
        %v2463 = vadd.f32 %v927, %v1951
        %v2464 = vadd.f32 %v928, %v1952
        %v2465 = vadd.f32 %v929, %v1953
        %v2466 = vadd.f32 %v930, %v1954
        %v2467 = vadd.f32 %v931, %v1955
        %v2468 = vadd.f32 %v932, %v1956
        %v2469 = vadd.f32 %v933, %v1957
        %v2470 = vadd.f32 %v934, %v1958
        %v2471 = vadd.f32 %v935, %v1959
        %v2472 = vadd.f32 %v936, %v1960
        %v2473 = vadd.f32 %v937, %v1961
        %v2474 = vadd.f32 %v938, %v1962
        %v2475 = vadd.f32 %v939, %v1963
        %v2476 = vadd.f32 %v940, %v1964
        %v2477 = vadd.f32 %v941, %v1965
        %v2478 = vadd.f32 %v942, %v1966
        %v2479 = vadd.f32 %v943, %v1967
        %v2480 = vadd.f32 %v944, %v1968
        %v2481 = vadd.f32 %v945, %v1969
        %v2482 = vadd.f32 %v946, %v1970
        %v2483 = vadd.f32 %v947, %v1971
        %v2484 = vadd.f32 %v948, %v1972
        %v2485 = vadd.f32 %v949, %v1973
        %v2486 = vadd.f32 %v950, %v1974
        %v2487 = vadd.f32 %v951, %v1975
        %v2488 = vadd.f32 %v952, %v1976
        %v2489 = vadd.f32 %v953, %v1977
        %v2490 = vadd.f32 %v954, %v1978
        %v2491 = vadd.f32 %v955, %v1979
        %v2492 = vadd.f32 %v956, %v1980
        %v2493 = vadd.f32 %v957, %v1981
        %v2494 = vadd.f32 %v958, %v1982
        %v2495 = vadd.f32 %v959, %v1983
        %v2496 = vadd.f32 %v960, %v1984
        %v2497 = vadd.f32 %v961, %v1985
        %v2498 = vadd.f32 %v962, %v1986
        %v2499 = vadd.f32 %v963, %v1987
        %v2500 = vadd.f32 %v964, %v1988
        %v2501 = vadd.f32 %v965, %v1989
        %v2502 = vadd.f32 %v966, %v1990
        %v2503 = vadd.f32 %v967, %v1991
        %v2504 = vadd.f32 %v968, %v1992
        %v2505 = vadd.f32 %v969, %v1993
        %v2506 = vadd.f32 %v970, %v1994
        %v2507 = vadd.f32 %v971, %v1995
        %v2508 = vadd.f32 %v972, %v1996
        %v2509 = vadd.f32 %v973, %v1997
        %v2510 = vadd.f32 %v974, %v1998
        %v2511 = vadd.f32 %v975, %v1999
        %v2512 = vadd.f32 %v976, %v2000
        %v2513 = vadd.f32 %v977, %v2001
        %v2514 = vadd.f32 %v978, %v2002
        %v2515 = vadd.f32 %v979, %v2003
        %v2516 = vadd.f32 %v980, %v2004
        %v2517 = vadd.f32 %v981, %v2005
        %v2518 = vadd.f32 %v982, %v2006
        %v2519 = vadd.f32 %v983, %v2007
        %v2520 = vadd.f32 %v984, %v2008
        %v2521 = vadd.f32 %v985, %v2009
        %v2522 = vadd.f32 %v986, %v2010
        %v2523 = vadd.f32 %v987, %v2011
        %v2524 = vadd.f32 %v988, %v2012
        %v2525 = vadd.f32 %v989, %v2013
        %v2526 = vadd.f32 %v990, %v2014
        %v2527 = vadd.f32 %v991, %v2015
        %v2528 = vadd.f32 %v992, %v2016
        %v2529 = vadd.f32 %v993, %v2017
        %v2530 = vadd.f32 %v994, %v2018
        %v2531 = vadd.f32 %v995, %v2019
        %v2532 = vadd.f32 %v996, %v2020
        %v2533 = vadd.f32 %v997, %v2021
        %v2534 = vadd.f32 %v998, %v2022
        %v2535 = vadd.f32 %v999, %v2023
        %v2536 = vadd.f32 %v1000, %v2024
        %v2537 = vadd.f32 %v1001, %v2025
        %v2538 = vadd.f32 %v1002, %v2026
        %v2539 = vadd.f32 %v1003, %v2027
        %v2540 = vadd.f32 %v1004, %v2028
        %v2541 = vadd.f32 %v1005, %v2029
        %v2542 = vadd.f32 %v1006, %v2030
        %v2543 = vadd.f32 %v1007, %v2031
        %v2544 = vadd.f32 %v1008, %v2032
        %v2545 = vadd.f32 %v1009, %v2033
        %v2546 = vadd.f32 %v1010, %v2034
        %v2547 = vadd.f32 %v1011, %v2035
        %v2548 = vadd.f32 %v1012, %v2036
        %v2549 = vadd.f32 %v1013, %v2037
        %v2550 = vadd.f32 %v1014, %v2038
        %v2551 = vadd.f32 %v1015, %v2039
        %v2552 = vadd.f32 %v1016, %v2040
        %v2553 = vadd.f32 %v1017, %v2041
        %v2554 = vadd.f32 %v1018, %v2042
        %v2555 = vadd.f32 %v1019, %v2043
        %v2556 = vadd.f32 %v1020, %v2044
        %v2557 = vadd.f32 %v1021, %v2045
        %v2558 = vadd.f32 %v1022, %v2046
        %v2559 = vadd.f32 %v1023, %v2047
        %v2560 = vadd.f32 %v1024, %v2048
        %v2561 = vadd.f32 %v1025, %v2049
        %v2562 = vadd.f32 %v1026, %v2050
        %v2563 = vadd.f32 %v1027, %v2051
        %v2564 = vadd.f32 %v1028, %v2052
        %v2565 = vadd.f32 %v1029, %v2053
        %v2566 = vadd.f32 %v1030, %v2054
        %v2567 = vadd.f32 %v1031, %v2055
        %v2568 = vadd.f32 %v1032, %v2056
        %v2569 = vadd.f32 %v1033, %v2057
        %v2570 = vadd.f32 %v1034, %v2058
        %v2571 = vadd.f32 %v1035, %v2059
        %v2572 = vadd.f32 %v1036, %v2060
        %v2573 = vadd.f32 %v1037, %v2061
        %v2574 = vadd.f32 %v1038, %v2062
        %v2575 = vadd.f32 %v1039, %v2063
        %v2576 = vadd.f32 %v1040, %v2064
        %v2577 = vadd.f32 %v1041, %v2065
        %v2578 = vadd.f32 %v1042, %v2066
        %v2579 = vadd.f32 %v1043, %v2067
        %v2580 = vadd.f32 %v1044, %v2068
        %v2581 = vadd.f32 %v1045, %v2069
        %v2582 = vadd.f32 %v1046, %v2070
        %v2583 = vadd.f32 %v1047, %v2071
        %v2584 = vadd.f32 %v1048, %v2072
        %v2585 = vadd.f32 %v1049, %v2073
        %v2586 = vadd.f32 %v1050, %v2074
        %v2587 = vadd.f32 %v1051, %v2075
        %v2588 = vadd.f32 %v1052, %v2076
        %v2589 = vadd.f32 %v1053, %v2077
        %v2590 = vadd.f32 %v1054, %v2078
        %v2591 = vadd.f32 %v1055, %v2079
        %v2592 = vadd.f32 %v1056, %v2080
        %v2593 = vadd.f32 %v1057, %v2081
        %v2594 = vadd.f32 %v1058, %v2082
        %v2595 = vadd.f32 %v1059, %v2083
        %v2596 = vadd.f32 %v1060, %v2084
        %v2597 = vadd.f32 %v1061, %v2085
        %v2598 = vadd.f32 %v1062, %v2086
        %v2599 = vadd.f32 %v1063, %v2087
        %v2600 = vadd.f32 %v1064, %v2088
        %v2601 = vadd.f32 %v1065, %v2089
        %v2602 = vadd.f32 %v1066, %v2090
        %v2603 = vadd.f32 %v1067, %v2091
        %v2604 = vadd.f32 %v1068, %v2092
        %v2605 = vadd.f32 %v1069, %v2093
        %v2606 = vadd.f32 %v1070, %v2094
        %v2607 = vadd.f32 %v1071, %v2095
        %v2608 = vadd.f32 %v1072, %v2096
        %v2609 = vadd.f32 %v1073, %v2097
        %v2610 = vadd.f32 %v1074, %v2098
        %v2611 = vadd.f32 %v1075, %v2099
        %v2612 = vadd.f32 %v1076, %v2100
        %v2613 = vadd.f32 %v1077, %v2101
        %v2614 = vadd.f32 %v1078, %v2102
        %v2615 = vadd.f32 %v1079, %v2103
        %v2616 = vadd.f32 %v1080, %v2104
        %v2617 = vadd.f32 %v1081, %v2105
        %v2618 = vadd.f32 %v1082, %v2106
        %v2619 = vadd.f32 %v1083, %v2107
        %v2620 = vadd.f32 %v1084, %v2108
        %v2621 = vadd.f32 %v1085, %v2109
        %v2622 = vadd.f32 %v1086, %v2110
        %v2623 = vadd.f32 %v1087, %v2111
        %v2624 = vadd.f32 %v1088, %v2112
        %v2625 = vadd.f32 %v1089, %v2113
        %v2626 = vadd.f32 %v1090, %v2114
        %v2627 = vadd.f32 %v1091, %v2115
        %v2628 = vadd.f32 %v1092, %v2116
        %v2629 = vadd.f32 %v1093, %v2117
        %v2630 = vadd.f32 %v1094, %v2118
        %v2631 = vadd.f32 %v1095, %v2119
        %v2632 = vadd.f32 %v1096, %v2120
        %v2633 = vadd.f32 %v1097, %v2121
        %v2634 = vadd.f32 %v1098, %v2122
        %v2635 = vadd.f32 %v1099, %v2123
        %v2636 = vadd.f32 %v1100, %v2124
        %v2637 = vadd.f32 %v1101, %v2125
        %v2638 = vadd.f32 %v1102, %v2126
        %v2639 = vadd.f32 %v1103, %v2127
        %v2640 = vadd.f32 %v1104, %v2128
        %v2641 = vadd.f32 %v1105, %v2129
        %v2642 = vadd.f32 %v1106, %v2130
        %v2643 = vadd.f32 %v1107, %v2131
        %v2644 = vadd.f32 %v1108, %v2132
        %v2645 = vadd.f32 %v1109, %v2133
        %v2646 = vadd.f32 %v1110, %v2134
        %v2647 = vadd.f32 %v1111, %v2135
        %v2648 = vadd.f32 %v1112, %v2136
        %v2649 = vadd.f32 %v1113, %v2137
        %v2650 = vadd.f32 %v1114, %v2138
        %v2651 = vadd.f32 %v1115, %v2139
        %v2652 = vadd.f32 %v1116, %v2140
        %v2653 = vadd.f32 %v1117, %v2141
        %v2654 = vadd.f32 %v1118, %v2142
        %v2655 = vadd.f32 %v1119, %v2143
        %v2656 = vadd.f32 %v1120, %v2144
        %v2657 = vadd.f32 %v1121, %v2145
        %v2658 = vadd.f32 %v1122, %v2146
        %v2659 = vadd.f32 %v1123, %v2147
        %v2660 = vadd.f32 %v1124, %v2148
        %v2661 = vadd.f32 %v1125, %v2149
        %v2662 = vadd.f32 %v1126, %v2150
        %v2663 = vadd.f32 %v1127, %v2151
        %v2664 = vadd.f32 %v1128, %v2152
        %v2665 = vadd.f32 %v1129, %v2153
        %v2666 = vadd.f32 %v1130, %v2154
        %v2667 = vadd.f32 %v1131, %v2155
        %v2668 = vadd.f32 %v1132, %v2156
        %v2669 = vadd.f32 %v1133, %v2157
        %v2670 = vadd.f32 %v1134, %v2158
        %v2671 = vadd.f32 %v1135, %v2159
        %v2672 = vadd.f32 %v1136, %v2160
        %v2673 = vadd.f32 %v1137, %v2161
        %v2674 = vadd.f32 %v1138, %v2162
        %v2675 = vadd.f32 %v1139, %v2163
        %v2676 = vadd.f32 %v1140, %v2164
        %v2677 = vadd.f32 %v1141, %v2165
        %v2678 = vadd.f32 %v1142, %v2166
        %v2679 = vadd.f32 %v1143, %v2167
        %v2680 = vadd.f32 %v1144, %v2168
        %v2681 = vadd.f32 %v1145, %v2169
        %v2682 = vadd.f32 %v1146, %v2170
        %v2683 = vadd.f32 %v1147, %v2171
        %v2684 = vadd.f32 %v1148, %v2172
        %v2685 = vadd.f32 %v1149, %v2173
        %v2686 = vadd.f32 %v1150, %v2174
        %v2687 = vadd.f32 %v1151, %v2175
        %v2688 = vadd.f32 %v1152, %v2176
        %v2689 = vadd.f32 %v1153, %v2177
        %v2690 = vadd.f32 %v1154, %v2178
        %v2691 = vadd.f32 %v1155, %v2179
        %v2692 = vadd.f32 %v1156, %v2180
        %v2693 = vadd.f32 %v1157, %v2181
        %v2694 = vadd.f32 %v1158, %v2182
        %v2695 = vadd.f32 %v1159, %v2183
        %v2696 = vadd.f32 %v1160, %v2184
        %v2697 = vadd.f32 %v1161, %v2185
        %v2698 = vadd.f32 %v1162, %v2186
        %v2699 = vadd.f32 %v1163, %v2187
        %v2700 = vadd.f32 %v1164, %v2188
        %v2701 = vadd.f32 %v1165, %v2189
        %v2702 = vadd.f32 %v1166, %v2190
        %v2703 = vadd.f32 %v1167, %v2191
        %v2704 = vadd.f32 %v1168, %v2192
        %v2705 = vadd.f32 %v1169, %v2193
        %v2706 = vadd.f32 %v1170, %v2194
        %v2707 = vadd.f32 %v1171, %v2195
        %v2708 = vadd.f32 %v1172, %v2196
        %v2709 = vadd.f32 %v1173, %v2197
        %v2710 = vadd.f32 %v1174, %v2198
        %v2711 = vadd.f32 %v1175, %v2199
        %v2712 = vadd.f32 %v1176, %v2200
        %v2713 = vadd.f32 %v1177, %v2201
        %v2714 = vadd.f32 %v1178, %v2202
        %v2715 = vadd.f32 %v1179, %v2203
        %v2716 = vadd.f32 %v1180, %v2204
        %v2717 = vadd.f32 %v1181, %v2205
        %v2718 = vadd.f32 %v1182, %v2206
        %v2719 = vadd.f32 %v1183, %v2207
        %v2720 = vadd.f32 %v1184, %v2208
        %v2721 = vadd.f32 %v1185, %v2209
        %v2722 = vadd.f32 %v1186, %v2210
        %v2723 = vadd.f32 %v1187, %v2211
        %v2724 = vadd.f32 %v1188, %v2212
        %v2725 = vadd.f32 %v1189, %v2213
        %v2726 = vadd.f32 %v1190, %v2214
        %v2727 = vadd.f32 %v1191, %v2215
        %v2728 = vadd.f32 %v1192, %v2216
        %v2729 = vadd.f32 %v1193, %v2217
        %v2730 = vadd.f32 %v1194, %v2218
        %v2731 = vadd.f32 %v1195, %v2219
        %v2732 = vadd.f32 %v1196, %v2220
        %v2733 = vadd.f32 %v1197, %v2221
        %v2734 = vadd.f32 %v1198, %v2222
        %v2735 = vadd.f32 %v1199, %v2223
        %v2736 = vadd.f32 %v1200, %v2224
        %v2737 = vadd.f32 %v1201, %v2225
        %v2738 = vadd.f32 %v1202, %v2226
        %v2739 = vadd.f32 %v1203, %v2227
        %v2740 = vadd.f32 %v1204, %v2228
        %v2741 = vadd.f32 %v1205, %v2229
        %v2742 = vadd.f32 %v1206, %v2230
        %v2743 = vadd.f32 %v1207, %v2231
        %v2744 = vadd.f32 %v1208, %v2232
        %v2745 = vadd.f32 %v1209, %v2233
        %v2746 = vadd.f32 %v1210, %v2234
        %v2747 = vadd.f32 %v1211, %v2235
        %v2748 = vadd.f32 %v1212, %v2236
        %v2749 = vadd.f32 %v1213, %v2237
        %v2750 = vadd.f32 %v1214, %v2238
        %v2751 = vadd.f32 %v1215, %v2239
        %v2752 = vadd.f32 %v1216, %v2240
        %v2753 = vadd.f32 %v1217, %v2241
        %v2754 = vadd.f32 %v1218, %v2242
        %v2755 = vadd.f32 %v1219, %v2243
        %v2756 = vadd.f32 %v1220, %v2244
        %v2757 = vadd.f32 %v1221, %v2245
        %v2758 = vadd.f32 %v1222, %v2246
        %v2759 = vadd.f32 %v1223, %v2247
        %v2760 = vadd.f32 %v1224, %v2248
        %v2761 = vadd.f32 %v1225, %v2249
        %v2762 = vadd.f32 %v1226, %v2250
        %v2763 = vadd.f32 %v1227, %v2251
        %v2764 = vadd.f32 %v1228, %v2252
        %v2765 = vadd.f32 %v1229, %v2253
        %v2766 = vadd.f32 %v1230, %v2254
        %2767 = vst [vmem:[%s203] sm:$0xff] %v2255
        %2768 = vst [vmem:[%s203 + $0x8] sm:$0xff] %v2256
        %2769 = vst [vmem:[%s203 + $0x10] sm:$0xff] %v2257
        %2770 = vst [vmem:[%s203 + $0x18] sm:$0xff] %v2258
        %2771 = vst [vmem:[%s203 + $0x20] sm:$0xff] %v2259
        %2772 = vst [vmem:[%s203 + $0x28] sm:$0xff] %v2260
        %2773 = vst [vmem:[%s203 + $0x30] sm:$0xff] %v2261
        %2774 = vst [vmem:[%s203 + $0x38] sm:$0xff] %v2262
        %2775 = vst [vmem:[%s203 + $0x40] sm:$0xff] %v2263
        %2776 = vst [vmem:[%s203 + $0x48] sm:$0xff] %v2264
        %2777 = vst [vmem:[%s203 + $0x50] sm:$0xff] %v2265
        %2778 = vst [vmem:[%s203 + $0x58] sm:$0xff] %v2266
        %2779 = vst [vmem:[%s203 + $0x60] sm:$0xff] %v2267
        %2780 = vst [vmem:[%s203 + $0x68] sm:$0xff] %v2268
        %2781 = vst [vmem:[%s203 + $0x70] sm:$0xff] %v2269
        %2782 = vst [vmem:[%s203 + $0x78] sm:$0xff] %v2270
        %2783 = vst [vmem:[%s203 + $0x80] sm:$0xff] %v2271
        %2784 = vst [vmem:[%s203 + $0x88] sm:$0xff] %v2272
        %2785 = vst [vmem:[%s203 + $0x90] sm:$0xff] %v2273
        %2786 = vst [vmem:[%s203 + $0x98] sm:$0xff] %v2274
        %2787 = vst [vmem:[%s203 + $0xa0] sm:$0xff] %v2275
        %2788 = vst [vmem:[%s203 + $0xa8] sm:$0xff] %v2276
        %2789 = vst [vmem:[%s203 + $0xb0] sm:$0xff] %v2277
        %2790 = vst [vmem:[%s203 + $0xb8] sm:$0xff] %v2278
        %2791 = vst [vmem:[%s203 + $0xc0] sm:$0xff] %v2279
        %2792 = vst [vmem:[%s203 + $0xc8] sm:$0xff] %v2280
        %2793 = vst [vmem:[%s203 + $0xd0] sm:$0xff] %v2281
        %2794 = vst [vmem:[%s203 + $0xd8] sm:$0xff] %v2282
        %2795 = vst [vmem:[%s203 + $0xe0] sm:$0xff] %v2283
        %2796 = vst [vmem:[%s203 + $0xe8] sm:$0xff] %v2284
        %2797 = vst [vmem:[%s203 + $0xf0] sm:$0xff] %v2285
        %2798 = vst [vmem:[%s203 + $0xf8] sm:$0xff] %v2286
        %2799 = vst [vmem:[%s203 + $0x100] sm:$0xff] %v2287
        %2800 = vst [vmem:[%s203 + $0x108] sm:$0xff] %v2288
        %2801 = vst [vmem:[%s203 + $0x110] sm:$0xff] %v2289
        %2802 = vst [vmem:[%s203 + $0x118] sm:$0xff] %v2290
        %2803 = vst [vmem:[%s203 + $0x120] sm:$0xff] %v2291
        %2804 = vst [vmem:[%s203 + $0x128] sm:$0xff] %v2292
        %2805 = vst [vmem:[%s203 + $0x130] sm:$0xff] %v2293
        %2806 = vst [vmem:[%s203 + $0x138] sm:$0xff] %v2294
        %2807 = vst [vmem:[%s203 + $0x140] sm:$0xff] %v2295
        %2808 = vst [vmem:[%s203 + $0x148] sm:$0xff] %v2296
        %2809 = vst [vmem:[%s203 + $0x150] sm:$0xff] %v2297
        %2810 = vst [vmem:[%s203 + $0x158] sm:$0xff] %v2298
        %2811 = vst [vmem:[%s203 + $0x160] sm:$0xff] %v2299
        %2812 = vst [vmem:[%s203 + $0x168] sm:$0xff] %v2300
        %2813 = vst [vmem:[%s203 + $0x170] sm:$0xff] %v2301
        %2814 = vst [vmem:[%s203 + $0x178] sm:$0xff] %v2302
        %2815 = vst [vmem:[%s203 + $0x180] sm:$0xff] %v2303
        %2816 = vst [vmem:[%s203 + $0x188] sm:$0xff] %v2304
        %2817 = vst [vmem:[%s203 + $0x190] sm:$0xff] %v2305
        %2818 = vst [vmem:[%s203 + $0x198] sm:$0xff] %v2306
        %2819 = vst [vmem:[%s203 + $0x1a0] sm:$0xff] %v2307
        %2820 = vst [vmem:[%s203 + $0x1a8] sm:$0xff] %v2308
        %2821 = vst [vmem:[%s203 + $0x1b0] sm:$0xff] %v2309
        %2822 = vst [vmem:[%s203 + $0x1b8] sm:$0xff] %v2310
        %2823 = vst [vmem:[%s203 + $0x1c0] sm:$0xff] %v2311
        %2824 = vst [vmem:[%s203 + $0x1c8] sm:$0xff] %v2312
        %2825 = vst [vmem:[%s203 + $0x1d0] sm:$0xff] %v2313
        %2826 = vst [vmem:[%s203 + $0x1d8] sm:$0xff] %v2314
        %2827 = vst [vmem:[%s203 + $0x1e0] sm:$0xff] %v2315
        %2828 = vst [vmem:[%s203 + $0x1e8] sm:$0xff] %v2316
        %2829 = vst [vmem:[%s203 + $0x1f0] sm:$0xff] %v2317
        %2830 = vst [vmem:[%s203 + $0x1f8] sm:$0xff] %v2318
        %2831 = vst [vmem:[%s203 + $0x200] sm:$0xff] %v2319
        %2832 = vst [vmem:[%s203 + $0x208] sm:$0xff] %v2320
        %2833 = vst [vmem:[%s203 + $0x210] sm:$0xff] %v2321
        %2834 = vst [vmem:[%s203 + $0x218] sm:$0xff] %v2322
        %2835 = vst [vmem:[%s203 + $0x220] sm:$0xff] %v2323
        %2836 = vst [vmem:[%s203 + $0x228] sm:$0xff] %v2324
        %2837 = vst [vmem:[%s203 + $0x230] sm:$0xff] %v2325
        %2838 = vst [vmem:[%s203 + $0x238] sm:$0xff] %v2326
        %2839 = vst [vmem:[%s203 + $0x240] sm:$0xff] %v2327
        %2840 = vst [vmem:[%s203 + $0x248] sm:$0xff] %v2328
        %2841 = vst [vmem:[%s203 + $0x250] sm:$0xff] %v2329
        %2842 = vst [vmem:[%s203 + $0x258] sm:$0xff] %v2330
        %2843 = vst [vmem:[%s203 + $0x260] sm:$0xff] %v2331
        %2844 = vst [vmem:[%s203 + $0x268] sm:$0xff] %v2332
        %2845 = vst [vmem:[%s203 + $0x270] sm:$0xff] %v2333
        %2846 = vst [vmem:[%s203 + $0x278] sm:$0xff] %v2334
        %2847 = vst [vmem:[%s203 + $0x280] sm:$0xff] %v2335
        %2848 = vst [vmem:[%s203 + $0x288] sm:$0xff] %v2336
        %2849 = vst [vmem:[%s203 + $0x290] sm:$0xff] %v2337
        %2850 = vst [vmem:[%s203 + $0x298] sm:$0xff] %v2338
        %2851 = vst [vmem:[%s203 + $0x2a0] sm:$0xff] %v2339
        %2852 = vst [vmem:[%s203 + $0x2a8] sm:$0xff] %v2340
        %2853 = vst [vmem:[%s203 + $0x2b0] sm:$0xff] %v2341
        %2854 = vst [vmem:[%s203 + $0x2b8] sm:$0xff] %v2342
        %2855 = vst [vmem:[%s203 + $0x2c0] sm:$0xff] %v2343
        %2856 = vst [vmem:[%s203 + $0x2c8] sm:$0xff] %v2344
        %2857 = vst [vmem:[%s203 + $0x2d0] sm:$0xff] %v2345
        %2858 = vst [vmem:[%s203 + $0x2d8] sm:$0xff] %v2346
        %2859 = vst [vmem:[%s203 + $0x2e0] sm:$0xff] %v2347
        %2860 = vst [vmem:[%s203 + $0x2e8] sm:$0xff] %v2348
        %2861 = vst [vmem:[%s203 + $0x2f0] sm:$0xff] %v2349
        %2862 = vst [vmem:[%s203 + $0x2f8] sm:$0xff] %v2350
        %2863 = vst [vmem:[%s203 + $0x300] sm:$0xff] %v2351
        %2864 = vst [vmem:[%s203 + $0x308] sm:$0xff] %v2352
        %2865 = vst [vmem:[%s203 + $0x310] sm:$0xff] %v2353
        %2866 = vst [vmem:[%s203 + $0x318] sm:$0xff] %v2354
        %2867 = vst [vmem:[%s203 + $0x320] sm:$0xff] %v2355
        %2868 = vst [vmem:[%s203 + $0x328] sm:$0xff] %v2356
        %2869 = vst [vmem:[%s203 + $0x330] sm:$0xff] %v2357
        %2870 = vst [vmem:[%s203 + $0x338] sm:$0xff] %v2358
        %2871 = vst [vmem:[%s203 + $0x340] sm:$0xff] %v2359
        %2872 = vst [vmem:[%s203 + $0x348] sm:$0xff] %v2360
        %2873 = vst [vmem:[%s203 + $0x350] sm:$0xff] %v2361
        %2874 = vst [vmem:[%s203 + $0x358] sm:$0xff] %v2362
        %2875 = vst [vmem:[%s203 + $0x360] sm:$0xff] %v2363
        %2876 = vst [vmem:[%s203 + $0x368] sm:$0xff] %v2364
        %2877 = vst [vmem:[%s203 + $0x370] sm:$0xff] %v2365
        %2878 = vst [vmem:[%s203 + $0x378] sm:$0xff] %v2366
        %2879 = vst [vmem:[%s203 + $0x380] sm:$0xff] %v2367
        %2880 = vst [vmem:[%s203 + $0x388] sm:$0xff] %v2368
        %2881 = vst [vmem:[%s203 + $0x390] sm:$0xff] %v2369
        %2882 = vst [vmem:[%s203 + $0x398] sm:$0xff] %v2370
        %2883 = vst [vmem:[%s203 + $0x3a0] sm:$0xff] %v2371
        %2884 = vst [vmem:[%s203 + $0x3a8] sm:$0xff] %v2372
        %2885 = vst [vmem:[%s203 + $0x3b0] sm:$0xff] %v2373
        %2886 = vst [vmem:[%s203 + $0x3b8] sm:$0xff] %v2374
        %2887 = vst [vmem:[%s203 + $0x3c0] sm:$0xff] %v2375
        %2888 = vst [vmem:[%s203 + $0x3c8] sm:$0xff] %v2376
        %2889 = vst [vmem:[%s203 + $0x3d0] sm:$0xff] %v2377
        %2890 = vst [vmem:[%s203 + $0x3d8] sm:$0xff] %v2378
        %2891 = vst [vmem:[%s203 + $0x3e0] sm:$0xff] %v2379
        %2892 = vst [vmem:[%s203 + $0x3e8] sm:$0xff] %v2380
        %2893 = vst [vmem:[%s203 + $0x3f0] sm:$0xff] %v2381
        %2894 = vst [vmem:[%s203 + $0x3f8] sm:$0xff] %v2382
        %2895 = vst [vmem:[%s203 + $0x400] sm:$0xff] %v2383
        %2896 = vst [vmem:[%s203 + $0x408] sm:$0xff] %v2384
        %2897 = vst [vmem:[%s203 + $0x410] sm:$0xff] %v2385
        %2898 = vst [vmem:[%s203 + $0x418] sm:$0xff] %v2386
        %2899 = vst [vmem:[%s203 + $0x420] sm:$0xff] %v2387
        %2900 = vst [vmem:[%s203 + $0x428] sm:$0xff] %v2388
        %2901 = vst [vmem:[%s203 + $0x430] sm:$0xff] %v2389
        %2902 = vst [vmem:[%s203 + $0x438] sm:$0xff] %v2390
        %2903 = vst [vmem:[%s203 + $0x440] sm:$0xff] %v2391
        %2904 = vst [vmem:[%s203 + $0x448] sm:$0xff] %v2392
        %2905 = vst [vmem:[%s203 + $0x450] sm:$0xff] %v2393
        %2906 = vst [vmem:[%s203 + $0x458] sm:$0xff] %v2394
        %2907 = vst [vmem:[%s203 + $0x460] sm:$0xff] %v2395
        %2908 = vst [vmem:[%s203 + $0x468] sm:$0xff] %v2396
        %2909 = vst [vmem:[%s203 + $0x470] sm:$0xff] %v2397
        %2910 = vst [vmem:[%s203 + $0x478] sm:$0xff] %v2398
        %2911 = vst [vmem:[%s203 + $0x480] sm:$0xff] %v2399
        %2912 = vst [vmem:[%s203 + $0x488] sm:$0xff] %v2400
        %2913 = vst [vmem:[%s203 + $0x490] sm:$0xff] %v2401
        %2914 = vst [vmem:[%s203 + $0x498] sm:$0xff] %v2402
        %2915 = vst [vmem:[%s203 + $0x4a0] sm:$0xff] %v2403
        %2916 = vst [vmem:[%s203 + $0x4a8] sm:$0xff] %v2404
        %2917 = vst [vmem:[%s203 + $0x4b0] sm:$0xff] %v2405
        %2918 = vst [vmem:[%s203 + $0x4b8] sm:$0xff] %v2406
        %2919 = vst [vmem:[%s203 + $0x4c0] sm:$0xff] %v2407
        %2920 = vst [vmem:[%s203 + $0x4c8] sm:$0xff] %v2408
        %2921 = vst [vmem:[%s203 + $0x4d0] sm:$0xff] %v2409
        %2922 = vst [vmem:[%s203 + $0x4d8] sm:$0xff] %v2410
        %2923 = vst [vmem:[%s203 + $0x4e0] sm:$0xff] %v2411
        %2924 = vst [vmem:[%s203 + $0x4e8] sm:$0xff] %v2412
        %2925 = vst [vmem:[%s203 + $0x4f0] sm:$0xff] %v2413
        %2926 = vst [vmem:[%s203 + $0x4f8] sm:$0xff] %v2414
        %2927 = vst [vmem:[%s203 + $0x500] sm:$0xff] %v2415
        %2928 = vst [vmem:[%s203 + $0x508] sm:$0xff] %v2416
        %2929 = vst [vmem:[%s203 + $0x510] sm:$0xff] %v2417
        %2930 = vst [vmem:[%s203 + $0x518] sm:$0xff] %v2418
        %2931 = vst [vmem:[%s203 + $0x520] sm:$0xff] %v2419
        %2932 = vst [vmem:[%s203 + $0x528] sm:$0xff] %v2420
        %2933 = vst [vmem:[%s203 + $0x530] sm:$0xff] %v2421
        %2934 = vst [vmem:[%s203 + $0x538] sm:$0xff] %v2422
        %2935 = vst [vmem:[%s203 + $0x540] sm:$0xff] %v2423
        %2936 = vst [vmem:[%s203 + $0x548] sm:$0xff] %v2424
        %2937 = vst [vmem:[%s203 + $0x550] sm:$0xff] %v2425
        %2938 = vst [vmem:[%s203 + $0x558] sm:$0xff] %v2426
        %2939 = vst [vmem:[%s203 + $0x560] sm:$0xff] %v2427
        %2940 = vst [vmem:[%s203 + $0x568] sm:$0xff] %v2428
        %2941 = vst [vmem:[%s203 + $0x570] sm:$0xff] %v2429
        %2942 = vst [vmem:[%s203 + $0x578] sm:$0xff] %v2430
        %2943 = vst [vmem:[%s203 + $0x580] sm:$0xff] %v2431
        %2944 = vst [vmem:[%s203 + $0x588] sm:$0xff] %v2432
        %2945 = vst [vmem:[%s203 + $0x590] sm:$0xff] %v2433
        %2946 = vst [vmem:[%s203 + $0x598] sm:$0xff] %v2434
        %2947 = vst [vmem:[%s203 + $0x5a0] sm:$0xff] %v2435
        %2948 = vst [vmem:[%s203 + $0x5a8] sm:$0xff] %v2436
        %2949 = vst [vmem:[%s203 + $0x5b0] sm:$0xff] %v2437
        %2950 = vst [vmem:[%s203 + $0x5b8] sm:$0xff] %v2438
        %2951 = vst [vmem:[%s203 + $0x5c0] sm:$0xff] %v2439
        %2952 = vst [vmem:[%s203 + $0x5c8] sm:$0xff] %v2440
        %2953 = vst [vmem:[%s203 + $0x5d0] sm:$0xff] %v2441
        %2954 = vst [vmem:[%s203 + $0x5d8] sm:$0xff] %v2442
        %2955 = vst [vmem:[%s203 + $0x5e0] sm:$0xff] %v2443
        %2956 = vst [vmem:[%s203 + $0x5e8] sm:$0xff] %v2444
        %2957 = vst [vmem:[%s203 + $0x5f0] sm:$0xff] %v2445
        %2958 = vst [vmem:[%s203 + $0x5f8] sm:$0xff] %v2446
        %2959 = vst [vmem:[%s203 + $0x600] sm:$0xff] %v2447
        %2960 = vst [vmem:[%s203 + $0x608] sm:$0xff] %v2448
        %2961 = vst [vmem:[%s203 + $0x610] sm:$0xff] %v2449
        %2962 = vst [vmem:[%s203 + $0x618] sm:$0xff] %v2450
        %2963 = vst [vmem:[%s203 + $0x620] sm:$0xff] %v2451
        %2964 = vst [vmem:[%s203 + $0x628] sm:$0xff] %v2452
        %2965 = vst [vmem:[%s203 + $0x630] sm:$0xff] %v2453
        %2966 = vst [vmem:[%s203 + $0x638] sm:$0xff] %v2454
        %2967 = vst [vmem:[%s203 + $0x640] sm:$0xff] %v2455
        %2968 = vst [vmem:[%s203 + $0x648] sm:$0xff] %v2456
        %2969 = vst [vmem:[%s203 + $0x650] sm:$0xff] %v2457
        %2970 = vst [vmem:[%s203 + $0x658] sm:$0xff] %v2458
        %2971 = vst [vmem:[%s203 + $0x660] sm:$0xff] %v2459
        %2972 = vst [vmem:[%s203 + $0x668] sm:$0xff] %v2460
        %2973 = vst [vmem:[%s203 + $0x670] sm:$0xff] %v2461
        %2974 = vst [vmem:[%s203 + $0x678] sm:$0xff] %v2462
        %2975 = vst [vmem:[%s203 + $0x680] sm:$0xff] %v2463
        %2976 = vst [vmem:[%s203 + $0x688] sm:$0xff] %v2464
        %2977 = vst [vmem:[%s203 + $0x690] sm:$0xff] %v2465
        %2978 = vst [vmem:[%s203 + $0x698] sm:$0xff] %v2466
        %2979 = vst [vmem:[%s203 + $0x6a0] sm:$0xff] %v2467
        %2980 = vst [vmem:[%s203 + $0x6a8] sm:$0xff] %v2468
        %2981 = vst [vmem:[%s203 + $0x6b0] sm:$0xff] %v2469
        %2982 = vst [vmem:[%s203 + $0x6b8] sm:$0xff] %v2470
        %2983 = vst [vmem:[%s203 + $0x6c0] sm:$0xff] %v2471
        %2984 = vst [vmem:[%s203 + $0x6c8] sm:$0xff] %v2472
        %2985 = vst [vmem:[%s203 + $0x6d0] sm:$0xff] %v2473
        %2986 = vst [vmem:[%s203 + $0x6d8] sm:$0xff] %v2474
        %2987 = vst [vmem:[%s203 + $0x6e0] sm:$0xff] %v2475
        %2988 = vst [vmem:[%s203 + $0x6e8] sm:$0xff] %v2476
        %2989 = vst [vmem:[%s203 + $0x6f0] sm:$0xff] %v2477
        %2990 = vst [vmem:[%s203 + $0x6f8] sm:$0xff] %v2478
        %2991 = vst [vmem:[%s203 + $0x700] sm:$0xff] %v2479
        %2992 = vst [vmem:[%s203 + $0x708] sm:$0xff] %v2480
        %2993 = vst [vmem:[%s203 + $0x710] sm:$0xff] %v2481
        %2994 = vst [vmem:[%s203 + $0x718] sm:$0xff] %v2482
        %2995 = vst [vmem:[%s203 + $0x720] sm:$0xff] %v2483
        %2996 = vst [vmem:[%s203 + $0x728] sm:$0xff] %v2484
        %2997 = vst [vmem:[%s203 + $0x730] sm:$0xff] %v2485
        %2998 = vst [vmem:[%s203 + $0x738] sm:$0xff] %v2486
        %2999 = vst [vmem:[%s203 + $0x740] sm:$0xff] %v2487
        %3000 = vst [vmem:[%s203 + $0x748] sm:$0xff] %v2488
        %3001 = vst [vmem:[%s203 + $0x750] sm:$0xff] %v2489
        %3002 = vst [vmem:[%s203 + $0x758] sm:$0xff] %v2490
        %3003 = vst [vmem:[%s203 + $0x760] sm:$0xff] %v2491
        %3004 = vst [vmem:[%s203 + $0x768] sm:$0xff] %v2492
        %3005 = vst [vmem:[%s203 + $0x770] sm:$0xff] %v2493
        %3006 = vst [vmem:[%s203 + $0x778] sm:$0xff] %v2494
        %3007 = vst [vmem:[%s203 + $0x780] sm:$0xff] %v2495
        %3008 = vst [vmem:[%s203 + $0x788] sm:$0xff] %v2496
        %3009 = vst [vmem:[%s203 + $0x790] sm:$0xff] %v2497
        %3010 = vst [vmem:[%s203 + $0x798] sm:$0xff] %v2498
        %3011 = vst [vmem:[%s203 + $0x7a0] sm:$0xff] %v2499
        %3012 = vst [vmem:[%s203 + $0x7a8] sm:$0xff] %v2500
        %3013 = vst [vmem:[%s203 + $0x7b0] sm:$0xff] %v2501
        %3014 = vst [vmem:[%s203 + $0x7b8] sm:$0xff] %v2502
        %3015 = vst [vmem:[%s203 + $0x7c0] sm:$0xff] %v2503
        %3016 = vst [vmem:[%s203 + $0x7c8] sm:$0xff] %v2504
        %3017 = vst [vmem:[%s203 + $0x7d0] sm:$0xff] %v2505
        %3018 = vst [vmem:[%s203 + $0x7d8] sm:$0xff] %v2506
        %3019 = vst [vmem:[%s203 + $0x7e0] sm:$0xff] %v2507
        %3020 = vst [vmem:[%s203 + $0x7e8] sm:$0xff] %v2508
        %3021 = vst [vmem:[%s203 + $0x7f0] sm:$0xff] %v2509
        %3022 = vst [vmem:[%s203 + $0x7f8] sm:$0xff] %v2510
        %3023 = vst [vmem:[%s203 + $0x800] sm:$0xff] %v2511
        %3024 = vst [vmem:[%s203 + $0x808] sm:$0xff] %v2512
        %3025 = vst [vmem:[%s203 + $0x810] sm:$0xff] %v2513
        %3026 = vst [vmem:[%s203 + $0x818] sm:$0xff] %v2514
        %3027 = vst [vmem:[%s203 + $0x820] sm:$0xff] %v2515
        %3028 = vst [vmem:[%s203 + $0x828] sm:$0xff] %v2516
        %3029 = vst [vmem:[%s203 + $0x830] sm:$0xff] %v2517
        %3030 = vst [vmem:[%s203 + $0x838] sm:$0xff] %v2518
        %3031 = vst [vmem:[%s203 + $0x840] sm:$0xff] %v2519
        %3032 = vst [vmem:[%s203 + $0x848] sm:$0xff] %v2520
        %3033 = vst [vmem:[%s203 + $0x850] sm:$0xff] %v2521
        %3034 = vst [vmem:[%s203 + $0x858] sm:$0xff] %v2522
        %3035 = vst [vmem:[%s203 + $0x860] sm:$0xff] %v2523
        %3036 = vst [vmem:[%s203 + $0x868] sm:$0xff] %v2524
        %3037 = vst [vmem:[%s203 + $0x870] sm:$0xff] %v2525
        %3038 = vst [vmem:[%s203 + $0x878] sm:$0xff] %v2526
        %3039 = vst [vmem:[%s203 + $0x880] sm:$0xff] %v2527
        %3040 = vst [vmem:[%s203 + $0x888] sm:$0xff] %v2528
        %3041 = vst [vmem:[%s203 + $0x890] sm:$0xff] %v2529
        %3042 = vst [vmem:[%s203 + $0x898] sm:$0xff] %v2530
        %3043 = vst [vmem:[%s203 + $0x8a0] sm:$0xff] %v2531
        %3044 = vst [vmem:[%s203 + $0x8a8] sm:$0xff] %v2532
        %3045 = vst [vmem:[%s203 + $0x8b0] sm:$0xff] %v2533
        %3046 = vst [vmem:[%s203 + $0x8b8] sm:$0xff] %v2534
        %3047 = vst [vmem:[%s203 + $0x8c0] sm:$0xff] %v2535
        %3048 = vst [vmem:[%s203 + $0x8c8] sm:$0xff] %v2536
        %3049 = vst [vmem:[%s203 + $0x8d0] sm:$0xff] %v2537
        %3050 = vst [vmem:[%s203 + $0x8d8] sm:$0xff] %v2538
        %3051 = vst [vmem:[%s203 + $0x8e0] sm:$0xff] %v2539
        %3052 = vst [vmem:[%s203 + $0x8e8] sm:$0xff] %v2540
        %3053 = vst [vmem:[%s203 + $0x8f0] sm:$0xff] %v2541
        %3054 = vst [vmem:[%s203 + $0x8f8] sm:$0xff] %v2542
        %3055 = vst [vmem:[%s203 + $0x900] sm:$0xff] %v2543
        %3056 = vst [vmem:[%s203 + $0x908] sm:$0xff] %v2544
        %3057 = vst [vmem:[%s203 + $0x910] sm:$0xff] %v2545
        %3058 = vst [vmem:[%s203 + $0x918] sm:$0xff] %v2546
        %3059 = vst [vmem:[%s203 + $0x920] sm:$0xff] %v2547
        %3060 = vst [vmem:[%s203 + $0x928] sm:$0xff] %v2548
        %3061 = vst [vmem:[%s203 + $0x930] sm:$0xff] %v2549
        %3062 = vst [vmem:[%s203 + $0x938] sm:$0xff] %v2550
        %3063 = vst [vmem:[%s203 + $0x940] sm:$0xff] %v2551
        %3064 = vst [vmem:[%s203 + $0x948] sm:$0xff] %v2552
        %3065 = vst [vmem:[%s203 + $0x950] sm:$0xff] %v2553
        %3066 = vst [vmem:[%s203 + $0x958] sm:$0xff] %v2554
        %3067 = vst [vmem:[%s203 + $0x960] sm:$0xff] %v2555
        %3068 = vst [vmem:[%s203 + $0x968] sm:$0xff] %v2556
        %3069 = vst [vmem:[%s203 + $0x970] sm:$0xff] %v2557
        %3070 = vst [vmem:[%s203 + $0x978] sm:$0xff] %v2558
        %3071 = vst [vmem:[%s203 + $0x980] sm:$0xff] %v2559
        %3072 = vst [vmem:[%s203 + $0x988] sm:$0xff] %v2560
        %3073 = vst [vmem:[%s203 + $0x990] sm:$0xff] %v2561
        %3074 = vst [vmem:[%s203 + $0x998] sm:$0xff] %v2562
        %3075 = vst [vmem:[%s203 + $0x9a0] sm:$0xff] %v2563
        %3076 = vst [vmem:[%s203 + $0x9a8] sm:$0xff] %v2564
        %3077 = vst [vmem:[%s203 + $0x9b0] sm:$0xff] %v2565
        %3078 = vst [vmem:[%s203 + $0x9b8] sm:$0xff] %v2566
        %3079 = vst [vmem:[%s203 + $0x9c0] sm:$0xff] %v2567
        %3080 = vst [vmem:[%s203 + $0x9c8] sm:$0xff] %v2568
        %3081 = vst [vmem:[%s203 + $0x9d0] sm:$0xff] %v2569
        %3082 = vst [vmem:[%s203 + $0x9d8] sm:$0xff] %v2570
        %3083 = vst [vmem:[%s203 + $0x9e0] sm:$0xff] %v2571
        %3084 = vst [vmem:[%s203 + $0x9e8] sm:$0xff] %v2572
        %3085 = vst [vmem:[%s203 + $0x9f0] sm:$0xff] %v2573
        %3086 = vst [vmem:[%s203 + $0x9f8] sm:$0xff] %v2574
        %3087 = vst [vmem:[%s203 + $0xa00] sm:$0xff] %v2575
        %3088 = vst [vmem:[%s203 + $0xa08] sm:$0xff] %v2576
        %3089 = vst [vmem:[%s203 + $0xa10] sm:$0xff] %v2577
        %3090 = vst [vmem:[%s203 + $0xa18] sm:$0xff] %v2578
        %3091 = vst [vmem:[%s203 + $0xa20] sm:$0xff] %v2579
        %3092 = vst [vmem:[%s203 + $0xa28] sm:$0xff] %v2580
        %3093 = vst [vmem:[%s203 + $0xa30] sm:$0xff] %v2581
        %3094 = vst [vmem:[%s203 + $0xa38] sm:$0xff] %v2582
        %3095 = vst [vmem:[%s203 + $0xa40] sm:$0xff] %v2583
        %3096 = vst [vmem:[%s203 + $0xa48] sm:$0xff] %v2584
        %3097 = vst [vmem:[%s203 + $0xa50] sm:$0xff] %v2585
        %3098 = vst [vmem:[%s203 + $0xa58] sm:$0xff] %v2586
        %3099 = vst [vmem:[%s203 + $0xa60] sm:$0xff] %v2587
        %3100 = vst [vmem:[%s203 + $0xa68] sm:$0xff] %v2588
        %3101 = vst [vmem:[%s203 + $0xa70] sm:$0xff] %v2589
        %3102 = vst [vmem:[%s203 + $0xa78] sm:$0xff] %v2590
        %3103 = vst [vmem:[%s203 + $0xa80] sm:$0xff] %v2591
        %3104 = vst [vmem:[%s203 + $0xa88] sm:$0xff] %v2592
        %3105 = vst [vmem:[%s203 + $0xa90] sm:$0xff] %v2593
        %3106 = vst [vmem:[%s203 + $0xa98] sm:$0xff] %v2594
        %3107 = vst [vmem:[%s203 + $0xaa0] sm:$0xff] %v2595
        %3108 = vst [vmem:[%s203 + $0xaa8] sm:$0xff] %v2596
        %3109 = vst [vmem:[%s203 + $0xab0] sm:$0xff] %v2597
        %3110 = vst [vmem:[%s203 + $0xab8] sm:$0xff] %v2598
        %3111 = vst [vmem:[%s203 + $0xac0] sm:$0xff] %v2599
        %3112 = vst [vmem:[%s203 + $0xac8] sm:$0xff] %v2600
        %3113 = vst [vmem:[%s203 + $0xad0] sm:$0xff] %v2601
        %3114 = vst [vmem:[%s203 + $0xad8] sm:$0xff] %v2602
        %3115 = vst [vmem:[%s203 + $0xae0] sm:$0xff] %v2603
        %3116 = vst [vmem:[%s203 + $0xae8] sm:$0xff] %v2604
        %3117 = vst [vmem:[%s203 + $0xaf0] sm:$0xff] %v2605
        %3118 = vst [vmem:[%s203 + $0xaf8] sm:$0xff] %v2606
        %3119 = vst [vmem:[%s203 + $0xb00] sm:$0xff] %v2607
        %3120 = vst [vmem:[%s203 + $0xb08] sm:$0xff] %v2608
        %3121 = vst [vmem:[%s203 + $0xb10] sm:$0xff] %v2609
        %3122 = vst [vmem:[%s203 + $0xb18] sm:$0xff] %v2610
        %3123 = vst [vmem:[%s203 + $0xb20] sm:$0xff] %v2611
        %3124 = vst [vmem:[%s203 + $0xb28] sm:$0xff] %v2612
        %3125 = vst [vmem:[%s203 + $0xb30] sm:$0xff] %v2613
        %3126 = vst [vmem:[%s203 + $0xb38] sm:$0xff] %v2614
        %3127 = vst [vmem:[%s203 + $0xb40] sm:$0xff] %v2615
        %3128 = vst [vmem:[%s203 + $0xb48] sm:$0xff] %v2616
        %3129 = vst [vmem:[%s203 + $0xb50] sm:$0xff] %v2617
        %3130 = vst [vmem:[%s203 + $0xb58] sm:$0xff] %v2618
        %3131 = vst [vmem:[%s203 + $0xb60] sm:$0xff] %v2619
        %3132 = vst [vmem:[%s203 + $0xb68] sm:$0xff] %v2620
        %3133 = vst [vmem:[%s203 + $0xb70] sm:$0xff] %v2621
        %3134 = vst [vmem:[%s203 + $0xb78] sm:$0xff] %v2622
        %3135 = vst [vmem:[%s203 + $0xb80] sm:$0xff] %v2623
        %3136 = vst [vmem:[%s203 + $0xb88] sm:$0xff] %v2624
        %3137 = vst [vmem:[%s203 + $0xb90] sm:$0xff] %v2625
        %3138 = vst [vmem:[%s203 + $0xb98] sm:$0xff] %v2626
        %3139 = vst [vmem:[%s203 + $0xba0] sm:$0xff] %v2627
        %3140 = vst [vmem:[%s203 + $0xba8] sm:$0xff] %v2628
        %3141 = vst [vmem:[%s203 + $0xbb0] sm:$0xff] %v2629
        %3142 = vst [vmem:[%s203 + $0xbb8] sm:$0xff] %v2630
        %3143 = vst [vmem:[%s203 + $0xbc0] sm:$0xff] %v2631
        %3144 = vst [vmem:[%s203 + $0xbc8] sm:$0xff] %v2632
        %3145 = vst [vmem:[%s203 + $0xbd0] sm:$0xff] %v2633
        %3146 = vst [vmem:[%s203 + $0xbd8] sm:$0xff] %v2634
        %3147 = vst [vmem:[%s203 + $0xbe0] sm:$0xff] %v2635
        %3148 = vst [vmem:[%s203 + $0xbe8] sm:$0xff] %v2636
        %3149 = vst [vmem:[%s203 + $0xbf0] sm:$0xff] %v2637
        %3150 = vst [vmem:[%s203 + $0xbf8] sm:$0xff] %v2638
        %3151 = vst [vmem:[%s203 + $0xc00] sm:$0xff] %v2639
        %3152 = vst [vmem:[%s203 + $0xc08] sm:$0xff] %v2640
        %3153 = vst [vmem:[%s203 + $0xc10] sm:$0xff] %v2641
        %3154 = vst [vmem:[%s203 + $0xc18] sm:$0xff] %v2642
        %3155 = vst [vmem:[%s203 + $0xc20] sm:$0xff] %v2643
        %3156 = vst [vmem:[%s203 + $0xc28] sm:$0xff] %v2644
        %3157 = vst [vmem:[%s203 + $0xc30] sm:$0xff] %v2645
        %3158 = vst [vmem:[%s203 + $0xc38] sm:$0xff] %v2646
        %3159 = vst [vmem:[%s203 + $0xc40] sm:$0xff] %v2647
        %3160 = vst [vmem:[%s203 + $0xc48] sm:$0xff] %v2648
        %3161 = vst [vmem:[%s203 + $0xc50] sm:$0xff] %v2649
        %3162 = vst [vmem:[%s203 + $0xc58] sm:$0xff] %v2650
        %3163 = vst [vmem:[%s203 + $0xc60] sm:$0xff] %v2651
        %3164 = vst [vmem:[%s203 + $0xc68] sm:$0xff] %v2652
        %3165 = vst [vmem:[%s203 + $0xc70] sm:$0xff] %v2653
        %3166 = vst [vmem:[%s203 + $0xc78] sm:$0xff] %v2654
        %3167 = vst [vmem:[%s203 + $0xc80] sm:$0xff] %v2655
        %3168 = vst [vmem:[%s203 + $0xc88] sm:$0xff] %v2656
        %3169 = vst [vmem:[%s203 + $0xc90] sm:$0xff] %v2657
        %3170 = vst [vmem:[%s203 + $0xc98] sm:$0xff] %v2658
        %3171 = vst [vmem:[%s203 + $0xca0] sm:$0xff] %v2659
        %3172 = vst [vmem:[%s203 + $0xca8] sm:$0xff] %v2660
        %3173 = vst [vmem:[%s203 + $0xcb0] sm:$0xff] %v2661
        %3174 = vst [vmem:[%s203 + $0xcb8] sm:$0xff] %v2662
        %3175 = vst [vmem:[%s203 + $0xcc0] sm:$0xff] %v2663
        %3176 = vst [vmem:[%s203 + $0xcc8] sm:$0xff] %v2664
        %3177 = vst [vmem:[%s203 + $0xcd0] sm:$0xff] %v2665
        %3178 = vst [vmem:[%s203 + $0xcd8] sm:$0xff] %v2666
        %3179 = vst [vmem:[%s203 + $0xce0] sm:$0xff] %v2667
        %3180 = vst [vmem:[%s203 + $0xce8] sm:$0xff] %v2668
        %3181 = vst [vmem:[%s203 + $0xcf0] sm:$0xff] %v2669
        %3182 = vst [vmem:[%s203 + $0xcf8] sm:$0xff] %v2670
        %3183 = vst [vmem:[%s203 + $0xd00] sm:$0xff] %v2671
        %3184 = vst [vmem:[%s203 + $0xd08] sm:$0xff] %v2672
        %3185 = vst [vmem:[%s203 + $0xd10] sm:$0xff] %v2673
        %3186 = vst [vmem:[%s203 + $0xd18] sm:$0xff] %v2674
        %3187 = vst [vmem:[%s203 + $0xd20] sm:$0xff] %v2675
        %3188 = vst [vmem:[%s203 + $0xd28] sm:$0xff] %v2676
        %3189 = vst [vmem:[%s203 + $0xd30] sm:$0xff] %v2677
        %3190 = vst [vmem:[%s203 + $0xd38] sm:$0xff] %v2678
        %3191 = vst [vmem:[%s203 + $0xd40] sm:$0xff] %v2679
        %3192 = vst [vmem:[%s203 + $0xd48] sm:$0xff] %v2680
        %3193 = vst [vmem:[%s203 + $0xd50] sm:$0xff] %v2681
        %3194 = vst [vmem:[%s203 + $0xd58] sm:$0xff] %v2682
        %3195 = vst [vmem:[%s203 + $0xd60] sm:$0xff] %v2683
        %3196 = vst [vmem:[%s203 + $0xd68] sm:$0xff] %v2684
        %3197 = vst [vmem:[%s203 + $0xd70] sm:$0xff] %v2685
        %3198 = vst [vmem:[%s203 + $0xd78] sm:$0xff] %v2686
        %3199 = vst [vmem:[%s203 + $0xd80] sm:$0xff] %v2687
        %3200 = vst [vmem:[%s203 + $0xd88] sm:$0xff] %v2688
        %3201 = vst [vmem:[%s203 + $0xd90] sm:$0xff] %v2689
        %3202 = vst [vmem:[%s203 + $0xd98] sm:$0xff] %v2690
        %3203 = vst [vmem:[%s203 + $0xda0] sm:$0xff] %v2691
        %3204 = vst [vmem:[%s203 + $0xda8] sm:$0xff] %v2692
        %3205 = vst [vmem:[%s203 + $0xdb0] sm:$0xff] %v2693
        %3206 = vst [vmem:[%s203 + $0xdb8] sm:$0xff] %v2694
        %3207 = vst [vmem:[%s203 + $0xdc0] sm:$0xff] %v2695
        %3208 = vst [vmem:[%s203 + $0xdc8] sm:$0xff] %v2696
        %3209 = vst [vmem:[%s203 + $0xdd0] sm:$0xff] %v2697
        %3210 = vst [vmem:[%s203 + $0xdd8] sm:$0xff] %v2698
        %3211 = vst [vmem:[%s203 + $0xde0] sm:$0xff] %v2699
        %3212 = vst [vmem:[%s203 + $0xde8] sm:$0xff] %v2700
        %3213 = vst [vmem:[%s203 + $0xdf0] sm:$0xff] %v2701
        %3214 = vst [vmem:[%s203 + $0xdf8] sm:$0xff] %v2702
        %3215 = vst [vmem:[%s203 + $0xe00] sm:$0xff] %v2703
        %3216 = vst [vmem:[%s203 + $0xe08] sm:$0xff] %v2704
        %3217 = vst [vmem:[%s203 + $0xe10] sm:$0xff] %v2705
        %3218 = vst [vmem:[%s203 + $0xe18] sm:$0xff] %v2706
        %3219 = vst [vmem:[%s203 + $0xe20] sm:$0xff] %v2707
        %3220 = vst [vmem:[%s203 + $0xe28] sm:$0xff] %v2708
        %3221 = vst [vmem:[%s203 + $0xe30] sm:$0xff] %v2709
        %3222 = vst [vmem:[%s203 + $0xe38] sm:$0xff] %v2710
        %3223 = vst [vmem:[%s203 + $0xe40] sm:$0xff] %v2711
        %3224 = vst [vmem:[%s203 + $0xe48] sm:$0xff] %v2712
        %3225 = vst [vmem:[%s203 + $0xe50] sm:$0xff] %v2713
        %3226 = vst [vmem:[%s203 + $0xe58] sm:$0xff] %v2714
        %3227 = vst [vmem:[%s203 + $0xe60] sm:$0xff] %v2715
        %3228 = vst [vmem:[%s203 + $0xe68] sm:$0xff] %v2716
        %3229 = vst [vmem:[%s203 + $0xe70] sm:$0xff] %v2717
        %3230 = vst [vmem:[%s203 + $0xe78] sm:$0xff] %v2718
        %3231 = vst [vmem:[%s203 + $0xe80] sm:$0xff] %v2719
        %3232 = vst [vmem:[%s203 + $0xe88] sm:$0xff] %v2720
        %3233 = vst [vmem:[%s203 + $0xe90] sm:$0xff] %v2721
        %3234 = vst [vmem:[%s203 + $0xe98] sm:$0xff] %v2722
        %3235 = vst [vmem:[%s203 + $0xea0] sm:$0xff] %v2723
        %3236 = vst [vmem:[%s203 + $0xea8] sm:$0xff] %v2724
        %3237 = vst [vmem:[%s203 + $0xeb0] sm:$0xff] %v2725
        %3238 = vst [vmem:[%s203 + $0xeb8] sm:$0xff] %v2726
        %3239 = vst [vmem:[%s203 + $0xec0] sm:$0xff] %v2727
        %3240 = vst [vmem:[%s203 + $0xec8] sm:$0xff] %v2728
        %3241 = vst [vmem:[%s203 + $0xed0] sm:$0xff] %v2729
        %3242 = vst [vmem:[%s203 + $0xed8] sm:$0xff] %v2730
        %3243 = vst [vmem:[%s203 + $0xee0] sm:$0xff] %v2731
        %3244 = vst [vmem:[%s203 + $0xee8] sm:$0xff] %v2732
        %3245 = vst [vmem:[%s203 + $0xef0] sm:$0xff] %v2733
        %3246 = vst [vmem:[%s203 + $0xef8] sm:$0xff] %v2734
        %3247 = vst [vmem:[%s203 + $0xf00] sm:$0xff] %v2735
        %3248 = vst [vmem:[%s203 + $0xf08] sm:$0xff] %v2736
        %3249 = vst [vmem:[%s203 + $0xf10] sm:$0xff] %v2737
        %3250 = vst [vmem:[%s203 + $0xf18] sm:$0xff] %v2738
        %3251 = vst [vmem:[%s203 + $0xf20] sm:$0xff] %v2739
        %3252 = vst [vmem:[%s203 + $0xf28] sm:$0xff] %v2740
        %3253 = vst [vmem:[%s203 + $0xf30] sm:$0xff] %v2741
        %3254 = vst [vmem:[%s203 + $0xf38] sm:$0xff] %v2742
        %3255 = vst [vmem:[%s203 + $0xf40] sm:$0xff] %v2743
        %3256 = vst [vmem:[%s203 + $0xf48] sm:$0xff] %v2744
        %3257 = vst [vmem:[%s203 + $0xf50] sm:$0xff] %v2745
        %3258 = vst [vmem:[%s203 + $0xf58] sm:$0xff] %v2746
        %3259 = vst [vmem:[%s203 + $0xf60] sm:$0xff] %v2747
        %3260 = vst [vmem:[%s203 + $0xf68] sm:$0xff] %v2748
        %3261 = vst [vmem:[%s203 + $0xf70] sm:$0xff] %v2749
        %3262 = vst [vmem:[%s203 + $0xf78] sm:$0xff] %v2750
        %3263 = vst [vmem:[%s203 + $0xf80] sm:$0xff] %v2751
        %3264 = vst [vmem:[%s203 + $0xf88] sm:$0xff] %v2752
        %3265 = vst [vmem:[%s203 + $0xf90] sm:$0xff] %v2753
        %3266 = vst [vmem:[%s203 + $0xf98] sm:$0xff] %v2754
        %3267 = vst [vmem:[%s203 + $0xfa0] sm:$0xff] %v2755
        %3268 = vst [vmem:[%s203 + $0xfa8] sm:$0xff] %v2756
        %3269 = vst [vmem:[%s203 + $0xfb0] sm:$0xff] %v2757
        %3270 = vst [vmem:[%s203 + $0xfb8] sm:$0xff] %v2758
        %3271 = vst [vmem:[%s203 + $0xfc0] sm:$0xff] %v2759
        %3272 = vst [vmem:[%s203 + $0xfc8] sm:$0xff] %v2760
        %3273 = vst [vmem:[%s203 + $0xfd0] sm:$0xff] %v2761
        %3274 = vst [vmem:[%s203 + $0xfd8] sm:$0xff] %v2762
        %3275 = vst [vmem:[%s203 + $0xfe0] sm:$0xff] %v2763
        %3276 = vst [vmem:[%s203 + $0xfe8] sm:$0xff] %v2764
        %3277 = vst [vmem:[%s203 + $0xff0] sm:$0xff] %v2765
        %3278 = vst [vmem:[%s203 + $0xff8] sm:$0xff] %v2766
        %s3279 = sand.u32 %s82, 1
        %s3280 = scalar_lea.sflag [#allocation4], %s3279
        %s3281 = sand.u32 %s82, 1
        %s3282 = smul.addr %s3281, 4096
        %s3283 = scalar_lea.vmem [#allocation7], %s3282
        // Predicated region
        $region37: #{a_call__.1} parent=27 // pred_check
          %p3284 = pneg %p92
        $region38: #{a_call__.1} parent=27 // pred_check_branch
          %3286 = sbr.rel (%p3284) target = $region40
        $region39: #{a_call__.1} parent=27 // pred_region
          %s3287 = smul.u32 128, %s22
          %s3289 = ssub.s32 65536, 65536
          %3290 = vsyncadd %s3280, %s3289
          %s3291 = smul.addr %s3287, 4
          %s3292 = smul.addr %s3291, 128
          %s3293 = scalar_lea.hbm %s2, %s3292
          %s3294 = sshll.u32 %s3283, 4
          %s3295 = int_to_ptr.vmem [resolvable:$true] %s3294
          %3300 = dma.vmem_to_hbm [thread:$0]  %s3295, 65536, %s3293, %s3280, 512, 512, 32
        $region40: #{a_call__.1} parent=27 // pred_fallthru
          _
      $region28: #{a_call__.1} parent=5 // pred_fallthru
        _
      %p3301 = scmp.le.s32.totalorder 2, %s17
      // Predicated region
      $region41: #{a_call__.1} parent=5 // pred_check
        %p3302 = pneg %p3301
      $region42: #{a_call__.1} parent=5 // pred_check_branch
        %3304 = sbr.rel (%p3302) target = $region44
      $region43: #{a_call__.1} parent=5 // pred_region
        %s3305 = ssub.s32 %s17, 2
        // Predicated region
        $region45: #{a_call__.1} parent=43 // pred_check
          %p3306 = pneg %p98
        $region46: #{a_call__.1} parent=43 // pred_check_branch
          %3308 = sbr.rel (%p3306) target = $region48
        $region47: #{a_call__.1} parent=43 // pred_region
          %s3309 = sand.u32 %s83, 1
          %s3310 = scalar_lea.sflag [#allocation4], %s3309
          %s3311 = sand.u32 %s83, 1
          %s3312 = smul.addr %s3311, 4096
          %s3313 = scalar_lea.vmem [#allocation7], %s3312
          %3314 = dma.done %s3310, 65536
        $region48: #{a_call__.1} parent=43 // pred_fallthru
          _
      $region44: #{a_call__.1} parent=5 // pred_fallthru
        _
    $region6: #{a_call__.1} parent=1 // loop_footer
      %s21 = sadd.s32 1, %s17
    $region7: #{a_call__.1} parent=1 // loop_footer_branch
      %16 = sbr.rel target = $region3
    $region8: #{a_call__.1} parent=1 // loop_exit
      _
    %3315 = vsyncpa [#allocation3], 1
    %s3316 = scalar_lea.sflag [#allocation3], 1
    %3317 = vsyncpa %s3316, 1
    %3318 = vsyncpa [#allocation6], 1
    %s3319 = scalar_lea.sflag [#allocation6], 1
    %3320 = vsyncpa %s3319, 1
    %3321 = vsyncpa [#allocation4], 1
    %s3322 = scalar_lea.sflag [#allocation4], 1
    %3323 = vsyncpa %s3322, 1

</llo_original>
